<compile_context>
chip_gen: v7x
topology: tpu7x:2x2x1
jax: 0.10.0
libtpu: 0.0.40
codegen_flags: <defaults>
</compile_context>

<pallas_src>
import functools

import jax
import jax.numpy as jnp
from jax.experimental import pallas as pl
from jax.experimental.pallas import tpu as pltpu


VMEM = pl.BlockSpec(memory_space=pltpu.MemorySpace.VMEM)


# --------------------------------------------------------------------------
# Pallas kernels
# --------------------------------------------------------------------------

def _ei_encoder_kernel(mel_ref, wh_ref, bh_ref, wp_ref, bp_ref,
                       heads_ref, proj_ref, mask_ref):
    # Fused: non-padding mask + mean-pool + 3 tanh heads (one (M, 3S->pad128)
    # matmul) + block-diagonal style projections (one (3S->pad, 3H) matmul).
    mel = mel_ref[...]                                        # (B, T, M)
    mask_ref[...] = (jnp.sum(jnp.abs(mel), axis=-1) > 0).astype(jnp.float32)
    T = mel.shape[1]
    # TODO(synk): real EI_Encoder pooling unknown; unmasked mean over T here.
    pooled = jnp.sum(mel, axis=1) * (1.0 / T)                 # (B, M)
    heads = jnp.tanh(
        jnp.dot(pooled, wh_ref[...], preferred_element_type=jnp.float32)
        + bh_ref[...])                                        # (B, SP)
    heads_ref[...] = heads
    proj_ref[...] = (jnp.dot(heads, wp_ref[...],
                             preferred_element_type=jnp.float32)
                     + bp_ref[...])                           # (B, 3H)


def _content_enc_kernel(emb_ref, mask_ref, w_ref, b_ref, o_ref):
    # relu(emb @ W + b) * mask    (row-tiled; W/b resident across the grid)
    h = (jnp.dot(emb_ref[...], w_ref[...], preferred_element_type=jnp.float32)
         + b_ref[...])
    o_ref[...] = jnp.maximum(h, 0.0) * mask_ref[...]


def _decoder_kernel(hsrc_ref, widx_ref, h_ref, mask_ref, ca_ref, cb_ref,
                    wc_ref, bc_ref, w1_ref, b1_ref, w2_ref, b2_ref,
                    wo_ref, bo_ref, o_ref):
    # Conditional residual MLP decoder + mel_out + non-padding mask.
    # Grid = (instance, batch, T-tile); weights selected by widx[i] in the
    # index_maps, h / mask selected by hsrc[i]; cond broadcast in-kernel.
    del hsrc_ref, widx_ref                     # only used by index_maps
    h = h_ref[0, 0]                            # (t_tile, H)
    mask = mask_ref[0, 0]                      # (t_tile, 1)
    cond = ca_ref[0, 0] + cb_ref[0, 0]         # (1, H)     cond = a + b
    cond_h = (jnp.dot(cond, wc_ref[0], preferred_element_type=jnp.float32)
              + bc_ref[0])                     # (1, H)  once per batch row
    x = h + cond                               # decoder_inp = h_ling + a + b
    h1 = (jnp.dot(x, w1_ref[0], preferred_element_type=jnp.float32)
          + (b1_ref[0] + cond_h))              # conditional-LN-style injection
    h1 = jnp.maximum(h1, 0.0)
    h2 = (jnp.dot(h1, w2_ref[0], preferred_element_type=jnp.float32)
          + b2_ref[0] + x)                     # residual
    out = (jnp.dot(h2, wo_ref[0], preferred_element_type=jnp.float32)
           + bo_ref[0])                        # mel_out (padded to 128 lanes)
    o_ref[0, 0] = out * mask                   # * tgt_nonpadding


# --------------------------------------------------------------------------
# Wrappers around pallas_call
# --------------------------------------------------------------------------

def ei_encoder_apply(mel, p, style_dim):
    # Returns ((ei_code, e_timbre, e_emo) raw,
    #          (code_proj(ei_code), timbre_proj(e_timbre), emo_proj(e_emo)),
    #          non-padding mask (B, T))
    B, T, _ = mel.shape
    SP = p["ei_wh"].shape[1]
    H3 = p["ei_wp"].shape[1]
    H = H3 // 3
    S = style_dim
    heads, proj, mask = pl.pallas_call(
        _ei_encoder_kernel,
        out_shape=(jax.ShapeDtypeStruct((B, SP), jnp.float32),
                   jax.ShapeDtypeStruct((B, H3), jnp.float32),
                   jax.ShapeDtypeStruct((B, T), jnp.float32)),
        in_specs=[VMEM] * 5,
        out_specs=(VMEM, VMEM, VMEM),
    )(mel, p["ei_wh"], p["ei_bh"], p["ei_wp"], p["ei_bp"])
    raw = (heads[:, 0:S], heads[:, S:2 * S], heads[:, 2 * S:3 * S])
    prj = (proj[:, 0:H], proj[:, H:2 * H], proj[:, 2 * H:3 * H])
    return raw, prj, mask


def content_encoder_apply(units, mask, p):
    # units: (B, T) int32 codes; mask: (B, T)
    B, T = units.shape
    H = p["emb"].shape[1]
    emb = jnp.take(p["emb"], units, axis=0)                  # embedding gather
    BT = B * T
    emb_flat = emb.reshape(BT, H)
    mask_flat = mask.reshape(BT, 1)
    rt = BT if BT <= 512 else 512                            # row tile (mult of 8 or full)
    out = pl.pallas_call(
        _content_enc_kernel,
        out_shape=jax.ShapeDtypeStruct((BT, H), jnp.float32),
        grid=(pl.cdiv(BT, rt),),
        in_specs=[pl.BlockSpec((rt, H), lambda r: (r, 0)),
                  pl.BlockSpec((rt, 1), lambda r: (r, 0)),
                  pl.BlockSpec((H, H), lambda r: (0, 0)),    # weights resident
                  pl.BlockSpec((1, H), lambda r: (0, 0))],
        out_specs=pl.BlockSpec((rt, H), lambda r: (r, 0)),
        compiler_params=pltpu.CompilerParams(
            dimension_semantics=("parallel",)),
    )(emb_flat, mask_flat, p["enc_w"], p["enc_b"])
    return out.reshape(B, T, H)


def decoder_batch_apply(h_stack, mask_stack, h_src, w_idx, cond_a, cond_b, dec_w):
    # h_stack   : (2, B, T, H)  [h_ling, h_ling_drive]
    # mask_stack: (2, B, T, 1)
    # h_src/w_idx: (NI,) int32 scalar-prefetch selectors
    # cond_a/b  : (NI, B, 1, H) projected style vectors per instance
    # dec_w     : dict of stacked weights (2, ...) [timbre, emo]
    _, B, T, H = h_stack.shape
    NI = int(cond_a.shape[0])
    MP = dec_w["wo"].shape[-1]
    t_tile = T if T <= 512 else 512
    grid = (NI, B, pl.cdiv(T, t_tile))

    def amap(i, b, t, hsrc, widx):      # activations follow the h-source index
        return (hsrc[i], b, t, 0)

    def cmap(i, b, t, hsrc, widx):      # conds are per (instance, batch)
        return (i, b, 0, 0)

    def wmap(i, b, t, hsrc, widx):      # weights follow the decoder index
        return (widx[i], 0, 0)

    def omap(i, b, t, hsrc, widx):
        return (i, b, t, 0)

    out = pl.pallas_call(
        _decoder_kernel,
        out_shape=jax.ShapeDtypeStruct((NI, B, T, MP), jnp.float32),
        grid_spec=pltpu.PrefetchScalarGridSpec(
            num_scalar_prefetch=2,
            grid=grid,
            in_specs=[
                pl.BlockSpec((1, 1, t_tile, H), amap),    # h
                pl.BlockSpec((1, 1, t_tile, 1), amap),    # mask
                pl.BlockSpec((1, 1, 1, H), cmap),         # cond_a
                pl.BlockSpec((1, 1, 1, H), cmap),         # cond_b
                pl.BlockSpec((1, H, H), wmap),            # wc
                pl.BlockSpec((1, 1, H), wmap),            # bc
                pl.BlockSpec((1, H, H), wmap),            # w1
                pl.BlockSpec((1, 1, H), wmap),            # b1
                pl.BlockSpec((1, H, H), wmap),            # w2
                pl.BlockSpec((1, 1, H), wmap),            # b2
                pl.BlockSpec((1, H, MP), wmap),           # wo (lane-padded)
                pl.BlockSpec((1, 1, MP), wmap),           # bo
            ],
            out_specs=pl.BlockSpec((1, 1, t_tile, MP), omap),
        ),
        compiler_params=pltpu.CompilerParams(
            dimension_semantics=("parallel", "parallel", "arbitrary")),
    )(h_src, w_idx, h_stack, mask_stack, cond_a, cond_b,
      dec_w["wc"], dec_w["bc"], dec_w["w1"], dec_w["b1"],
      dec_w["w2"], dec_w["b2"], dec_w["wo"], dec_w["bo"])
    return out                                               # (NI, B, T, MP)


# --------------------------------------------------------------------------
# Parameter init (deterministic, synthetic) + packing for the fused kernels
# --------------------------------------------------------------------------

def _lin(key, din, dout):
    kw, kb = jax.random.split(key)
    s = 1.0 / jnp.sqrt(jnp.float32(din))
    w = jax.random.uniform(kw, (din, dout), jnp.float32, -s, s)
    b = jax.random.uniform(kb, (1, dout), jnp.float32, -s, s)
    return w, b


def _round_up(x, m):
    return ((x + m - 1) // m) * m


def init_params(key, num_codes=50, H=128, S=32, M=16):
    ks = jax.random.split(key, 16)
    p = {}
    # content encoder (synthetic: embedding + masked MLP)
    p["emb"] = 0.1 * jax.random.normal(ks[0], (num_codes, H), jnp.float32)
    p["enc_w"], p["enc_b"] = _lin(ks[1], H, H)

    # EI encoder heads (order: ei_code, e_timbre, e_emo): mel_dim -> style_dim
    code_w, code_b = _lin(ks[2], M, S)
    tim_w, tim_b = _lin(ks[3], M, S)
    emo_w, emo_b = _lin(ks[4], M, S)
    # style projections: style_dim -> hidden_size
    cproj_w, cproj_b = _lin(ks[5], S, H)
    tproj_w, tproj_b = _lin(ks[6], S, H)
    eproj_w, eproj_b = _lin(ks[7], S, H)

    # Fused + lane-padded head weights (M, SP) and block-diag proj (SP, 3H).
    SP = _round_up(3 * S, 128)
    wh = jnp.zeros((M, SP), jnp.float32)
    wh = (wh.at[:, 0:S].set(code_w)
            .at[:, S:2 * S].set(tim_w)
            .at[:, 2 * S:3 * S].set(emo_w))
    bh = jnp.zeros((1, SP), jnp.float32)
    bh = (bh.at[:, 0:S].set(code_b)
            .at[:, S:2 * S].set(tim_b)
            .at[:, 2 * S:3 * S].set(emo_b))
    wp = jnp.zeros((SP, 3 * H), jnp.float32)
    wp = (wp.at[0:S, 0:H].set(cproj_w)
            .at[S:2 * S, H:2 * H].set(tproj_w)
            .at[2 * S:3 * S, 2 * H:3 * H].set(eproj_w))
    bp = jnp.concatenate([cproj_b, tproj_b, eproj_b], axis=1)   # (1, 3H)
    p["ei_wh"], p["ei_bh"], p["ei_wp"], p["ei_bp"] = wh, bh, wp, bp

    # Decoders (synthetic conditional residual MLP + mel_out), mel_out padded
    # to MP lanes so output stores are unmasked / lane-dense.
    MP = _round_up(M, 128)

    def dec_params(kd):
        kk = jax.random.split(kd, 4)
        wc, bc = _lin(kk[0], H, H)
        w1, b1 = _lin(kk[1], H, H)
        w2, b2 = _lin(kk[2], H, H)
        wo, bo = _lin(kk[3], H, M)
        wo_p = jnp.zeros((H, MP), jnp.float32).at[:, :M].set(wo)
        bo_p = jnp.zeros((1, MP), jnp.float32).at[:, :M].set(bo)
        return dict(wc=wc, bc=bc, w1=w1, b1=b1, w2=w2, b2=b2, wo=wo_p, bo=bo_p)

    tdec = dec_params(ks[8])          # timbre_decoder + timbre_mel_out
    edec = dec_params(ks[9])          # emo_decoder + emo_mel_out
    # stacked decoder weights: index 0 = timbre, 1 = emo
    p["dec"] = {k: jnp.stack([tdec[k], edec[k]], axis=0) for k in tdec}
    return p


# --------------------------------------------------------------------------
# EI_Network forward (mirrors the PyTorch forward graph)
# --------------------------------------------------------------------------

@functools.partial(jax.jit, static_argnames=("style_dim", "stage"))
def ei_network_forward(p, mel, drive_mel, mel_unit, drive_mel_unit,
                       style_dim=32, stage="train"):
    ret = {}
    B, T, M = mel.shape
    H = p["enc_w"].shape[1]

    # Fused EI encoder (heads + projections + mask) — one kernel per mel.
    (_, e_timbre_r, e_emo_r), (ei_code, e_timbre, e_emo), mel_mask = \
        ei_encoder_apply(mel, p, style_dim)
    (_, e_timbre_dr, e_emo_dr), \
        (ei_code_drive, e_timbre_drive, e_emo_drive), drive_mel_mask = \
        ei_encoder_apply(drive_mel, p, style_dim)
    ret["e_timbre"] = e_timbre_r
    ret["e_emo"] = e_emo_r
    ret["e_timbre_drive"] = e_timbre_dr
    ret["e_emo_drive"] = e_emo_dr

    h_ling = content_encoder_apply(mel_unit, mel_mask, p)
    h_ling_drive = content_encoder_apply(drive_mel_unit, drive_mel_mask, p)

    h_stack = jnp.stack([h_ling, h_ling_drive], axis=0)              # (2,B,T,H)
    mask_stack = jnp.stack([mel_mask, drive_mel_mask], axis=0)[..., None]

    def conds(pairs):
        a = jnp.stack([x for x, _ in pairs], axis=0).reshape(len(pairs), B, 1, H)
        b = jnp.stack([y for _, y in pairs], axis=0).reshape(len(pairs), B, 1, H)
        return a, b

    dec = p["dec"]

    if stage == "train":
        # phase 1 (no dependency on re-encoded styles): one batched call,
        # instances = [fake_timbreB2A, fake_selftimbre, fake_emoA2B, fake_selfemo]
        ca1, cb1 = conds([(e_timbre_drive, ei_code),
                          (ei_code, e_timbre),
                          (ei_code_drive, e_emo),
                          (e_emo, ei_code)])
        h_src1 = jnp.array([0, 0, 1, 0], jnp.int32)
        w_idx1 = jnp.array([0, 0, 1, 1], jnp.int32)   # 0=timbre dec, 1=emo dec
        out1 = decoder_batch_apply(h_stack, mask_stack, h_src1, w_idx1,
                                   ca1, cb1, dec)
        fake_timbreB2A = out1[0, :, :, :M]
        fake_selftimbre = out1[1, :, :, :M]
        fake_emoA2B = out1[2, :, :, :M]
        fake_selfemo = out1[3, :, :, :M]
        ret["fake_timbreB2A"] = fake_timbreB2A
        ret["fake_selftimbre"] = fake_selftimbre
        ret["fake_emoA2B"] = fake_emoA2B
        ret["fake_selfemo"] = fake_selfemo

        # re-encode the two cycle reconstructions (mask output ignored)
        (_, e_timbre1_r, e_emo1_r), (ei_code1, _, _), _ = \
            ei_encoder_apply(fake_timbreB2A, p, style_dim)
        ret["e_timbre1"] = e_timbre1_r
        ret["e_emo1"] = e_emo1_r
        (_, e_timbre2_r, e_emo2_r), (ei_code2, _, _), _ = \
            ei_encoder_apply(fake_emoA2B, p, style_dim)
        ret["e_timbre2"] = e_timbre2_r
        ret["e_emo2"] = e_emo2_r

        # phase 2: [fake_emo_timbreA2B, fake_dual_forward,
        #           fake_timbre_emoB2A, fake_dual_back]
        ca2, cb2 = conds([(e_timbre, ei_code2),
                          (e_timbre, ei_code1),
                          (ei_code1, e_emo_drive),
                          (ei_code2, e_emo_drive)])
        h_src2 = jnp.array([1, 0, 0, 1], jnp.int32)
        w_idx2 = jnp.array([0, 0, 1, 1], jnp.int32)
        out2 = decoder_batch_apply(h_stack, mask_stack, h_src2, w_idx2,
                                   ca2, cb2, dec)
        ret["fake_emo_timbreA2B"] = out2[0, :, :, :M]
        ret["fake_dual_forward"] = out2[1, :, :, :M]
        ret["fake_timbre_emoB2A"] = out2[2, :, :, :M]
        ret["fake_dual_back"] = out2[3, :, :, :M]
        return ret

    elif stage == "timbre":
        ca, cb = conds([(e_timbre_drive, ei_code)])
        out = decoder_batch_apply(h_stack, mask_stack,
                                  jnp.array([0], jnp.int32),
                                  jnp.array([0], jnp.int32), ca, cb, dec)
        return out[0, :, :, :M]

    elif stage == "emo":
        ca, cb = conds([(e_emo_drive, ei_code)])
        out = decoder_batch_apply(h_stack, mask_stack,
                                  jnp.array([0], jnp.int32),
                                  jnp.array([1], jnp.int32), ca, cb, dec)
        return out[0, :, :, :M]

    elif stage == "both":
        ca, cb = conds([(e_timbre_drive, ei_code)])
        out = decoder_batch_apply(h_stack, mask_stack,
                                  jnp.array([0], jnp.int32),
                                  jnp.array([0], jnp.int32), ca, cb, dec)
        mel_recon = out[0, :, :, :M]
        _, (ei_code1, _, _), _ = ei_encoder_apply(mel_recon, p, style_dim)
        ca2, cb2 = conds([(ei_code1, e_emo_drive)])
        out2 = decoder_batch_apply(h_stack, mask_stack,
                                   jnp.array([0], jnp.int32),
                                   jnp.array([1], jnp.int32), ca2, cb2, dec)
        return out2[0, :, :, :M]

    else:
        raise ValueError("unknown stage")


# --------------------------------------------------------------------------
# Main
# --------------------------------------------------------------------------

if __name__ == "__main__":
    B, T, M, H, S, num_codes = 2, 16, 16, 128, 32, 50

    key = jax.random.PRNGKey(0)
    kp, k1, k2, k3, k4 = jax.random.split(key, 5)
    params = init_params(kp, num_codes=num_codes, H=H, S=S, M=M)

    mel = jax.random.normal(k1, (B, T, M), jnp.float32)
    drive_mel = jax.random.normal(k2, (B, T, M), jnp.float32)
    # zero-pad trailing frames so the non-padding mask actually does work
    mel = mel.at[1, T - 4:, :].set(0.0)
    drive_mel = drive_mel.at[0, T - 2:, :].set(0.0)
    mel_unit = jax.random.randint(k3, (B, T), 0, num_codes, dtype=jnp.int32)
    drive_mel_unit = jax.random.randint(k4, (B, T), 0, num_codes, dtype=jnp.int32)

    ret = ei_network_forward(params, mel, drive_mel, mel_unit, drive_mel_unit,
                             style_dim=S, stage="train")
    jax.block_until_ready(ret)

    assert ret["fake_timbreB2A"].shape == (B, T, M)
    assert ret["fake_selfemo"].shape == (B, T, M)
    assert ret["fake_dual_back"].shape == (B, T, M)
    assert ret["e_timbre"].shape == (B, S)
    assert ret["e_emo2"].shape == (B, S)

    recon = ei_network_forward(params, mel, drive_mel, mel_unit, drive_mel_unit,
                               style_dim=S, stage="both")
    jax.block_until_ready(recon)
    assert recon.shape == (B, T, M)

    print("KERNEL_OK")
</pallas_src>

<mosaic_0001>
module attributes {stable_mosaic.version = 11 : i64} {
  func.func @_ei_encoder_kernel(%arg0: memref<2x16x16xf32, #tpu.memory_space<vmem>>, %arg1: memref<16x128xf32, #tpu.memory_space<vmem>>, %arg2: memref<1x128xf32, #tpu.memory_space<vmem>>, %arg3: memref<128x384xf32, #tpu.memory_space<vmem>>, %arg4: memref<1x384xf32, #tpu.memory_space<vmem>>, %arg5: memref<2x128xf32, #tpu.memory_space<vmem>>, %arg6: memref<2x384xf32, #tpu.memory_space<vmem>>, %arg7: memref<2x16xf32, #tpu.memory_space<vmem>>) attributes {dimension_semantics = [], scalar_prefetch = 0 : i64, scratch_operands = 0 : i64, tpu.core_type = #tpu.core_type<tc>} {
    %c0 = arith.constant 0 : index
    %c0_0 = arith.constant 0 : index
    %c0_1 = arith.constant 0 : index
    %0 = vector.load %arg0[%c0, %c0_0, %c0_1] : memref<2x16x16xf32, #tpu.memory_space<vmem>>, vector<2x16x16xf32>
    %1 = math.absf %0 : vector<2x16x16xf32>
    %cst = arith.constant dense<0.000000e+00> : vector<2x16xf32>
    %2 = vector.multi_reduction <add>, %1, %cst [2] : vector<2x16x16xf32> to vector<2x16xf32>
    %cst_2 = arith.constant 0.000000e+00 : f32
    %3 = vector.broadcast %cst_2 : f32 to vector<2x16xf32>
    %4 = arith.cmpf ogt, %2, %3 : vector<2x16xf32>
    %5 = arith.extui %4 : vector<2x16xi1> to vector<2x16xi32>
    %6 = arith.sitofp %5 : vector<2x16xi32> to vector<2x16xf32>
    %c0_3 = arith.constant 0 : index
    %c0_4 = arith.constant 0 : index
    %7 = vector.load %arg7[%c0_3, %c0_4] : memref<2x16xf32, #tpu.memory_space<vmem>>, vector<2x16xf32>
    tpu.vector_store %arg7[%c0_3, %c0_4], %6 {strides = array<i32>} : memref<2x16xf32, #tpu.memory_space<vmem>>, vector<2x16xf32>,
    %cst_5 = arith.constant dense<0.000000e+00> : vector<2x16xf32>
    %8 = vector.multi_reduction <add>, %0, %cst_5 [1] : vector<2x16x16xf32> to vector<2x16xf32>
    %cst_6 = arith.constant 6.250000e-02 : f32
    %9 = vector.broadcast %cst_6 : f32 to vector<2x16xf32>
    %10 = arith.mulf %8, %9 : vector<2x16xf32>
    %c0_7 = arith.constant 0 : index
    %c0_8 = arith.constant 0 : index
    %11 = vector.load %arg1[%c0_7, %c0_8] : memref<16x128xf32, #tpu.memory_space<vmem>>, vector<16x128xf32>
    %cst_9 = arith.constant dense<0.000000e+00> : vector<2x128xf32>
    %12 = tpu.matmul %10, %11, %cst_9 {dimension_numbers = #tpu.dot_dimension_numbers<[1], [0], [0], [1], [0, 0, 1, 1], [], []>} : vector<2x16xf32>, vector<16x128xf32>, vector<2x128xf32> -> vector<2x128xf32>
    %c0_10 = arith.constant 0 : index
    %c0_11 = arith.constant 0 : index
    %13 = vector.load %arg2[%c0_10, %c0_11] : memref<1x128xf32, #tpu.memory_space<vmem>>, vector<1x128xf32>
    %14 = vector.broadcast %13 : vector<1x128xf32> to vector<2x128xf32>
    %15 = arith.addf %12, %14 : vector<2x128xf32>
    %16 = math.tanh %15 : vector<2x128xf32>
    %c0_12 = arith.constant 0 : index
    %c0_13 = arith.constant 0 : index
    %17 = vector.load %arg5[%c0_12, %c0_13] : memref<2x128xf32, #tpu.memory_space<vmem>>, vector<2x128xf32>
    tpu.vector_store %arg5[%c0_12, %c0_13], %16 {strides = array<i32>} : memref<2x128xf32, #tpu.memory_space<vmem>>, vector<2x128xf32>,
    %c0_14 = arith.constant 0 : index
    %c0_15 = arith.constant 0 : index
    %18 = vector.load %arg3[%c0_14, %c0_15] : memref<128x384xf32, #tpu.memory_space<vmem>>, vector<128x384xf32>
    %cst_16 = arith.constant dense<0.000000e+00> : vector<2x384xf32>
    %19 = tpu.matmul %16, %18, %cst_16 {dimension_numbers = #tpu.dot_dimension_numbers<[1], [0], [0], [1], [0, 0, 1, 1], [], []>} : vector<2x128xf32>, vector<128x384xf32>, vector<2x384xf32> -> vector<2x384xf32>
    %c0_17 = arith.constant 0 : index
    %c0_18 = arith.constant 0 : index
    %20 = vector.load %arg4[%c0_17, %c0_18] : memref<1x384xf32, #tpu.memory_space<vmem>>, vector<1x384xf32>
    %21 = vector.broadcast %20 : vector<1x384xf32> to vector<2x384xf32>
    %22 = arith.addf %19, %21 : vector<2x384xf32>
    %c0_19 = arith.constant 0 : index
    %c0_20 = arith.constant 0 : index
    %23 = vector.load %arg6[%c0_19, %c0_20] : memref<2x384xf32, #tpu.memory_space<vmem>>, vector<2x384xf32>
    tpu.vector_store %arg6[%c0_19, %c0_20], %22 {strides = array<i32>} : memref<2x384xf32, #tpu.memory_space<vmem>>, vector<2x384xf32>,
    return
  }
}

module attributes {stable_mosaic.version = 11 : i64} {
  func.func @_ei_encoder_kernel(%arg0: memref<2x16x16xf32, #tpu.memory_space<vmem>>, %arg1: memref<16x128xf32, #tpu.memory_space<vmem>>, %arg2: memref<1x128xf32, #tpu.memory_space<vmem>>, %arg3: memref<128x384xf32, #tpu.memory_space<vmem>>, %arg4: memref<1x384xf32, #tpu.memory_space<vmem>>, %arg5: memref<2x128xf32, #tpu.memory_space<vmem>>, %arg6: memref<2x384xf32, #tpu.memory_space<vmem>>, %arg7: memref<2x16xf32, #tpu.memory_space<vmem>>) attributes {dimension_semantics = [], scalar_prefetch = 0 : i64, scratch_operands = 0 : i64, tpu.core_type = #tpu.core_type<tc>} {
    %c0 = arith.constant 0 : index
    %c0_0 = arith.constant 0 : index
    %c0_1 = arith.constant 0 : index
    %0 = vector.load %arg0[%c0, %c0_0, %c0_1] : memref<2x16x16xf32, #tpu.memory_space<vmem>>, vector<2x16x16xf32>
    %1 = math.absf %0 : vector<2x16x16xf32>
    %cst = arith.constant dense<0.000000e+00> : vector<2x16xf32>
    %2 = vector.multi_reduction <add>, %1, %cst [2] : vector<2x16x16xf32> to vector<2x16xf32>
    %cst_2 = arith.constant 0.000000e+00 : f32
    %3 = vector.broadcast %cst_2 : f32 to vector<2x16xf32>
    %4 = arith.cmpf ogt, %2, %3 : vector<2x16xf32>
    %5 = arith.extui %4 : vector<2x16xi1> to vector<2x16xi32>
    %6 = arith.sitofp %5 : vector<2x16xi32> to vector<2x16xf32>
    %c0_3 = arith.constant 0 : index
    %c0_4 = arith.constant 0 : index
    %7 = vector.load %arg7[%c0_3, %c0_4] : memref<2x16xf32, #tpu.memory_space<vmem>>, vector<2x16xf32>
    tpu.vector_store %arg7[%c0_3, %c0_4], %6 {strides = array<i32>} : memref<2x16xf32, #tpu.memory_space<vmem>>, vector<2x16xf32>,
    %cst_5 = arith.constant dense<0.000000e+00> : vector<2x16xf32>
    %8 = vector.multi_reduction <add>, %0, %cst_5 [1] : vector<2x16x16xf32> to vector<2x16xf32>
    %cst_6 = arith.constant 6.250000e-02 : f32
    %9 = vector.broadcast %cst_6 : f32 to vector<2x16xf32>
    %10 = arith.mulf %8, %9 : vector<2x16xf32>
    %c0_7 = arith.constant 0 : index
    %c0_8 = arith.constant 0 : index
    %11 = vector.load %arg1[%c0_7, %c0_8] : memref<16x128xf32, #tpu.memory_space<vmem>>, vector<16x128xf32>
    %cst_9 = arith.constant dense<0.000000e+00> : vector<2x128xf32>
    %12 = tpu.matmul %10, %11, %cst_9 {dimension_numbers = #tpu.dot_dimension_numbers<[1], [0], [0], [1], [0, 0, 1, 1], [], []>} : vector<2x16xf32>, vector<16x128xf32>, vector<2x128xf32> -> vector<2x128xf32>
    %c0_10 = arith.constant 0 : index
    %c0_11 = arith.constant 0 : index
    %13 = vector.load %arg2[%c0_10, %c0_11] : memref<1x128xf32, #tpu.memory_space<vmem>>, vector<1x128xf32>
    %14 = vector.broadcast %13 : vector<1x128xf32> to vector<2x128xf32>
    %15 = arith.addf %12, %14 : vector<2x128xf32>
    %16 = math.tanh %15 : vector<2x128xf32>
    %c0_12 = arith.constant 0 : index
    %c0_13 = arith.constant 0 : index
    %17 = vector.load %arg5[%c0_12, %c0_13] : memref<2x128xf32, #tpu.memory_space<vmem>>, vector<2x128xf32>
    tpu.vector_store %arg5[%c0_12, %c0_13], %16 {strides = array<i32>} : memref<2x128xf32, #tpu.memory_space<vmem>>, vector<2x128xf32>,
    %c0_14 = arith.constant 0 : index
    %c0_15 = arith.constant 0 : index
    %18 = vector.load %arg3[%c0_14, %c0_15] : memref<128x384xf32, #tpu.memory_space<vmem>>, vector<128x384xf32>
    %cst_16 = arith.constant dense<0.000000e+00> : vector<2x384xf32>
    %19 = tpu.matmul %16, %18, %cst_16 {dimension_numbers = #tpu.dot_dimension_numbers<[1], [0], [0], [1], [0, 0, 1, 1], [], []>} : vector<2x128xf32>, vector<128x384xf32>, vector<2x384xf32> -> vector<2x384xf32>
    %c0_17 = arith.constant 0 : index
    %c0_18 = arith.constant 0 : index
    %20 = vector.load %arg4[%c0_17, %c0_18] : memref<1x384xf32, #tpu.memory_space<vmem>>, vector<1x384xf32>
    %21 = vector.broadcast %20 : vector<1x384xf32> to vector<2x384xf32>
    %22 = arith.addf %19, %21 : vector<2x384xf32>
    %c0_19 = arith.constant 0 : index
    %c0_20 = arith.constant 0 : index
    %23 = vector.load %arg6[%c0_19, %c0_20] : memref<2x384xf32, #tpu.memory_space<vmem>>, vector<2x384xf32>
    tpu.vector_store %arg6[%c0_19, %c0_20], %22 {strides = array<i32>} : memref<2x384xf32, #tpu.memory_space<vmem>>, vector<2x384xf32>,
    return
  }
}

module attributes {stable_mosaic.version = 11 : i64} {
  func.func @_content_enc_kernel(%arg0: i32, %arg1: memref<32x128xf32, #tpu.memory_space<vmem>>, %arg2: memref<32x1xf32, #tpu.memory_space<vmem>>, %arg3: memref<128x128xf32, #tpu.memory_space<vmem>>, %arg4: memref<1x128xf32, #tpu.memory_space<vmem>>, %arg5: memref<32x128xf32, #tpu.memory_space<vmem>>) attributes {dimension_semantics = [#tpu.dimension_semantics<parallel>], iteration_bounds = array<i64: 1>, scalar_prefetch = 0 : i64, scratch_operands = 0 : i64, tpu.core_type = #tpu.core_type<tc>, window_params = [{transform_indices = @transform_0, window_bounds = array<i64: 32, 128>}, {transform_indices = @transform_1, window_bounds = array<i64: 32, 1>}, {pipeline_mode = #tpu.pipeline_mode<synchronous>, transform_indices = @transform_2, window_bounds = array<i64: 128, 128>}, {pipeline_mode = #tpu.pipeline_mode<synchronous>, transform_indices = @transform_3, window_bounds = array<i64: 1, 128>}, {transform_indices = @transform_4, window_bounds = array<i64: 32, 128>}]} {
    %c0 = arith.constant 0 : index
    %c0_0 = arith.constant 0 : index
    %0 = vector.load %arg1[%c0, %c0_0] : memref<32x128xf32, #tpu.memory_space<vmem>>, vector<32x128xf32>
    %c0_1 = arith.constant 0 : index
    %c0_2 = arith.constant 0 : index
    %1 = vector.load %arg3[%c0_1, %c0_2] : memref<128x128xf32, #tpu.memory_space<vmem>>, vector<128x128xf32>
    %cst = arith.constant dense<0.000000e+00> : vector<32x128xf32>
    %2 = tpu.matmul %0, %1, %cst {dimension_numbers = #tpu.dot_dimension_numbers<[1], [0], [0], [1], [0, 0, 1, 1], [], []>} : vector<32x128xf32>, vector<128x128xf32>, vector<32x128xf32> -> vector<32x128xf32>
    %c0_3 = arith.constant 0 : index
    %c0_4 = arith.constant 0 : index
    %3 = vector.load %arg4[%c0_3, %c0_4] : memref<1x128xf32, #tpu.memory_space<vmem>>, vector<1x128xf32>
    %4 = vector.broadcast %3 : vector<1x128xf32> to vector<32x128xf32>
    %5 = arith.addf %2, %4 : vector<32x128xf32>
    %cst_5 = arith.constant 0.000000e+00 : f32
    %6 = vector.broadcast %cst_5 : f32 to vector<32x128xf32>
    %7 = arith.maximumf %5, %6 : vector<32x128xf32>
    %c0_6 = arith.constant 0 : index
    %c0_7 = arith.constant 0 : index
    %8 = vector.load %arg2[%c0_6, %c0_7] : memref<32x1xf32, #tpu.memory_space<vmem>>, vector<32x1xf32>
    %9 = vector.broadcast %8 : vector<32x1xf32> to vector<32x128xf32>
    %10 = arith.mulf %7, %9 : vector<32x128xf32>
    %c0_8 = arith.constant 0 : index
    %c0_9 = arith.constant 0 : index
    %11 = vector.load %arg5[%c0_8, %c0_9] : memref<32x128xf32, #tpu.memory_space<vmem>>, vector<32x128xf32>
    tpu.vector_store %arg5[%c0_8, %c0_9], %10 {strides = array<i32>} : memref<32x128xf32, #tpu.memory_space<vmem>>, vector<32x128xf32>,
    return
  }
  func.func @transform_0(%arg0: i32) -> (i32, i32) {
    %c0_i32 = arith.constant 0 : i32
    %c0_i32_0 = arith.constant 0 : i32
    return %arg0, %c0_i32 : i32, i32
  }
  func.func @transform_1(%arg0: i32) -> (i32, i32) {
    %c0_i32 = arith.constant 0 : i32
    %c0_i32_0 = arith.constant 0 : i32
    return %arg0, %c0_i32 : i32, i32
  }
  func.func @transform_2(%arg0: i32) -> (i32, i32) {
    %c0_i32 = arith.constant 0 : i32
    %c0_i32_0 = arith.constant 0 : i32
    %c0_i32_1 = arith.constant 0 : i32
    return %c0_i32, %c0_i32_0 : i32, i32
  }
  func.func @transform_3(%arg0: i32) -> (i32, i32) {
    %c0_i32 = arith.constant 0 : i32
    %c0_i32_0 = arith.constant 0 : i32
    %c0_i32_1 = arith.constant 0 : i32
    return %c0_i32, %c0_i32_0 : i32, i32
  }
  func.func @transform_4(%arg0: i32) -> (i32, i32) {
    %c0_i32 = arith.constant 0 : i32
    %c0_i32_0 = arith.constant 0 : i32
    return %arg0, %c0_i32 : i32, i32
  }
}

module attributes {stable_mosaic.version = 11 : i64} {
  func.func @_decoder_kernel(%arg0: i32, %arg1: i32, %arg2: i32, %arg3: memref<4xi32, #tpu.memory_space<smem>>, %arg4: memref<4xi32, #tpu.memory_space<smem>>, %arg5: memref<1x1x16x128xf32, #tpu.memory_space<vmem>>, %arg6: memref<1x1x16x1xf32, #tpu.memory_space<vmem>>, %arg7: memref<1x1x1x128xf32, #tpu.memory_space<vmem>>, %arg8: memref<1x1x1x128xf32, #tpu.memory_space<vmem>>, %arg9: memref<1x128x128xf32, #tpu.memory_space<vmem>>, %arg10: memref<1x1x128xf32, #tpu.memory_space<vmem>>, %arg11: memref<1x128x128xf32, #tpu.memory_space<vmem>>, %arg12: memref<1x1x128xf32, #tpu.memory_space<vmem>>, %arg13: memref<1x128x128xf32, #tpu.memory_space<vmem>>, %arg14: memref<1x1x128xf32, #tpu.memory_space<vmem>>, %arg15: memref<1x128x128xf32, #tpu.memory_space<vmem>>, %arg16: memref<1x1x128xf32, #tpu.memory_space<vmem>>, %arg17: memref<1x1x16x128xf32, #tpu.memory_space<vmem>>) attributes {dimension_semantics = [#tpu.dimension_semantics<parallel>, #tpu.dimension_semantics<parallel>, #tpu.dimension_semantics<arbitrary>], iteration_bounds = array<i64: 4, 2, 1>, scalar_prefetch = 2 : i64, scratch_operands = 0 : i64, tpu.core_type = #tpu.core_type<tc>, window_params = [{transform_indices = @transform_0, window_bounds = array<i64: 1, 1, 16, 128>}, {transform_indices = @transform_1, window_bounds = array<i64: 1, 1, 16, 1>}, {transform_indices = @transform_2, window_bounds = array<i64: 1, 1, 1, 128>}, {transform_indices = @transform_3, window_bounds = array<i64: 1, 1, 1, 128>}, {transform_indices = @transform_4, window_bounds = array<i64: 1, 128, 128>}, {transform_indices = @transform_5, window_bounds = array<i64: 1, 1, 128>}, {transform_indices = @transform_6, window_bounds = array<i64: 1, 128, 128>}, {transform_indices = @transform_7, window_bounds = array<i64: 1, 1, 128>}, {transform_indices = @transform_8, window_bounds = array<i64: 1, 128, 128>}, {transform_indices = @transform_9, window_bounds = array<i64: 1, 1, 128>}, {transform_indices = @transform_10, window_bounds = array<i64: 1, 128, 128>}, {transform_indices = @transform_11, window_bounds = array<i64: 1, 1, 128>}, {transform_indices = @transform_12, window_bounds = array<i64: 1, 1, 16, 128>}]} {
    %c0 = arith.constant 0 : index
    %c0_0 = arith.constant 0 : index
    %c0_1 = arith.constant 0 : index
    %c0_2 = arith.constant 0 : index
    %0 = vector.load %arg5[%c0, %c0_0, %c0_1, %c0_2] : memref<1x1x16x128xf32, #tpu.memory_space<vmem>>, vector<1x1x16x128xf32>
    %1 = vector.shape_cast %0 : vector<1x1x16x128xf32> to vector<16x128xf32>
    %c0_3 = arith.constant 0 : index
    %c0_4 = arith.constant 0 : index
    %c0_5 = arith.constant 0 : index
    %c0_6 = arith.constant 0 : index
    %2 = vector.load %arg6[%c0_3, %c0_4, %c0_5, %c0_6] : memref<1x1x16x1xf32, #tpu.memory_space<vmem>>, vector<1x1x16x1xf32>
    %3 = vector.shape_cast %2 : vector<1x1x16x1xf32> to vector<16x1xf32>
    %c0_7 = arith.constant 0 : index
    %c0_8 = arith.constant 0 : index
    %c0_9 = arith.constant 0 : index
    %c0_10 = arith.constant 0 : index
    %4 = vector.load %arg7[%c0_7, %c0_8, %c0_9, %c0_10] : memref<1x1x1x128xf32, #tpu.memory_space<vmem>>, vector<1x1x1x128xf32>
    %5 = vector.shape_cast %4 : vector<1x1x1x128xf32> to vector<1x128xf32>
    %c0_11 = arith.constant 0 : index
    %c0_12 = arith.constant 0 : index
    %c0_13 = arith.constant 0 : index
    %c0_14 = arith.constant 0 : index
    %6 = vector.load %arg8[%c0_11, %c0_12, %c0_13, %c0_14] : memref<1x1x1x128xf32, #tpu.memory_space<vmem>>, vector<1x1x1x128xf32>
    %7 = vector.shape_cast %6 : vector<1x1x1x128xf32> to vector<1x128xf32>
    %8 = arith.addf %5, %7 : vector<1x128xf32>
    %c0_15 = arith.constant 0 : index
    %c0_16 = arith.constant 0 : index
    %c0_17 = arith.constant 0 : index
    %9 = vector.load %arg9[%c0_15, %c0_16, %c0_17] : memref<1x128x128xf32, #tpu.memory_space<vmem>>, vector<1x128x128xf32>
    %10 = vector.shape_cast %9 : vector<1x128x128xf32> to vector<128x128xf32>
    %cst = arith.constant dense<0.000000e+00> : vector<1x128xf32>
    %11 = tpu.matmul %8, %10, %cst {dimension_numbers = #tpu.dot_dimension_numbers<[1], [0], [0], [1], [0, 0, 1, 1], [], []>} : vector<1x128xf32>, vector<128x128xf32>, vector<1x128xf32> -> vector<1x128xf32>
    %c0_18 = arith.constant 0 : index
    %c0_19 = arith.constant 0 : index
    %c0_20 = arith.constant 0 : index
    %12 = vector.load %arg10[%c0_18, %c0_19, %c0_20] : memref<1x1x128xf32, #tpu.memory_space<vmem>>, vector<1x1x128xf32>
    %13 = vector.shape_cast %12 : vector<1x1x128xf32> to vector<1x128xf32>
    %14 = arith.addf %11, %13 : vector<1x128xf32>
    %15 = vector.broadcast %8 : vector<1x128xf32> to vector<16x128xf32>
    %16 = arith.addf %1, %15 : vector<16x128xf32>
    %c0_21 = arith.constant 0 : index
    %c0_22 = arith.constant 0 : index
    %c0_23 = arith.constant 0 : index
    %17 = vector.load %arg11[%c0_21, %c0_22, %c0_23] : memref<1x128x128xf32, #tpu.memory_space<vmem>>, vector<1x128x128xf32>
    %18 = vector.shape_cast %17 : vector<1x128x128xf32> to vector<128x128xf32>
    %cst_24 = arith.constant dense<0.000000e+00> : vector<16x128xf32>
    %19 = tpu.matmul %16, %18, %cst_24 {dimension_numbers = #tpu.dot_dimension_numbers<[1], [0], [0], [1], [0, 0, 1, 1], [], []>} : vector<16x128xf32>, vector<128x128xf32>, vector<16x128xf32> -> vector<16x128xf32>
    %c0_25 = arith.constant 0 : index
    %c0_26 = arith.constant 0 : index
    %c0_27 = arith.constant 0 : index
    %20 = vector.load %arg12[%c0_25, %c0_26, %c0_27] : memref<1x1x128xf32, #tpu.memory_space<vmem>>, vector<1x1x128xf32>
    %21 = vector.shape_cast %20 : vector<1x1x128xf32> to vector<1x128xf32>
    %22 = arith.addf %21, %14 : vector<1x128xf32>
    %23 = vector.broadcast %22 : vector<1x128xf32> to vector<16x128xf32>
    %24 = arith.addf %19, %23 : vector<16x128xf32>
    %cst_28 = arith.constant 0.000000e+00 : f32
    %25 = vector.broadcast %cst_28 : f32 to vector<16x128xf32>
    %26 = arith.maximumf %24, %25 : vector<16x128xf32>
    %c0_29 = arith.constant 0 : index
    %c0_30 = arith.constant 0 : index
    %c0_31 = arith.constant 0 : index
    %27 = vector.load %arg13[%c0_29, %c0_30, %c0_31] : memref<1x128x128xf32, #tpu.memory_space<vmem>>, vector<1x128x128xf32>
    %28 = vector.shape_cast %27 : vector<1x128x128xf32> to vector<128x128xf32>
    %cst_32 = arith.constant dense<0.000000e+00> : vector<16x128xf32>
    %29 = tpu.matmul %26, %28, %cst_32 {dimension_numbers = #tpu.dot_dimension_numbers<[1], [0], [0], [1], [0, 0, 1, 1], [], []>} : vector<16x128xf32>, vector<128x128xf32>, vector<16x128xf32> -> vector<16x128xf32>
    %c0_33 = arith.constant 0 : index
    %c0_34 = arith.constant 0 : index
    %c0_35 = arith.constant 0 : index
    %30 = vector.load %arg14[%c0_33, %c0_34, %c0_35] : memref<1x1x128xf32, #tpu.memory_space<vmem>>, vector<1x1x128xf32>
    %31 = vector.shape_cast %30 : vector<1x1x128xf32> to vector<1x128xf32>
    %32 = vector.broadcast %31 : vector<1x128xf32> to vector<16x128xf32>
    %33 = arith.addf %29, %32 : vector<16x128xf32>
    %34 = arith.addf %33, %16 : vector<16x128xf32>
    %c0_36 = arith.constant 0 : index
    %c0_37 = arith.constant 0 : index
    %c0_38 = arith.constant 0 : index
    %35 = vector.load %arg15[%c0_36, %c0_37, %c0_38] : memref<1x128x128xf32, #tpu.memory_space<vmem>>, vector<1x128x128xf32>
    %36 = vector.shape_cast %35 : vector<1x128x128xf32> to vector<128x128xf32>
    %cst_39 = arith.constant dense<0.000000e+00> : vector<16x128xf32>
    %37 = tpu.matmul %34, %36, %cst_39 {dimension_numbers = #tpu.dot_dimension_numbers<[1], [0], [0], [1], [0, 0, 1, 1], [], []>} : vector<16x128xf32>, vector<128x128xf32>, vector<16x128xf32> -> vector<16x128xf32>
    %c0_40 = arith.constant 0 : index
    %c0_41 = arith.constant 0 : index
    %c0_42 = arith.constant 0 : index
    %38 = vector.load %arg16[%c0_40, %c0_41, %c0_42] : memref<1x1x128xf32, #tpu.memory_space<vmem>>, vector<1x1x128xf32>
    %39 = vector.shape_cast %38 : vector<1x1x128xf32> to vector<1x128xf32>
    %40 = vector.broadcast %39 : vector<1x128xf32> to vector<16x128xf32>
    %41 = arith.addf %37, %40 : vector<16x128xf32>
    %42 = vector.broadcast %3 : vector<16x1xf32> to vector<16x128xf32>
    %43 = arith.mulf %41, %42 : vector<16x128xf32>
    %c0_43 = arith.constant 0 : index
    %c0_44 = arith.constant 0 : index
    %c0_45 = arith.constant 0 : index
    %c0_46 = arith.constant 0 : index
    %44 = vector.load %arg17[%c0_43, %c0_44, %c0_45, %c0_46] : memref<1x1x16x128xf32, #tpu.memory_space<vmem>>, vector<1x1x16x128xf32>
    %45 = vector.shape_cast %44 : vector<1x1x16x128xf32> to vector<16x128xf32>
    %46 = vector.shape_cast %43 : vector<16x128xf32> to vector<1x1x16x128xf32>
    tpu.vector_store %arg17[%c0_43, %c0_44, %c0_45, %c0_46], %46 {strides = array<i32>} : memref<1x1x16x128xf32, #tpu.memory_space<vmem>>, vector<1x1x16x128xf32>,
    return
  }
  func.func @transform_0(%arg0: i32, %arg1: i32, %arg2: i32, %arg3: memref<4xi32, #tpu.memory_space<smem>>, %arg4: memref<4xi32, #tpu.memory_space<smem>>) -> (i32, i32, i32, i32) {
    %0 = arith.index_cast %arg0 : i32 to index
    %1 = memref.load %arg3[%0] : memref<4xi32, #tpu.memory_space<smem>>
    %c0_i32 = arith.constant 0 : i32
    %c0_i32_0 = arith.constant 0 : i32
    return %1, %arg1, %arg2, %c0_i32 : i32, i32, i32, i32
  }
  func.func @transform_1(%arg0: i32, %arg1: i32, %arg2: i32, %arg3: memref<4xi32, #tpu.memory_space<smem>>, %arg4: memref<4xi32, #tpu.memory_space<smem>>) -> (i32, i32, i32, i32) {
    %0 = arith.index_cast %arg0 : i32 to index
    %1 = memref.load %arg3[%0] : memref<4xi32, #tpu.memory_space<smem>>
    %c0_i32 = arith.constant 0 : i32
    %c0_i32_0 = arith.constant 0 : i32
    return %1, %arg1, %arg2, %c0_i32 : i32, i32, i32, i32
  }
  func.func @transform_2(%arg0: i32, %arg1: i32, %arg2: i32, %arg3: memref<4xi32, #tpu.memory_space<smem>>, %arg4: memref<4xi32, #tpu.memory_space<smem>>) -> (i32, i32, i32, i32) {
    %c0_i32 = arith.constant 0 : i32
    %c0_i32_0 = arith.constant 0 : i32
    %c0_i32_1 = arith.constant 0 : i32
    return %arg0, %arg1, %c0_i32, %c0_i32_0 : i32, i32, i32, i32
  }
  func.func @transform_3(%arg0: i32, %arg1: i32, %arg2: i32, %arg3: memref<4xi32, #tpu.memory_space<smem>>, %arg4: memref<4xi32, #tpu.memory_space<smem>>) -> (i32, i32, i32, i32) {
    %c0_i32 = arith.constant 0 : i32
    %c0_i32_0 = arith.constant 0 : i32
    %c0_i32_1 = arith.constant 0 : i32
    return %arg0, %arg1, %c0_i32, %c0_i32_0 : i32, i32, i32, i32
  }
  func.func @transform_4(%arg0: i32, %arg1: i32, %arg2: i32, %arg3: memref<4xi32, #tpu.memory_space<smem>>, %arg4: memref<4xi32, #tpu.memory_space<smem>>) -> (i32, i32, i32) {
    %0 = arith.index_cast %arg0 : i32 to index
    %1 = memref.load %arg4[%0] : memref<4xi32, #tpu.memory_space<smem>>
    %c0_i32 = arith.constant 0 : i32
    %c0_i32_0 = arith.constant 0 : i32
    %c0_i32_1 = arith.constant 0 : i32
    return %1, %c0_i32, %c0_i32_0 : i32, i32, i32
  }
  func.func @transform_5(%arg0: i32, %arg1: i32, %arg2: i32, %arg3: memref<4xi32, #tpu.memory_space<smem>>, %arg4: memref<4xi32, #tpu.memory_space<smem>>) -> (i32, i32, i32) {
    %0 = arith.index_cast %arg0 : i32 to index
    %1 = memref.load %arg4[%0] : memref<4xi32, #tpu.memory_space<smem>>
    %c0_i32 = arith.constant 0 : i32
    %c0_i32_0 = arith.constant 0 : i32
    %c0_i32_1 = arith.constant 0 : i32
    return %1, %c0_i32, %c0_i32_0 : i32, i32, i32
  }
  func.func @transform_6(%arg0: i32, %arg1: i32, %arg2: i32, %arg3: memref<4xi32, #tpu.memory_space<smem>>, %arg4: memref<4xi32, #tpu.memory_space<smem>>) -> (i32, i32, i32) {
    %0 = arith.index_cast %arg0 : i32 to index
    %1 = memref.load %arg4[%0] : memref<4xi32, #tpu.memory_space<smem>>
    %c0_i32 = arith.constant 0 : i32
    %c0_i32_0 = arith.constant 0 : i32
    %c0_i32_1 = arith.constant 0 : i32
    return %1, %c0_i32, %c0_i32_0 : i32, i32, i32
  }
  func.func @transform_7(%arg0: i32, %arg1: i32, %arg2: i32, %arg3: memref<4xi32, #tpu.memory_space<smem>>, %arg4: memref<4xi32, #tpu.memory_space<smem>>) -> (i32, i32, i32) {
    %0 = arith.index_cast %arg0 : i32 to index
    %1 = memref.load %arg4[%0] : memref<4xi32, #tpu.memory_space<smem>>
    %c0_i32 = arith.constant 0 : i32
    %c0_i32_0 = arith.constant 0 : i32
    %c0_i32_1 = arith.constant 0 : i32
    return %1, %c0_i32, %c0_i32_0 : i32, i32, i32
  }
  func.func @transform_8(%arg0: i32, %arg1: i32, %arg2: i32, %arg3: memref<4xi32, #tpu.memory_space<smem>>, %arg4: memref<4xi32, #tpu.memory_space<smem>>) -> (i32, i32, i32) {
    %0 = arith.index_cast %arg0 : i32 to index
    %1 = memref.load %arg4[%0] : memref<4xi32, #tpu.memory_space<smem>>
    %c0_i32 = arith.constant 0 : i32
    %c0_i32_0 = arith.constant 0 : i32
    %c0_i32_1 = arith.constant 0 : i32
    return %1, %c0_i32, %c0_i32_0 : i32, i32, i32
  }
  func.func @transform_9(%arg0: i32, %arg1: i32, %arg2: i32, %arg3: memref<4xi32, #tpu.memory_space<smem>>, %arg4: memref<4xi32, #tpu.memory_space<smem>>) -> (i32, i32, i32) {
    %0 = arith.index_cast %arg0 : i32 to index
    %1 = memref.load %arg4[%0] : memref<4xi32, #tpu.memory_space<smem>>
    %c0_i32 = arith.constant 0 : i32
    %c0_i32_0 = arith.constant 0 : i32
    %c0_i32_1 = arith.constant 0 : i32
    return %1, %c0_i32, %c0_i32_0 : i32, i32, i32
  }
  func.func @transform_10(%arg0: i32, %arg1: i32, %arg2: i32, %arg3: memref<4xi32, #tpu.memory_space<smem>>, %arg4: memref<4xi32, #tpu.memory_space<smem>>) -> (i32, i32, i32) {
    %0 = arith.index_cast %arg0 : i32 to index
    %1 = memref.load %arg4[%0] : memref<4xi32, #tpu.memory_space<smem>>
    %c0_i32 = arith.constant 0 : i32
    %c0_i32_0 = arith.constant 0 : i32
    %c0_i32_1 = arith.constant 0 : i32
    return %1, %c0_i32, %c0_i32_0 : i32, i32, i32
  }
  func.func @transform_11(%arg0: i32, %arg1: i32, %arg2: i32, %arg3: memref<4xi32, #tpu.memory_space<smem>>, %arg4: memref<4xi32, #tpu.memory_space<smem>>) -> (i32, i32, i32) {
    %0 = arith.index_cast %arg0 : i32 to index
    %1 = memref.load %arg4[%0] : memref<4xi32, #tpu.memory_space<smem>>
    %c0_i32 = arith.constant 0 : i32
    %c0_i32_0 = arith.constant 0 : i32
    %c0_i32_1 = arith.constant 0 : i32
    return %1, %c0_i32, %c0_i32_0 : i32, i32, i32
  }
  func.func @transform_12(%arg0: i32, %arg1: i32, %arg2: i32, %arg3: memref<4xi32, #tpu.memory_space<smem>>, %arg4: memref<4xi32, #tpu.memory_space<smem>>) -> (i32, i32, i32, i32) {
    %c0_i32 = arith.constant 0 : i32
    %c0_i32_0 = arith.constant 0 : i32
    return %arg0, %arg1, %arg2, %c0_i32 : i32, i32, i32, i32
  }
}

module attributes {stable_mosaic.version = 11 : i64} {
  func.func @_ei_encoder_kernel(%arg0: memref<2x16x16xf32, #tpu.memory_space<vmem>>, %arg1: memref<16x128xf32, #tpu.memory_space<vmem>>, %arg2: memref<1x128xf32, #tpu.memory_space<vmem>>, %arg3: memref<128x384xf32, #tpu.memory_space<vmem>>, %arg4: memref<1x384xf32, #tpu.memory_space<vmem>>, %arg5: memref<2x128xf32, #tpu.memory_space<vmem>>, %arg6: memref<2x384xf32, #tpu.memory_space<vmem>>, %arg7: memref<2x16xf32, #tpu.memory_space<vmem>>) attributes {dimension_semantics = [], scalar_prefetch = 0 : i64, scratch_operands = 0 : i64, tpu.core_type = #tpu.core_type<tc>} {
    %c0 = arith.constant 0 : index
    %c0_0 = arith.constant 0 : index
    %c0_1 = arith.constant 0 : index
    %0 = vector.load %arg0[%c0, %c0_0, %c0_1] : memref<2x16x16xf32, #tpu.memory_space<vmem>>, vector<2x16x16xf32>
    %1 = math.absf %0 : vector<2x16x16xf32>
    %cst = arith.constant dense<0.000000e+00> : vector<2x16xf32>
    %2 = vector.multi_reduction <add>, %1, %cst [2] : vector<2x16x16xf32> to vector<2x16xf32>
    %cst_2 = arith.constant 0.000000e+00 : f32
    %3 = vector.broadcast %cst_2 : f32 to vector<2x16xf32>
    %4 = arith.cmpf ogt, %2, %3 : vector<2x16xf32>
    %5 = arith.extui %4 : vector<2x16xi1> to vector<2x16xi32>
    %6 = arith.sitofp %5 : vector<2x16xi32> to vector<2x16xf32>
    %c0_3 = arith.constant 0 : index
    %c0_4 = arith.constant 0 : index
    %7 = vector.load %arg7[%c0_3, %c0_4] : memref<2x16xf32, #tpu.memory_space<vmem>>, vector<2x16xf32>
    tpu.vector_store %arg7[%c0_3, %c0_4], %6 {strides = array<i32>} : memref<2x16xf32, #tpu.memory_space<vmem>>, vector<2x16xf32>,
    %cst_5 = arith.constant dense<0.000000e+00> : vector<2x16xf32>
    %8 = vector.multi_reduction <add>, %0, %cst_5 [1] : vector<2x16x16xf32> to vector<2x16xf32>
    %cst_6 = arith.constant 6.250000e-02 : f32
    %9 = vector.broadcast %cst_6 : f32 to vector<2x16xf32>
    %10 = arith.mulf %8, %9 : vector<2x16xf32>
    %c0_7 = arith.constant 0 : index
    %c0_8 = arith.constant 0 : index
    %11 = vector.load %arg1[%c0_7, %c0_8] : memref<16x128xf32, #tpu.memory_space<vmem>>, vector<16x128xf32>
    %cst_9 = arith.constant dense<0.000000e+00> : vector<2x128xf32>
    %12 = tpu.matmul %10, %11, %cst_9 {dimension_numbers = #tpu.dot_dimension_numbers<[1], [0], [0], [1], [0, 0, 1, 1], [], []>} : vector<2x16xf32>, vector<16x128xf32>, vector<2x128xf32> -> vector<2x128xf32>
    %c0_10 = arith.constant 0 : index
    %c0_11 = arith.constant 0 : index
    %13 = vector.load %arg2[%c0_10, %c0_11] : memref<1x128xf32, #tpu.memory_space<vmem>>, vector<1x128xf32>
    %14 = vector.broadcast %13 : vector<1x128xf32> to vector<2x128xf32>
    %15 = arith.addf %12, %14 : vector<2x128xf32>
    %16 = math.tanh %15 : vector<2x128xf32>
    %c0_12 = arith.constant 0 : index
    %c0_13 = arith.constant 0 : index
    %17 = vector.load %arg5[%c0_12, %c0_13] : memref<2x128xf32, #tpu.memory_space<vmem>>, vector<2x128xf32>
    tpu.vector_store %arg5[%c0_12, %c0_13], %16 {strides = array<i32>} : memref<2x128xf32, #tpu.memory_space<vmem>>, vector<2x128xf32>,
    %c0_14 = arith.constant 0 : index
    %c0_15 = arith.constant 0 : index
    %18 = vector.load %arg3[%c0_14, %c0_15] : memref<128x384xf32, #tpu.memory_space<vmem>>, vector<128x384xf32>
    %cst_16 = arith.constant dense<0.000000e+00> : vector<2x384xf32>
    %19 = tpu.matmul %16, %18, %cst_16 {dimension_numbers = #tpu.dot_dimension_numbers<[1], [0], [0], [1], [0, 0, 1, 1], [], []>} : vector<2x128xf32>, vector<128x384xf32>, vector<2x384xf32> -> vector<2x384xf32>
    %c0_17 = arith.constant 0 : index
    %c0_18 = arith.constant 0 : index
    %20 = vector.load %arg4[%c0_17, %c0_18] : memref<1x384xf32, #tpu.memory_space<vmem>>, vector<1x384xf32>
    %21 = vector.broadcast %20 : vector<1x384xf32> to vector<2x384xf32>
    %22 = arith.addf %19, %21 : vector<2x384xf32>
    %c0_19 = arith.constant 0 : index
    %c0_20 = arith.constant 0 : index
    %23 = vector.load %arg6[%c0_19, %c0_20] : memref<2x384xf32, #tpu.memory_space<vmem>>, vector<2x384xf32>
    tpu.vector_store %arg6[%c0_19, %c0_20], %22 {strides = array<i32>} : memref<2x384xf32, #tpu.memory_space<vmem>>, vector<2x384xf32>,
    return
  }
}

</mosaic_0001>

<llo_original>
// kernel: ei_network_forward.8
$region0: #{ei_network_forward.8}
  #allocation0 [shape = 'u32[]', space=smem, size = 0x4, offset = 0x4, fixed_abs, tag = 'smem constant byte address 0x4 - core index']
  #allocation1 [shape = 'u32[144,128]{1,0:T(1,128)}', space=vmem, size = 0x12000, scoped, tag = 'internal scratch']
  %s0 = inlined_call_operand.vmem [shape: f32[2,16,16], index: 0, kind: input, shape index: {}]
  %s1 = inlined_call_operand.vmem [shape: f32[16,128], index: 1, kind: input, shape index: {}]
  %s2 = inlined_call_operand.vmem [shape: f32[1,128], index: 2, kind: input, shape index: {}]
  %s3 = inlined_call_operand.hbm [shape: f32[128,384], index: 3, kind: input, shape index: {}]
  %s4 = inlined_call_operand.vmem [shape: f32[1,384], index: 4, kind: input, shape index: {}]
  %s5 = inlined_call_operand.vmem [shape: f32[2,128], index: 5, kind: output, shape index: {0}]
  %s6 = inlined_call_operand.vmem [shape: f32[2,384], index: 6, kind: output, shape index: {1}]
  %s7 = inlined_call_operand.vmem [shape: f32[2,16], index: 7, kind: output, shape index: {2}]
  %8 = xla_tuple %s5, %s6, %s7
  %s9 = sld [smem:[#allocation0]]
  $region50: #{ei_network_forward.8} parent=0
    _
  %s11 = ssub.s32 1, %s9
  %s12 = scalar_select 0, %s11, %s9
  $region1: #{ei_network_forward.8} parent=0
    #allocation2 [shape = 'u8[196608]{0}', space=vmem, size = 0x30000, scoped, tag = 'input window, operand 3, single buffered']
    #allocation3 [shape = 's32[1]{0}', space=sflag, size = 0x4, scoped, tag = 'scoped memory for ei_network_forward.8']
    %13 = vsyncpa [#allocation3], 0
    // Predicated region
    $region2: #{ei_network_forward.8} parent=1 // pred_check
      _
    $region3: #{ei_network_forward.8} parent=1 // pred_check_branch
      %15 = sbr.rel (0) target = $region5
    $region4: #{ei_network_forward.8} parent=1 // pred_region
      _
    $region5: #{ei_network_forward.8} parent=1 // pred_fallthru
      _
    // Predicated region
    $region6: #{ei_network_forward.8} parent=1 // pred_check
      _
    $region7: #{ei_network_forward.8} parent=1 // pred_check_branch
      %17 = sbr.rel (0) target = $region9
    $region8: #{ei_network_forward.8} parent=1 // pred_region
      _
    $region9: #{ei_network_forward.8} parent=1 // pred_fallthru
      _
    // Predicated region
    $region10: #{ei_network_forward.8} parent=1 // pred_check
      _
    $region11: #{ei_network_forward.8} parent=1 // pred_check_branch
      %19 = sbr.rel (0) target = $region13
    $region12: #{ei_network_forward.8} parent=1 // pred_region
      _
    $region13: #{ei_network_forward.8} parent=1 // pred_fallthru
      _
    // Predicated region
    $region14: #{ei_network_forward.8} parent=1 // pred_check
      _
    $region15: #{ei_network_forward.8} parent=1 // pred_check_branch
      %21 = sbr.rel (0) target = $region17
    $region16: #{ei_network_forward.8} parent=1 // pred_region
      %s23 = ssub.s32 6144, 6144
      %24 = vsyncadd [#allocation3], %s23
      %s25 = sshll.u32 [#allocation2], 4
      %s26 = int_to_ptr.vmem [resolvable:$true] %s25
      %31 = dma.hbm_to_vmem [thread:$0]  %s3, 6144, %s26, [#allocation3], 384, 384, 24
    $region17: #{ei_network_forward.8} parent=1 // pred_fallthru
      _
    // Predicated region
    $region18: #{ei_network_forward.8} parent=1 // pred_check
      _
    $region19: #{ei_network_forward.8} parent=1 // pred_check_branch
      %33 = sbr.rel (0) target = $region21
    $region20: #{ei_network_forward.8} parent=1 // pred_region
      _
    $region21: #{ei_network_forward.8} parent=1 // pred_fallthru
      _
    // Predicated region
    $region22: #{ei_network_forward.8} parent=1 // pred_check
      _
    $region23: #{ei_network_forward.8} parent=1 // pred_check_branch
      %35 = sbr.rel (0) target = $region25
    $region24: #{ei_network_forward.8} parent=1 // pred_region
      %36 = dma.done [#allocation3], 6144
    $region25: #{ei_network_forward.8} parent=1 // pred_fallthru
      _
    %v37 = vld [vmem:[%s0] sm:$0xff]
    %v38 = vld [vmem:[%s0 + $0x8] sm:$0xff]
    %v39 = vld [vmem:[%s0 + $0x10] sm:$0xff]
    %v40 = vld [vmem:[%s0 + $0x18] sm:$0xff]
    %v41 = vand.u32 2147483647, %v37
    %v42 = vand.u32 2147483647, %v38
    %v43 = vand.u32 2147483647, %v39
    %v44 = vand.u32 2147483647, %v40
    %vm45 = vcmask 130048
    %v46 = vsel %vm45, %v41, 0.0
    %47 = vadd.xlane.f32.xlu0 %v46
    %v48 = vpop.xlane.xlu0 %47
    %v49 = vsel %vm45, %v42, 0.0
    %50 = vadd.xlane.f32.xlu0 %v49
    %v51 = vpop.xlane.xlu0 %50
    %v52 = vsel %vm45, %v43, 0.0
    %53 = vadd.xlane.f32.xlu0 %v52
    %v54 = vpop.xlane.xlu0 %53
    %v55 = vsel %vm45, %v44, 0.0
    %56 = vadd.xlane.f32.xlu0 %v55
    %v57 = vpop.xlane.xlu0 %56
    %vm58 = vcmp.gt.f32.partialorder %v48, 0.0
    %vm59 = vcmp.gt.f32.partialorder %v51, 0.0
    %vm60 = vcmp.gt.f32.partialorder %v54, 0.0
    %vm61 = vcmp.gt.f32.partialorder %v57, 0.0
    %v62 = vsel %vm58, 1, 0
    %v63 = vsel %vm59, 1, 0
    %v64 = vsel %vm60, 1, 0
    %v65 = vsel %vm61, 1, 0
    %v66 = vcvt.s32.f32 %v62
    %v67 = vcvt.s32.f32 %v63
    %v68 = vcvt.s32.f32 %v64
    %v69 = vcvt.s32.f32 %v65
    %v74 = vlaneseq
    %v75 = vand.u32 %v74, 127
    %v76 = vlaneseq
    %v77 = vshrl.u32 %v76, 7
    %v78 = vsub.s32 %v75, %v77
    %v79 = vrot.slane %v66, %v78
    %v80 = vadd.s32 %v75, 4294967288
    %v81 = vlaneseq
    %v82 = vshrl.u32 %v81, 7
    %v83 = vsub.s32 %v80, %v82
    %v84 = vrot.slane %v67, %v83
    %vm85 = vcmask 130112
    %v86 = vsel %vm85, %v84, %v79
    %v87 = vlaneseq
    %v88 = vshrl.u32 %v87, 7
    %v89 = vsub.s32 %v75, %v88
    %v90 = vrot.slane %v68, %v89
    %v91 = vlaneseq
    %v92 = vshrl.u32 %v91, 7
    %v93 = vsub.s32 %v80, %v92
    %v94 = vrot.slane %v69, %v93
    %v95 = vsel %vm85, %v94, %v90
    %vm96 = vcmask 1041409
    %v97 = vsel %vm96, %v95, %v86
    %vm99 = vcmask 123904
    %100 = vst.msk [vmem:[%s7] sm:$0x3] %vm99, %v97
    %v101 = vsel %vm45, %v37, 0.0
    %v102 = vsel %vm45, %v38, 0.0
    %v103 = vadd.f32 %v101, %v102
    %v104 = vrot.slane %v103, 4
    %v105 = vadd.f32 %v103, %v104
    %v106 = vrot.slane %v105, 2
    %v107 = vadd.f32 %v105, %v106
    %v108 = vrot.slane %v107, 1
    %v109 = vadd.f32 %v107, %v108
    %v110 = vsel %vm45, %v39, 0.0
    %v111 = vsel %vm45, %v40, 0.0
    %v112 = vadd.f32 %v110, %v111
    %v113 = vrot.slane %v112, 4
    %v114 = vadd.f32 %v112, %v113
    %v115 = vrot.slane %v114, 2
    %v116 = vadd.f32 %v114, %v115
    %v117 = vrot.slane %v116, 1
    %v118 = vadd.f32 %v116, %v117
    %v119 = vmul.f32 %v109, 0.0625
    %v120 = vmul.f32 %v118, 0.0625
    %v121 = vld [vmem:[%s1] sm:$0xff]
    %v122 = vld [vmem:[%s1 + $0x8] sm:$0xff]
    %v123 = vld [vmem:[%s2] sm:$0x1]
    %v125 = vlaneseq
    %v126 = vshrl.u32 %v125, 7
    %v127 = vsub.s32 0, %v126
    %v128 = vrot.slane %v123, %v127
    %v132 = vsel %vm96, %v120, %v119
    %v133 = vsel %vm45, %v132, 0
    %135 = vmatprep.subr.mxu0 0.0
    %136 = vmatpush1.msra.mxu0 %v121
    %137 = vmatprep.subr.mxu0 0.0
    %138 = vmatpush1.msra.mxu0 %v122
    %139 = vmatprep.subr.mxu0 0.0
    %140 = vmatpush1.msra.mxu0 0.0
    %141 = vmatprep.subr.mxu0 0.0
    %142 = vmatpush1.msra.mxu0 0.0
    %143 = vmatprep.subr.mxu0 0.0
    %144 = vmatpush1.msra.mxu0 0.0
    %145 = vmatprep.subr.mxu0 0.0
    %146 = vmatpush1.msra.mxu0 0.0
    %147 = vmatprep.subr.mxu0 0.0
    %148 = vmatpush1.msra.mxu0 0.0
    %149 = vmatprep.subr.mxu0 0.0
    %150 = vmatpush1.msra.mxu0 0.0
    %151 = vmatprep.subr.mxu0 0.0
    %152 = vmatpush1.msra.mxu0 0.0
    %153 = vmatprep.subr.mxu0 0.0
    %154 = vmatpush1.msra.mxu0 0.0
    %155 = vmatprep.subr.mxu0 0.0
    %156 = vmatpush1.msra.mxu0 0.0
    %157 = vmatprep.subr.mxu0 0.0
    %158 = vmatpush1.msra.mxu0 0.0
    %159 = vmatprep.subr.mxu0 0.0
    %160 = vmatpush1.msra.mxu0 0.0
    %161 = vmatprep.subr.mxu0 0.0
    %162 = vmatpush1.msra.mxu0 0.0
    %163 = vmatprep.subr.mxu0 0.0
    %164 = vmatpush1.msra.mxu0 0.0
    %165 = vmatprep.subr.mxu0 0.0
    %166 = vmatpush1.msra.mxu0 0.0
    %167 = vmatprep.subr.mxu0 0.0
    %168 = vmatpush1.msra.mxu0 0.0
    %169 = vmatprep.subr.mxu0 0.0
    %170 = vmatpush1.msra.mxu0 0.0
    %171 = vmatprep.subr.mxu0 0.0
    %172 = vmatpush1.msra.mxu0 0.0
    %173 = vmatprep.subr.mxu0 0.0
    %174 = vmatpush1.msra.mxu0 0.0
    %175 = vmatprep.subr.mxu0 0.0
    %176 = vmatpush1.msra.mxu0 0.0
    %177 = vmatprep.subr.mxu0 0.0
    %178 = vmatpush1.msra.mxu0 0.0
    %179 = vmatprep.subr.mxu0 0.0
    %180 = vmatpush1.msra.mxu0 0.0
    %181 = vmatprep.subr.mxu0 0.0
    %182 = vmatpush1.msra.mxu0 0.0
    %183 = vmatprep.subr.mxu0 0.0
    %184 = vmatpush1.msra.mxu0 0.0
    %185 = vmatprep.subr.mxu0 0.0
    %186 = vmatpush1.msra.mxu0 0.0
    %187 = vmatprep.subr.mxu0 0.0
    %188 = vmatpush1.msra.mxu0 0.0
    %189 = vmatprep.subr.mxu0 0.0
    %190 = vmatpush1.msra.mxu0 0.0
    %191 = vmatprep.subr.mxu0 0.0
    %192 = vmatpush1.msra.mxu0 0.0
    %193 = vmatprep.subr.mxu0 0.0
    %194 = vmatpush1.msra.mxu0 0.0
    %195 = vmatprep.subr.mxu0 0.0
    %196 = vmatpush1.msra.mxu0 0.0
    %197 = vmatprep.subr.mxu0 0.0
    %198 = vmatpush1.msra.mxu0 0.0
    %199 = vmatprep.mubr.f32.mxu0 0.0
    %200 = vmatmul.mubr.f32.gmra.mrb[0].mxu0 %v133
    %v201 = vpop.f32.mrb[0].mxu0
    %v202 = vadd.f32 %v128, %v201
    %v203 = vpop.f32.mrb[0].mxu0
    %204 = vdwg.mxu0
    %v205 = vtanh.pop %v202
    %206 = vst [vmem:[%s5] sm:$0x3] %v205
    %v207 = vld [vmem:[#allocation2] sm:$0xff]
    %v208 = vld [vmem:[#allocation2 + $0x8] sm:$0xff]
    %v209 = vld [vmem:[#allocation2 + $0x10] sm:$0xff]
    %v210 = vld [vmem:[#allocation2 + $0x18] sm:$0xff]
    %v211 = vld [vmem:[#allocation2 + $0x20] sm:$0xff]
    %v212 = vld [vmem:[#allocation2 + $0x28] sm:$0xff]
    %v213 = vld [vmem:[#allocation2 + $0x30] sm:$0xff]
    %v214 = vld [vmem:[#allocation2 + $0x38] sm:$0xff]
    %v215 = vld [vmem:[#allocation2 + $0x40] sm:$0xff]
    %v216 = vld [vmem:[#allocation2 + $0x48] sm:$0xff]
    %v217 = vld [vmem:[#allocation2 + $0x50] sm:$0xff]
    %v218 = vld [vmem:[#allocation2 + $0x58] sm:$0xff]
    %v219 = vld [vmem:[#allocation2 + $0x60] sm:$0xff]
    %v220 = vld [vmem:[#allocation2 + $0x68] sm:$0xff]
    %v221 = vld [vmem:[#allocation2 + $0x70] sm:$0xff]
    %v222 = vld [vmem:[#allocation2 + $0x78] sm:$0xff]
    %v223 = vld [vmem:[#allocation2 + $0x80] sm:$0xff]
    %v224 = vld [vmem:[#allocation2 + $0x88] sm:$0xff]
    %v225 = vld [vmem:[#allocation2 + $0x90] sm:$0xff]
    %v226 = vld [vmem:[#allocation2 + $0x98] sm:$0xff]
    %v227 = vld [vmem:[#allocation2 + $0xa0] sm:$0xff]
    %v228 = vld [vmem:[#allocation2 + $0xa8] sm:$0xff]
    %v229 = vld [vmem:[#allocation2 + $0xb0] sm:$0xff]
    %v230 = vld [vmem:[#allocation2 + $0xb8] sm:$0xff]
    %v231 = vld [vmem:[#allocation2 + $0xc0] sm:$0xff]
    %v232 = vld [vmem:[#allocation2 + $0xc8] sm:$0xff]
    %v233 = vld [vmem:[#allocation2 + $0xd0] sm:$0xff]
    %v234 = vld [vmem:[#allocation2 + $0xd8] sm:$0xff]
    %v235 = vld [vmem:[#allocation2 + $0xe0] sm:$0xff]
    %v236 = vld [vmem:[#allocation2 + $0xe8] sm:$0xff]
    %v237 = vld [vmem:[#allocation2 + $0xf0] sm:$0xff]
    %v238 = vld [vmem:[#allocation2 + $0xf8] sm:$0xff]
    %v239 = vld [vmem:[#allocation2 + $0x100] sm:$0xff]
    %v240 = vld [vmem:[#allocation2 + $0x108] sm:$0xff]
    %v241 = vld [vmem:[#allocation2 + $0x110] sm:$0xff]
    %v242 = vld [vmem:[#allocation2 + $0x118] sm:$0xff]
    %v243 = vld [vmem:[#allocation2 + $0x120] sm:$0xff]
    %v244 = vld [vmem:[#allocation2 + $0x128] sm:$0xff]
    %v245 = vld [vmem:[#allocation2 + $0x130] sm:$0xff]
    %v246 = vld [vmem:[#allocation2 + $0x138] sm:$0xff]
    %v247 = vld [vmem:[#allocation2 + $0x140] sm:$0xff]
    %v248 = vld [vmem:[#allocation2 + $0x148] sm:$0xff]
    %v249 = vld [vmem:[#allocation2 + $0x150] sm:$0xff]
    %v250 = vld [vmem:[#allocation2 + $0x158] sm:$0xff]
    %v251 = vld [vmem:[#allocation2 + $0x160] sm:$0xff]
    %v252 = vld [vmem:[#allocation2 + $0x168] sm:$0xff]
    %v253 = vld [vmem:[#allocation2 + $0x170] sm:$0xff]
    %v254 = vld [vmem:[#allocation2 + $0x178] sm:$0xff]
    %v255 = vld [vmem:[%s4] sm:$0x7]
    %v257 = vlaneseq
    %v258 = vshrl.u32 %v257, 7
    %v259 = vsub.s32 0, %v258
    %v260 = vrot.slane %v255, %v259
    %v261 = vlaneseq
    %v262 = vshrl.u32 %v261, 7
    %v263 = vsub.s32 1, %v262
    %v264 = vrot.slane %v255, %v263
    %v265 = vlaneseq
    %v266 = vshrl.u32 %v265, 7
    %v267 = vsub.s32 2, %v266
    %v268 = vrot.slane %v255, %v267
    %272 = vmatprep.subr.mxu0 %v208
    %273 = vmatpush1.msra.mxu0 %v207
    %274 = vmatprep.subr.mxu0 %v211
    %275 = vmatpush1.msra.mxu0 %v210
    %276 = vmatprep.subr.mxu0 %v214
    %277 = vmatpush1.msra.mxu0 %v213
    %278 = vmatprep.subr.mxu0 %v217
    %279 = vmatpush1.msra.mxu0 %v216
    %280 = vmatprep.subr.mxu0 %v220
    %281 = vmatpush1.msra.mxu0 %v219
    %282 = vmatprep.subr.mxu0 %v223
    %283 = vmatpush1.msra.mxu0 %v222
    %284 = vmatprep.subr.mxu0 %v226
    %285 = vmatpush1.msra.mxu0 %v225
    %286 = vmatprep.subr.mxu0 %v229
    %287 = vmatpush1.msra.mxu0 %v228
    %288 = vmatprep.subr.mxu0 %v232
    %289 = vmatpush1.msra.mxu0 %v231
    %290 = vmatprep.subr.mxu0 %v235
    %291 = vmatpush1.msra.mxu0 %v234
    %292 = vmatprep.subr.mxu0 %v238
    %293 = vmatpush1.msra.mxu0 %v237
    %294 = vmatprep.subr.mxu0 %v241
    %295 = vmatpush1.msra.mxu0 %v240
    %296 = vmatprep.subr.mxu0 %v244
    %297 = vmatpush1.msra.mxu0 %v243
    %298 = vmatprep.subr.mxu0 %v247
    %299 = vmatpush1.msra.mxu0 %v246
    %300 = vmatprep.subr.mxu0 %v250
    %301 = vmatpush1.msra.mxu0 %v249
    %302 = vmatprep.subr.mxu0 %v253
    %303 = vmatpush1.msra.mxu0 %v252
    %304 = vmatprep.subr.mxu0 0.0
    %305 = vmatpush1.msra.mxu0 0.0
    %306 = vmatprep.subr.mxu0 0.0
    %307 = vmatpush1.msra.mxu0 0.0
    %308 = vmatprep.subr.mxu0 0.0
    %309 = vmatpush1.msra.mxu0 0.0
    %310 = vmatprep.subr.mxu0 0.0
    %311 = vmatpush1.msra.mxu0 0.0
    %312 = vmatprep.subr.mxu0 0.0
    %313 = vmatpush1.msra.mxu0 0.0
    %314 = vmatprep.subr.mxu0 0.0
    %315 = vmatpush1.msra.mxu0 0.0
    %316 = vmatprep.subr.mxu0 0.0
    %317 = vmatpush1.msra.mxu0 0.0
    %318 = vmatprep.subr.mxu0 0.0
    %319 = vmatpush1.msra.mxu0 0.0
    %320 = vmatprep.subr.mxu0 0.0
    %321 = vmatpush1.msra.mxu0 0.0
    %322 = vmatprep.subr.mxu0 0.0
    %323 = vmatpush1.msra.mxu0 0.0
    %324 = vmatprep.subr.mxu0 0.0
    %325 = vmatpush1.msra.mxu0 0.0
    %326 = vmatprep.subr.mxu0 0.0
    %327 = vmatpush1.msra.mxu0 0.0
    %328 = vmatprep.subr.mxu0 0.0
    %329 = vmatpush1.msra.mxu0 0.0
    %330 = vmatprep.subr.mxu0 0.0
    %331 = vmatpush1.msra.mxu0 0.0
    %332 = vmatprep.subr.mxu0 0.0
    %333 = vmatpush1.msra.mxu0 0.0
    %334 = vmatprep.subr.mxu0 0.0
    %335 = vmatpush1.msra.mxu0 0.0
    %336 = vmatprep.mubr.f32.mxu0 0.0
    %337 = vmatmul.mubr.f32.gmra.mrb[0].mxu0 %v205
    %v338 = vpop.f32.mrb[0].mxu0
    %v339 = vadd.f32 %v260, %v338
    %v340 = vpop.f32.mrb[0].mxu0
    %v341 = vadd.f32 %v264, %v340
    %342 = vdwg.mxu0
    %343 = vmatprep.subr.mxu0 0.0
    %344 = vmatpush1.msra.mxu0 %v209
    %345 = vmatprep.subr.mxu0 0.0
    %346 = vmatpush1.msra.mxu0 %v212
    %347 = vmatprep.subr.mxu0 0.0
    %348 = vmatpush1.msra.mxu0 %v215
    %349 = vmatprep.subr.mxu0 0.0
    %350 = vmatpush1.msra.mxu0 %v218
    %351 = vmatprep.subr.mxu0 0.0
    %352 = vmatpush1.msra.mxu0 %v221
    %353 = vmatprep.subr.mxu0 0.0
    %354 = vmatpush1.msra.mxu0 %v224
    %355 = vmatprep.subr.mxu0 0.0
    %356 = vmatpush1.msra.mxu0 %v227
    %357 = vmatprep.subr.mxu0 0.0
    %358 = vmatpush1.msra.mxu0 %v230
    %359 = vmatprep.subr.mxu0 0.0
    %360 = vmatpush1.msra.mxu0 %v233
    %361 = vmatprep.subr.mxu0 0.0
    %362 = vmatpush1.msra.mxu0 %v236
    %363 = vmatprep.subr.mxu0 0.0
    %364 = vmatpush1.msra.mxu0 %v239
    %365 = vmatprep.subr.mxu0 0.0
    %366 = vmatpush1.msra.mxu0 %v242
    %367 = vmatprep.subr.mxu0 0.0
    %368 = vmatpush1.msra.mxu0 %v245
    %369 = vmatprep.subr.mxu0 0.0
    %370 = vmatpush1.msra.mxu0 %v248
    %371 = vmatprep.subr.mxu0 0.0
    %372 = vmatpush1.msra.mxu0 %v251
    %373 = vmatprep.subr.mxu0 0.0
    %374 = vmatpush1.msra.mxu0 %v254
    %375 = vmatprep.subr.mxu0 0.0
    %376 = vmatpush1.msra.mxu0 0.0
    %377 = vmatprep.subr.mxu0 0.0
    %378 = vmatpush1.msra.mxu0 0.0
    %379 = vmatprep.subr.mxu0 0.0
    %380 = vmatpush1.msra.mxu0 0.0
    %381 = vmatprep.subr.mxu0 0.0
    %382 = vmatpush1.msra.mxu0 0.0
    %383 = vmatprep.subr.mxu0 0.0
    %384 = vmatpush1.msra.mxu0 0.0
    %385 = vmatprep.subr.mxu0 0.0
    %386 = vmatpush1.msra.mxu0 0.0
    %387 = vmatprep.subr.mxu0 0.0
    %388 = vmatpush1.msra.mxu0 0.0
    %389 = vmatprep.subr.mxu0 0.0
    %390 = vmatpush1.msra.mxu0 0.0
    %391 = vmatprep.subr.mxu0 0.0
    %392 = vmatpush1.msra.mxu0 0.0
    %393 = vmatprep.subr.mxu0 0.0
    %394 = vmatpush1.msra.mxu0 0.0
    %395 = vmatprep.subr.mxu0 0.0
    %396 = vmatpush1.msra.mxu0 0.0
    %397 = vmatprep.subr.mxu0 0.0
    %398 = vmatpush1.msra.mxu0 0.0
    %399 = vmatprep.subr.mxu0 0.0
    %400 = vmatpush1.msra.mxu0 0.0
    %401 = vmatprep.subr.mxu0 0.0
    %402 = vmatpush1.msra.mxu0 0.0
    %403 = vmatprep.subr.mxu0 0.0
    %404 = vmatpush1.msra.mxu0 0.0
    %405 = vmatprep.subr.mxu0 0.0
    %406 = vmatpush1.msra.mxu0 0.0
    %407 = vmatprep.mubr.f32.mxu0 0.0
    %408 = vmatmul.mubr.f32.gmra.mrb[0].mxu0 %v205
    %v409 = vpop.f32.mrb[0].mxu0
    %v410 = vadd.f32 %v268, %v409
    %v411 = vpop.f32.mrb[0].mxu0
    %412 = vdwg.mxu0
    %v416 = vcombine.low %v339, %v341
    %v418 = vunpack.c.l.s4 1983009808
    %v419 = vunpack.c.0.s8 %v418
    %v420 = vlaneseq
    %v421 = vshrl.u32 %v420, 7
    %v422 = vsub.s32 %v419, %v421
    %v423 = vrot.slane %v416, %v422
    %v425 = vunpack.c.l.s4 1983009808
    %v426 = vunpack.c.0.s8 %v425
    %v427 = vlaneseq
    %v428 = vshrl.u32 %v427, 7
    %v429 = vsub.s32 %v426, %v428
    %v430 = vrot.slane %v410, %v429
    %v431 = vcombine.low %v423, %v430
    %433 = vst [vmem:[%s6] sm:$0x3f] %v431
    // Predicated region
    $region26: #{ei_network_forward.8} parent=1 // pred_check
      _
    $region27: #{ei_network_forward.8} parent=1 // pred_check_branch
      %435 = sbr.rel (0) target = $region29
    $region28: #{ei_network_forward.8} parent=1 // pred_region
      _
    $region29: #{ei_network_forward.8} parent=1 // pred_fallthru
      _
    // Predicated region
    $region30: #{ei_network_forward.8} parent=1 // pred_check
      _
    $region31: #{ei_network_forward.8} parent=1 // pred_check_branch
      %437 = sbr.rel (0) target = $region33
    $region32: #{ei_network_forward.8} parent=1 // pred_region
      _
    $region33: #{ei_network_forward.8} parent=1 // pred_fallthru
      _
    // Predicated region
    $region34: #{ei_network_forward.8} parent=1 // pred_check
      _
    $region35: #{ei_network_forward.8} parent=1 // pred_check_branch
      %439 = sbr.rel (0) target = $region37
    $region36: #{ei_network_forward.8} parent=1 // pred_region
      _
    $region37: #{ei_network_forward.8} parent=1 // pred_fallthru
      _
    // Predicated region
    $region38: #{ei_network_forward.8} parent=1 // pred_check
      _
    $region39: #{ei_network_forward.8} parent=1 // pred_check_branch
      %441 = sbr.rel (0) target = $region41
    $region40: #{ei_network_forward.8} parent=1 // pred_region
      _
    $region41: #{ei_network_forward.8} parent=1 // pred_fallthru
      _
    // Predicated region
    $region42: #{ei_network_forward.8} parent=1 // pred_check
      _
    $region43: #{ei_network_forward.8} parent=1 // pred_check_branch
      %443 = sbr.rel (0) target = $region45
    $region44: #{ei_network_forward.8} parent=1 // pred_region
      _
    $region45: #{ei_network_forward.8} parent=1 // pred_fallthru
      _
    // Predicated region
    $region46: #{ei_network_forward.8} parent=1 // pred_check
      _
    $region47: #{ei_network_forward.8} parent=1 // pred_check_branch
      %445 = sbr.rel (0) target = $region49
    $region48: #{ei_network_forward.8} parent=1 // pred_region
      _
    $region49: #{ei_network_forward.8} parent=1 // pred_fallthru
      _
    %446 = vsyncpa [#allocation3], 1

// kernel: ei_network_forward.9
$region0: #{ei_network_forward.9}
  #allocation0 [shape = 'u32[]', space=smem, size = 0x4, offset = 0x4, fixed_abs, tag = 'smem constant byte address 0x4 - core index']
  #allocation1 [shape = 'u32[144,128]{1,0:T(1,128)}', space=vmem, size = 0x12000, scoped, tag = 'internal scratch']
  %s0 = inlined_call_operand.vmem [shape: f32[2,16,16], index: 0, kind: input, shape index: {}]
  %s1 = inlined_call_operand.vmem [shape: f32[16,128], index: 1, kind: input, shape index: {}]
  %s2 = inlined_call_operand.vmem [shape: f32[1,128], index: 2, kind: input, shape index: {}]
  %s3 = inlined_call_operand.vmem [shape: f32[128,384], index: 3, kind: input, shape index: {}]
  %s4 = inlined_call_operand.vmem [shape: f32[1,384], index: 4, kind: input, shape index: {}]
  %s5 = inlined_call_operand.vmem [shape: f32[2,128], index: 5, kind: output, shape index: {0}]
  %s6 = inlined_call_operand.vmem [shape: f32[2,384], index: 6, kind: output, shape index: {1}]
  %s7 = inlined_call_operand.vmem [shape: f32[2,16], index: 7, kind: output, shape index: {2}]
  %8 = xla_tuple %s5, %s6, %s7
  %s9 = sld [smem:[#allocation0]]
  $region46: #{ei_network_forward.9} parent=0
    _
  %s11 = ssub.s32 1, %s9
  %s12 = scalar_select 0, %s11, %s9
  // Predicated region
  $region2: #{ei_network_forward.9} parent=0 // pred_check
    _
  $region3: #{ei_network_forward.9} parent=0 // pred_check_branch
    %14 = sbr.rel (0) target = $region5
  $region4: #{ei_network_forward.9} parent=0 // pred_region
    _
  $region5: #{ei_network_forward.9} parent=0 // pred_fallthru
    _
  // Predicated region
  $region6: #{ei_network_forward.9} parent=0 // pred_check
    _
  $region7: #{ei_network_forward.9} parent=0 // pred_check_branch
    %16 = sbr.rel (0) target = $region9
  $region8: #{ei_network_forward.9} parent=0 // pred_region
    _
  $region9: #{ei_network_forward.9} parent=0 // pred_fallthru
    _
  // Predicated region
  $region10: #{ei_network_forward.9} parent=0 // pred_check
    _
  $region11: #{ei_network_forward.9} parent=0 // pred_check_branch
    %18 = sbr.rel (0) target = $region13
  $region12: #{ei_network_forward.9} parent=0 // pred_region
    _
  $region13: #{ei_network_forward.9} parent=0 // pred_fallthru
    _
  // Predicated region
  $region14: #{ei_network_forward.9} parent=0 // pred_check
    _
  $region15: #{ei_network_forward.9} parent=0 // pred_check_branch
    %20 = sbr.rel (0) target = $region17
  $region16: #{ei_network_forward.9} parent=0 // pred_region
    _
  $region17: #{ei_network_forward.9} parent=0 // pred_fallthru
    _
  // Predicated region
  $region18: #{ei_network_forward.9} parent=0 // pred_check
    _
  $region19: #{ei_network_forward.9} parent=0 // pred_check_branch
    %22 = sbr.rel (0) target = $region21
  $region20: #{ei_network_forward.9} parent=0 // pred_region
    _
  $region21: #{ei_network_forward.9} parent=0 // pred_fallthru
    _
  %v23 = vld [vmem:[%s0] sm:$0xff]
  %v24 = vld [vmem:[%s0 + $0x8] sm:$0xff]
  %v25 = vld [vmem:[%s0 + $0x10] sm:$0xff]
  %v26 = vld [vmem:[%s0 + $0x18] sm:$0xff]
  %v27 = vand.u32 2147483647, %v23
  %v28 = vand.u32 2147483647, %v24
  %v29 = vand.u32 2147483647, %v25
  %v30 = vand.u32 2147483647, %v26
  %vm31 = vcmask 130048
  %v32 = vsel %vm31, %v27, 0.0
  %33 = vadd.xlane.f32.xlu0 %v32
  %v34 = vpop.xlane.xlu0 %33
  %v35 = vsel %vm31, %v28, 0.0
  %36 = vadd.xlane.f32.xlu0 %v35
  %v37 = vpop.xlane.xlu0 %36
  %v38 = vsel %vm31, %v29, 0.0
  %39 = vadd.xlane.f32.xlu0 %v38
  %v40 = vpop.xlane.xlu0 %39
  %v41 = vsel %vm31, %v30, 0.0
  %42 = vadd.xlane.f32.xlu0 %v41
  %v43 = vpop.xlane.xlu0 %42
  %vm44 = vcmp.gt.f32.partialorder %v34, 0.0
  %vm45 = vcmp.gt.f32.partialorder %v37, 0.0
  %vm46 = vcmp.gt.f32.partialorder %v40, 0.0
  %vm47 = vcmp.gt.f32.partialorder %v43, 0.0
  %v48 = vsel %vm44, 1, 0
  %v49 = vsel %vm45, 1, 0
  %v50 = vsel %vm46, 1, 0
  %v51 = vsel %vm47, 1, 0
  %v52 = vcvt.s32.f32 %v48
  %v53 = vcvt.s32.f32 %v49
  %v54 = vcvt.s32.f32 %v50
  %v55 = vcvt.s32.f32 %v51
  %v60 = vlaneseq
  %v61 = vand.u32 %v60, 127
  %v62 = vlaneseq
  %v63 = vshrl.u32 %v62, 7
  %v64 = vsub.s32 %v61, %v63
  %v65 = vrot.slane %v52, %v64
  %v66 = vadd.s32 %v61, 4294967288
  %v67 = vlaneseq
  %v68 = vshrl.u32 %v67, 7
  %v69 = vsub.s32 %v66, %v68
  %v70 = vrot.slane %v53, %v69
  %vm71 = vcmask 130112
  %v72 = vsel %vm71, %v70, %v65
  %v73 = vlaneseq
  %v74 = vshrl.u32 %v73, 7
  %v75 = vsub.s32 %v61, %v74
  %v76 = vrot.slane %v54, %v75
  %v77 = vlaneseq
  %v78 = vshrl.u32 %v77, 7
  %v79 = vsub.s32 %v66, %v78
  %v80 = vrot.slane %v55, %v79
  %v81 = vsel %vm71, %v80, %v76
  %vm82 = vcmask 1041409
  %v83 = vsel %vm82, %v81, %v72
  %vm85 = vcmask 123904
  %86 = vst.msk [vmem:[%s7] sm:$0x3] %vm85, %v83
  %v87 = vsel %vm31, %v23, 0.0
  %v88 = vsel %vm31, %v24, 0.0
  %v89 = vadd.f32 %v87, %v88
  %v90 = vrot.slane %v89, 4
  %v91 = vadd.f32 %v89, %v90
  %v92 = vrot.slane %v91, 2
  %v93 = vadd.f32 %v91, %v92
  %v94 = vrot.slane %v93, 1
  %v95 = vadd.f32 %v93, %v94
  %v96 = vsel %vm31, %v25, 0.0
  %v97 = vsel %vm31, %v26, 0.0
  %v98 = vadd.f32 %v96, %v97
  %v99 = vrot.slane %v98, 4
  %v100 = vadd.f32 %v98, %v99
  %v101 = vrot.slane %v100, 2
  %v102 = vadd.f32 %v100, %v101
  %v103 = vrot.slane %v102, 1
  %v104 = vadd.f32 %v102, %v103
  %v105 = vmul.f32 %v95, 0.0625
  %v106 = vmul.f32 %v104, 0.0625
  %v107 = vld [vmem:[%s1] sm:$0xff]
  %v108 = vld [vmem:[%s1 + $0x8] sm:$0xff]
  %v109 = vld [vmem:[%s2] sm:$0x1]
  %v111 = vlaneseq
  %v112 = vshrl.u32 %v111, 7
  %v113 = vsub.s32 0, %v112
  %v114 = vrot.slane %v109, %v113
  %v118 = vsel %vm82, %v106, %v105
  %v119 = vsel %vm31, %v118, 0
  %121 = vmatprep.subr.mxu0 0.0
  %122 = vmatpush1.msra.mxu0 %v107
  %123 = vmatprep.subr.mxu0 0.0
  %124 = vmatpush1.msra.mxu0 %v108
  %125 = vmatprep.subr.mxu0 0.0
  %126 = vmatpush1.msra.mxu0 0.0
  %127 = vmatprep.subr.mxu0 0.0
  %128 = vmatpush1.msra.mxu0 0.0
  %129 = vmatprep.subr.mxu0 0.0
  %130 = vmatpush1.msra.mxu0 0.0
  %131 = vmatprep.subr.mxu0 0.0
  %132 = vmatpush1.msra.mxu0 0.0
  %133 = vmatprep.subr.mxu0 0.0
  %134 = vmatpush1.msra.mxu0 0.0
  %135 = vmatprep.subr.mxu0 0.0
  %136 = vmatpush1.msra.mxu0 0.0
  %137 = vmatprep.subr.mxu0 0.0
  %138 = vmatpush1.msra.mxu0 0.0
  %139 = vmatprep.subr.mxu0 0.0
  %140 = vmatpush1.msra.mxu0 0.0
  %141 = vmatprep.subr.mxu0 0.0
  %142 = vmatpush1.msra.mxu0 0.0
  %143 = vmatprep.subr.mxu0 0.0
  %144 = vmatpush1.msra.mxu0 0.0
  %145 = vmatprep.subr.mxu0 0.0
  %146 = vmatpush1.msra.mxu0 0.0
  %147 = vmatprep.subr.mxu0 0.0
  %148 = vmatpush1.msra.mxu0 0.0
  %149 = vmatprep.subr.mxu0 0.0
  %150 = vmatpush1.msra.mxu0 0.0
  %151 = vmatprep.subr.mxu0 0.0
  %152 = vmatpush1.msra.mxu0 0.0
  %153 = vmatprep.subr.mxu0 0.0
  %154 = vmatpush1.msra.mxu0 0.0
  %155 = vmatprep.subr.mxu0 0.0
  %156 = vmatpush1.msra.mxu0 0.0
  %157 = vmatprep.subr.mxu0 0.0
  %158 = vmatpush1.msra.mxu0 0.0
  %159 = vmatprep.subr.mxu0 0.0
  %160 = vmatpush1.msra.mxu0 0.0
  %161 = vmatprep.subr.mxu0 0.0
  %162 = vmatpush1.msra.mxu0 0.0
  %163 = vmatprep.subr.mxu0 0.0
  %164 = vmatpush1.msra.mxu0 0.0
  %165 = vmatprep.subr.mxu0 0.0
  %166 = vmatpush1.msra.mxu0 0.0
  %167 = vmatprep.subr.mxu0 0.0
  %168 = vmatpush1.msra.mxu0 0.0
  %169 = vmatprep.subr.mxu0 0.0
  %170 = vmatpush1.msra.mxu0 0.0
  %171 = vmatprep.subr.mxu0 0.0
  %172 = vmatpush1.msra.mxu0 0.0
  %173 = vmatprep.subr.mxu0 0.0
  %174 = vmatpush1.msra.mxu0 0.0
  %175 = vmatprep.subr.mxu0 0.0
  %176 = vmatpush1.msra.mxu0 0.0
  %177 = vmatprep.subr.mxu0 0.0
  %178 = vmatpush1.msra.mxu0 0.0
  %179 = vmatprep.subr.mxu0 0.0
  %180 = vmatpush1.msra.mxu0 0.0
  %181 = vmatprep.subr.mxu0 0.0
  %182 = vmatpush1.msra.mxu0 0.0
  %183 = vmatprep.subr.mxu0 0.0
  %184 = vmatpush1.msra.mxu0 0.0
  %185 = vmatprep.mubr.f32.mxu0 0.0
  %186 = vmatmul.mubr.f32.gmra.mrb[0].mxu0 %v119
  %v187 = vpop.f32.mrb[0].mxu0
  %v188 = vadd.f32 %v114, %v187
  %v189 = vpop.f32.mrb[0].mxu0
  %190 = vdwg.mxu0
  %v191 = vtanh.pop %v188
  %192 = vst [vmem:[%s5] sm:$0x3] %v191
  %v193 = vld [vmem:[%s3] sm:$0xff]
  %v194 = vld [vmem:[%s3 + $0x8] sm:$0xff]
  %v195 = vld [vmem:[%s3 + $0x10] sm:$0xff]
  %v196 = vld [vmem:[%s3 + $0x18] sm:$0xff]
  %v197 = vld [vmem:[%s3 + $0x20] sm:$0xff]
  %v198 = vld [vmem:[%s3 + $0x28] sm:$0xff]
  %v199 = vld [vmem:[%s3 + $0x30] sm:$0xff]
  %v200 = vld [vmem:[%s3 + $0x38] sm:$0xff]
  %v201 = vld [vmem:[%s3 + $0x40] sm:$0xff]
  %v202 = vld [vmem:[%s3 + $0x48] sm:$0xff]
  %v203 = vld [vmem:[%s3 + $0x50] sm:$0xff]
  %v204 = vld [vmem:[%s3 + $0x58] sm:$0xff]
  %v205 = vld [vmem:[%s3 + $0x60] sm:$0xff]
  %v206 = vld [vmem:[%s3 + $0x68] sm:$0xff]
  %v207 = vld [vmem:[%s3 + $0x70] sm:$0xff]
  %v208 = vld [vmem:[%s3 + $0x78] sm:$0xff]
  %v209 = vld [vmem:[%s3 + $0x80] sm:$0xff]
  %v210 = vld [vmem:[%s3 + $0x88] sm:$0xff]
  %v211 = vld [vmem:[%s3 + $0x90] sm:$0xff]
  %v212 = vld [vmem:[%s3 + $0x98] sm:$0xff]
  %v213 = vld [vmem:[%s3 + $0xa0] sm:$0xff]
  %v214 = vld [vmem:[%s3 + $0xa8] sm:$0xff]
  %v215 = vld [vmem:[%s3 + $0xb0] sm:$0xff]
  %v216 = vld [vmem:[%s3 + $0xb8] sm:$0xff]
  %v217 = vld [vmem:[%s3 + $0xc0] sm:$0xff]
  %v218 = vld [vmem:[%s3 + $0xc8] sm:$0xff]
  %v219 = vld [vmem:[%s3 + $0xd0] sm:$0xff]
  %v220 = vld [vmem:[%s3 + $0xd8] sm:$0xff]
  %v221 = vld [vmem:[%s3 + $0xe0] sm:$0xff]
  %v222 = vld [vmem:[%s3 + $0xe8] sm:$0xff]
  %v223 = vld [vmem:[%s3 + $0xf0] sm:$0xff]
  %v224 = vld [vmem:[%s3 + $0xf8] sm:$0xff]
  %v225 = vld [vmem:[%s3 + $0x100] sm:$0xff]
  %v226 = vld [vmem:[%s3 + $0x108] sm:$0xff]
  %v227 = vld [vmem:[%s3 + $0x110] sm:$0xff]
  %v228 = vld [vmem:[%s3 + $0x118] sm:$0xff]
  %v229 = vld [vmem:[%s3 + $0x120] sm:$0xff]
  %v230 = vld [vmem:[%s3 + $0x128] sm:$0xff]
  %v231 = vld [vmem:[%s3 + $0x130] sm:$0xff]
  %v232 = vld [vmem:[%s3 + $0x138] sm:$0xff]
  %v233 = vld [vmem:[%s3 + $0x140] sm:$0xff]
  %v234 = vld [vmem:[%s3 + $0x148] sm:$0xff]
  %v235 = vld [vmem:[%s3 + $0x150] sm:$0xff]
  %v236 = vld [vmem:[%s3 + $0x158] sm:$0xff]
  %v237 = vld [vmem:[%s3 + $0x160] sm:$0xff]
  %v238 = vld [vmem:[%s3 + $0x168] sm:$0xff]
  %v239 = vld [vmem:[%s3 + $0x170] sm:$0xff]
  %v240 = vld [vmem:[%s3 + $0x178] sm:$0xff]
  %v241 = vld [vmem:[%s4] sm:$0x7]
  %v243 = vlaneseq
  %v244 = vshrl.u32 %v243, 7
  %v245 = vsub.s32 0, %v244
  %v246 = vrot.slane %v241, %v245
  %v247 = vlaneseq
  %v248 = vshrl.u32 %v247, 7
  %v249 = vsub.s32 1, %v248
  %v250 = vrot.slane %v241, %v249
  %v251 = vlaneseq
  %v252 = vshrl.u32 %v251, 7
  %v253 = vsub.s32 2, %v252
  %v254 = vrot.slane %v241, %v253
  %258 = vmatprep.subr.mxu0 %v194
  %259 = vmatpush1.msra.mxu0 %v193
  %260 = vmatprep.subr.mxu0 %v197
  %261 = vmatpush1.msra.mxu0 %v196
  %262 = vmatprep.subr.mxu0 %v200
  %263 = vmatpush1.msra.mxu0 %v199
  %264 = vmatprep.subr.mxu0 %v203
  %265 = vmatpush1.msra.mxu0 %v202
  %266 = vmatprep.subr.mxu0 %v206
  %267 = vmatpush1.msra.mxu0 %v205
  %268 = vmatprep.subr.mxu0 %v209
  %269 = vmatpush1.msra.mxu0 %v208
  %270 = vmatprep.subr.mxu0 %v212
  %271 = vmatpush1.msra.mxu0 %v211
  %272 = vmatprep.subr.mxu0 %v215
  %273 = vmatpush1.msra.mxu0 %v214
  %274 = vmatprep.subr.mxu0 %v218
  %275 = vmatpush1.msra.mxu0 %v217
  %276 = vmatprep.subr.mxu0 %v221
  %277 = vmatpush1.msra.mxu0 %v220
  %278 = vmatprep.subr.mxu0 %v224
  %279 = vmatpush1.msra.mxu0 %v223
  %280 = vmatprep.subr.mxu0 %v227
  %281 = vmatpush1.msra.mxu0 %v226
  %282 = vmatprep.subr.mxu0 %v230
  %283 = vmatpush1.msra.mxu0 %v229
  %284 = vmatprep.subr.mxu0 %v233
  %285 = vmatpush1.msra.mxu0 %v232
  %286 = vmatprep.subr.mxu0 %v236
  %287 = vmatpush1.msra.mxu0 %v235
  %288 = vmatprep.subr.mxu0 %v239
  %289 = vmatpush1.msra.mxu0 %v238
  %290 = vmatprep.subr.mxu0 0.0
  %291 = vmatpush1.msra.mxu0 0.0
  %292 = vmatprep.subr.mxu0 0.0
  %293 = vmatpush1.msra.mxu0 0.0
  %294 = vmatprep.subr.mxu0 0.0
  %295 = vmatpush1.msra.mxu0 0.0
  %296 = vmatprep.subr.mxu0 0.0
  %297 = vmatpush1.msra.mxu0 0.0
  %298 = vmatprep.subr.mxu0 0.0
  %299 = vmatpush1.msra.mxu0 0.0
  %300 = vmatprep.subr.mxu0 0.0
  %301 = vmatpush1.msra.mxu0 0.0
  %302 = vmatprep.subr.mxu0 0.0
  %303 = vmatpush1.msra.mxu0 0.0
  %304 = vmatprep.subr.mxu0 0.0
  %305 = vmatpush1.msra.mxu0 0.0
  %306 = vmatprep.subr.mxu0 0.0
  %307 = vmatpush1.msra.mxu0 0.0
  %308 = vmatprep.subr.mxu0 0.0
  %309 = vmatpush1.msra.mxu0 0.0
  %310 = vmatprep.subr.mxu0 0.0
  %311 = vmatpush1.msra.mxu0 0.0
  %312 = vmatprep.subr.mxu0 0.0
  %313 = vmatpush1.msra.mxu0 0.0
  %314 = vmatprep.subr.mxu0 0.0
  %315 = vmatpush1.msra.mxu0 0.0
  %316 = vmatprep.subr.mxu0 0.0
  %317 = vmatpush1.msra.mxu0 0.0
  %318 = vmatprep.subr.mxu0 0.0
  %319 = vmatpush1.msra.mxu0 0.0
  %320 = vmatprep.subr.mxu0 0.0
  %321 = vmatpush1.msra.mxu0 0.0
  %322 = vmatprep.mubr.f32.mxu0 0.0
  %323 = vmatmul.mubr.f32.gmra.mrb[0].mxu0 %v191
  %v324 = vpop.f32.mrb[0].mxu0
  %v325 = vadd.f32 %v246, %v324
  %v326 = vpop.f32.mrb[0].mxu0
  %v327 = vadd.f32 %v250, %v326
  %328 = vdwg.mxu0
  %329 = vmatprep.subr.mxu0 0.0
  %330 = vmatpush1.msra.mxu0 %v195
  %331 = vmatprep.subr.mxu0 0.0
  %332 = vmatpush1.msra.mxu0 %v198
  %333 = vmatprep.subr.mxu0 0.0
  %334 = vmatpush1.msra.mxu0 %v201
  %335 = vmatprep.subr.mxu0 0.0
  %336 = vmatpush1.msra.mxu0 %v204
  %337 = vmatprep.subr.mxu0 0.0
  %338 = vmatpush1.msra.mxu0 %v207
  %339 = vmatprep.subr.mxu0 0.0
  %340 = vmatpush1.msra.mxu0 %v210
  %341 = vmatprep.subr.mxu0 0.0
  %342 = vmatpush1.msra.mxu0 %v213
  %343 = vmatprep.subr.mxu0 0.0
  %344 = vmatpush1.msra.mxu0 %v216
  %345 = vmatprep.subr.mxu0 0.0
  %346 = vmatpush1.msra.mxu0 %v219
  %347 = vmatprep.subr.mxu0 0.0
  %348 = vmatpush1.msra.mxu0 %v222
  %349 = vmatprep.subr.mxu0 0.0
  %350 = vmatpush1.msra.mxu0 %v225
  %351 = vmatprep.subr.mxu0 0.0
  %352 = vmatpush1.msra.mxu0 %v228
  %353 = vmatprep.subr.mxu0 0.0
  %354 = vmatpush1.msra.mxu0 %v231
  %355 = vmatprep.subr.mxu0 0.0
  %356 = vmatpush1.msra.mxu0 %v234
  %357 = vmatprep.subr.mxu0 0.0
  %358 = vmatpush1.msra.mxu0 %v237
  %359 = vmatprep.subr.mxu0 0.0
  %360 = vmatpush1.msra.mxu0 %v240
  %361 = vmatprep.subr.mxu0 0.0
  %362 = vmatpush1.msra.mxu0 0.0
  %363 = vmatprep.subr.mxu0 0.0
  %364 = vmatpush1.msra.mxu0 0.0
  %365 = vmatprep.subr.mxu0 0.0
  %366 = vmatpush1.msra.mxu0 0.0
  %367 = vmatprep.subr.mxu0 0.0
  %368 = vmatpush1.msra.mxu0 0.0
  %369 = vmatprep.subr.mxu0 0.0
  %370 = vmatpush1.msra.mxu0 0.0
  %371 = vmatprep.subr.mxu0 0.0
  %372 = vmatpush1.msra.mxu0 0.0
  %373 = vmatprep.subr.mxu0 0.0
  %374 = vmatpush1.msra.mxu0 0.0
  %375 = vmatprep.subr.mxu0 0.0
  %376 = vmatpush1.msra.mxu0 0.0
  %377 = vmatprep.subr.mxu0 0.0
  %378 = vmatpush1.msra.mxu0 0.0
  %379 = vmatprep.subr.mxu0 0.0
  %380 = vmatpush1.msra.mxu0 0.0
  %381 = vmatprep.subr.mxu0 0.0
  %382 = vmatpush1.msra.mxu0 0.0
  %383 = vmatprep.subr.mxu0 0.0
  %384 = vmatpush1.msra.mxu0 0.0
  %385 = vmatprep.subr.mxu0 0.0
  %386 = vmatpush1.msra.mxu0 0.0
  %387 = vmatprep.subr.mxu0 0.0
  %388 = vmatpush1.msra.mxu0 0.0
  %389 = vmatprep.subr.mxu0 0.0
  %390 = vmatpush1.msra.mxu0 0.0
  %391 = vmatprep.subr.mxu0 0.0
  %392 = vmatpush1.msra.mxu0 0.0
  %393 = vmatprep.mubr.f32.mxu0 0.0
  %394 = vmatmul.mubr.f32.gmra.mrb[0].mxu0 %v191
  %v395 = vpop.f32.mrb[0].mxu0
  %v396 = vadd.f32 %v254, %v395
  %v397 = vpop.f32.mrb[0].mxu0
  %398 = vdwg.mxu0
  %v402 = vcombine.low %v325, %v327
  %v404 = vunpack.c.l.s4 1983009808
  %v405 = vunpack.c.0.s8 %v404
  %v406 = vlaneseq
  %v407 = vshrl.u32 %v406, 7
  %v408 = vsub.s32 %v405, %v407
  %v409 = vrot.slane %v402, %v408
  %v411 = vunpack.c.l.s4 1983009808
  %v412 = vunpack.c.0.s8 %v411
  %v413 = vlaneseq
  %v414 = vshrl.u32 %v413, 7
  %v415 = vsub.s32 %v412, %v414
  %v416 = vrot.slane %v396, %v415
  %v417 = vcombine.low %v409, %v416
  %419 = vst [vmem:[%s6] sm:$0x3f] %v417
  // Predicated region
  $region22: #{ei_network_forward.9} parent=0 // pred_check
    _
  $region23: #{ei_network_forward.9} parent=0 // pred_check_branch
    %421 = sbr.rel (0) target = $region25
  $region24: #{ei_network_forward.9} parent=0 // pred_region
    _
  $region25: #{ei_network_forward.9} parent=0 // pred_fallthru
    _
  // Predicated region
  $region26: #{ei_network_forward.9} parent=0 // pred_check
    _
  $region27: #{ei_network_forward.9} parent=0 // pred_check_branch
    %423 = sbr.rel (0) target = $region29
  $region28: #{ei_network_forward.9} parent=0 // pred_region
    _
  $region29: #{ei_network_forward.9} parent=0 // pred_fallthru
    _
  // Predicated region
  $region30: #{ei_network_forward.9} parent=0 // pred_check
    _
  $region31: #{ei_network_forward.9} parent=0 // pred_check_branch
    %425 = sbr.rel (0) target = $region33
  $region32: #{ei_network_forward.9} parent=0 // pred_region
    _
  $region33: #{ei_network_forward.9} parent=0 // pred_fallthru
    _
  // Predicated region
  $region34: #{ei_network_forward.9} parent=0 // pred_check
    _
  $region35: #{ei_network_forward.9} parent=0 // pred_check_branch
    %427 = sbr.rel (0) target = $region37
  $region36: #{ei_network_forward.9} parent=0 // pred_region
    _
  $region37: #{ei_network_forward.9} parent=0 // pred_fallthru
    _
  // Predicated region
  $region38: #{ei_network_forward.9} parent=0 // pred_check
    _
  $region39: #{ei_network_forward.9} parent=0 // pred_check_branch
    %429 = sbr.rel (0) target = $region41
  $region40: #{ei_network_forward.9} parent=0 // pred_region
    _
  $region41: #{ei_network_forward.9} parent=0 // pred_fallthru
    _
  // Predicated region
  $region42: #{ei_network_forward.9} parent=0 // pred_check
    _
  $region43: #{ei_network_forward.9} parent=0 // pred_check_branch
    %431 = sbr.rel (0) target = $region45
  $region44: #{ei_network_forward.9} parent=0 // pred_region
    _
  $region45: #{ei_network_forward.9} parent=0 // pred_fallthru
    _

// kernel: ei_network_forward.10
$region0: #{ei_network_forward.10}
  #allocation0 [shape = 'u32[]', space=smem, size = 0x4, offset = 0x4, fixed_abs, tag = 'smem constant byte address 0x4 - core index']
  #allocation1 [shape = 'u32[144,128]{1,0:T(1,128)}', space=vmem, size = 0x12000, scoped, tag = 'internal scratch']
  %s0 = inlined_call_operand.vmem [shape: f32[32,128], index: 0, kind: input, shape index: {}]
  %s1 = inlined_call_operand.vmem [shape: f32[32,1], index: 1, kind: input, shape index: {}]
  %s2 = inlined_call_operand.vmem [shape: f32[128,128], index: 2, kind: input, shape index: {}]
  %s3 = inlined_call_operand.vmem [shape: f32[1,128], index: 3, kind: input, shape index: {}]
  %s4 = inlined_call_operand.vmem [shape: f32[32,128], index: 4, kind: output, shape index: {}]
  %s5 = sld [smem:[#allocation0]]
  $region26: #{ei_network_forward.10} parent=0
    _
  %s7 = ssub.s32 1, %s5
  %s8 = scalar_select 0, %s7, %s5
  // Predicated region
  $region2: #{ei_network_forward.10} parent=0 // pred_check
    _
  $region3: #{ei_network_forward.10} parent=0 // pred_check_branch
    %10 = sbr.rel (0) target = $region5
  $region4: #{ei_network_forward.10} parent=0 // pred_region
    _
  $region5: #{ei_network_forward.10} parent=0 // pred_fallthru
    _
  // Predicated region
  $region6: #{ei_network_forward.10} parent=0 // pred_check
    _
  $region7: #{ei_network_forward.10} parent=0 // pred_check_branch
    %12 = sbr.rel (0) target = $region9
  $region8: #{ei_network_forward.10} parent=0 // pred_region
    _
  $region9: #{ei_network_forward.10} parent=0 // pred_fallthru
    _
  // Predicated region
  $region10: #{ei_network_forward.10} parent=0 // pred_check
    _
  $region11: #{ei_network_forward.10} parent=0 // pred_check_branch
    %14 = sbr.rel (0) target = $region13
  $region12: #{ei_network_forward.10} parent=0 // pred_region
    _
  $region13: #{ei_network_forward.10} parent=0 // pred_fallthru
    _
  // Predicated region
  $region14: #{ei_network_forward.10} parent=0 // pred_check
    _
  $region15: #{ei_network_forward.10} parent=0 // pred_check_branch
    %16 = sbr.rel (0) target = $region17
  $region16: #{ei_network_forward.10} parent=0 // pred_region
    _
  $region17: #{ei_network_forward.10} parent=0 // pred_fallthru
    _
  %v17 = vld [vmem:[%s0] sm:$0xff]
  %v18 = vld [vmem:[%s0 + $0x8] sm:$0xff]
  %v19 = vld [vmem:[%s0 + $0x10] sm:$0xff]
  %v20 = vld [vmem:[%s0 + $0x18] sm:$0xff]
  %v21 = vld [vmem:[%s2] sm:$0xff]
  %v22 = vld [vmem:[%s2 + $0x8] sm:$0xff]
  %v23 = vld [vmem:[%s2 + $0x10] sm:$0xff]
  %v24 = vld [vmem:[%s2 + $0x18] sm:$0xff]
  %v25 = vld [vmem:[%s2 + $0x20] sm:$0xff]
  %v26 = vld [vmem:[%s2 + $0x28] sm:$0xff]
  %v27 = vld [vmem:[%s2 + $0x30] sm:$0xff]
  %v28 = vld [vmem:[%s2 + $0x38] sm:$0xff]
  %v29 = vld [vmem:[%s2 + $0x40] sm:$0xff]
  %v30 = vld [vmem:[%s2 + $0x48] sm:$0xff]
  %v31 = vld [vmem:[%s2 + $0x50] sm:$0xff]
  %v32 = vld [vmem:[%s2 + $0x58] sm:$0xff]
  %v33 = vld [vmem:[%s2 + $0x60] sm:$0xff]
  %v34 = vld [vmem:[%s2 + $0x68] sm:$0xff]
  %v35 = vld [vmem:[%s2 + $0x70] sm:$0xff]
  %v36 = vld [vmem:[%s2 + $0x78] sm:$0xff]
  %v37 = vld [vmem:[%s3] sm:$0x1]
  %v39 = vlaneseq
  %v40 = vshrl.u32 %v39, 7
  %v41 = vsub.s32 0, %v40
  %v42 = vrot.slane %v37, %v41
  %44 = vmatprep.subr.mxu0 0.0
  %45 = vmatpush1.msra.mxu0 %v21
  %46 = vmatprep.subr.mxu0 0.0
  %47 = vmatpush1.msra.mxu0 %v22
  %48 = vmatprep.subr.mxu0 0.0
  %49 = vmatpush1.msra.mxu0 %v23
  %50 = vmatprep.subr.mxu0 0.0
  %51 = vmatpush1.msra.mxu0 %v24
  %52 = vmatprep.subr.mxu0 0.0
  %53 = vmatpush1.msra.mxu0 %v25
  %54 = vmatprep.subr.mxu0 0.0
  %55 = vmatpush1.msra.mxu0 %v26
  %56 = vmatprep.subr.mxu0 0.0
  %57 = vmatpush1.msra.mxu0 %v27
  %58 = vmatprep.subr.mxu0 0.0
  %59 = vmatpush1.msra.mxu0 %v28
  %60 = vmatprep.subr.mxu0 0.0
  %61 = vmatpush1.msra.mxu0 %v29
  %62 = vmatprep.subr.mxu0 0.0
  %63 = vmatpush1.msra.mxu0 %v30
  %64 = vmatprep.subr.mxu0 0.0
  %65 = vmatpush1.msra.mxu0 %v31
  %66 = vmatprep.subr.mxu0 0.0
  %67 = vmatpush1.msra.mxu0 %v32
  %68 = vmatprep.subr.mxu0 0.0
  %69 = vmatpush1.msra.mxu0 %v33
  %70 = vmatprep.subr.mxu0 0.0
  %71 = vmatpush1.msra.mxu0 %v34
  %72 = vmatprep.subr.mxu0 0.0
  %73 = vmatpush1.msra.mxu0 %v35
  %74 = vmatprep.subr.mxu0 0.0
  %75 = vmatpush1.msra.mxu0 %v36
  %76 = vmatprep.subr.mxu0 0.0
  %77 = vmatpush1.msra.mxu0 0.0
  %78 = vmatprep.subr.mxu0 0.0
  %79 = vmatpush1.msra.mxu0 0.0
  %80 = vmatprep.subr.mxu0 0.0
  %81 = vmatpush1.msra.mxu0 0.0
  %82 = vmatprep.subr.mxu0 0.0
  %83 = vmatpush1.msra.mxu0 0.0
  %84 = vmatprep.subr.mxu0 0.0
  %85 = vmatpush1.msra.mxu0 0.0
  %86 = vmatprep.subr.mxu0 0.0
  %87 = vmatpush1.msra.mxu0 0.0
  %88 = vmatprep.subr.mxu0 0.0
  %89 = vmatpush1.msra.mxu0 0.0
  %90 = vmatprep.subr.mxu0 0.0
  %91 = vmatpush1.msra.mxu0 0.0
  %92 = vmatprep.subr.mxu0 0.0
  %93 = vmatpush1.msra.mxu0 0.0
  %94 = vmatprep.subr.mxu0 0.0
  %95 = vmatpush1.msra.mxu0 0.0
  %96 = vmatprep.subr.mxu0 0.0
  %97 = vmatpush1.msra.mxu0 0.0
  %98 = vmatprep.subr.mxu0 0.0
  %99 = vmatpush1.msra.mxu0 0.0
  %100 = vmatprep.subr.mxu0 0.0
  %101 = vmatpush1.msra.mxu0 0.0
  %102 = vmatprep.subr.mxu0 0.0
  %103 = vmatpush1.msra.mxu0 0.0
  %104 = vmatprep.subr.mxu0 0.0
  %105 = vmatpush1.msra.mxu0 0.0
  %106 = vmatprep.subr.mxu0 0.0
  %107 = vmatpush1.msra.mxu0 0.0
  %108 = vmatprep.mubr.f32.mxu0 0.0
  %109 = vmatmul.mubr.f32.gmra.mrb[0].mxu0 %v17
  %v110 = vpop.f32.mrb[0].mxu0
  %v111 = vadd.f32 %v42, %v110
  %v112 = vpop.f32.mrb[0].mxu0
  %113 = vmatprep.mubr.f32.mxu0 0.0
  %114 = vmatmul.mubr.f32.gmra.mrb[0].mxu0 %v18
  %v115 = vpop.f32.mrb[0].mxu0
  %v116 = vadd.f32 %v42, %v115
  %v117 = vpop.f32.mrb[0].mxu0
  %118 = vmatprep.mubr.f32.mxu0 0.0
  %119 = vmatmul.mubr.f32.gmra.mrb[0].mxu0 %v19
  %v120 = vpop.f32.mrb[0].mxu0
  %v121 = vadd.f32 %v42, %v120
  %v122 = vpop.f32.mrb[0].mxu0
  %123 = vmatprep.mubr.f32.mxu0 0.0
  %124 = vmatmul.mubr.f32.gmra.mrb[0].mxu0 %v20
  %v125 = vpop.f32.mrb[0].mxu0
  %v126 = vadd.f32 %v42, %v125
  %v127 = vpop.f32.mrb[0].mxu0
  %128 = vdwg.mxu0
  %v129 = vmax.f32 %v111, 0.0
  %v130 = vmax.f32 %v116, 0.0
  %v131 = vmax.f32 %v121, 0.0
  %v132 = vmax.f32 %v126, 0.0
  %v133 = vld [vmem:[%s1] sm:$0xff]
  %v134 = vld [vmem:[%s1 + $0x8] sm:$0xff]
  %v135 = vld [vmem:[%s1 + $0x10] sm:$0xff]
  %v136 = vld [vmem:[%s1 + $0x18] sm:$0xff]
  %138 = vset.pattern.permute.xlu0 0
  %139 = vperm.xlu0 %138, %v133
  %v140 = vpop.permute.xlu0 %139
  %143 = vset.pattern.permute.xlu0 0
  %144 = vperm.xlu0 %143, %v134
  %v145 = vpop.permute.xlu0 %144
  %148 = vset.pattern.permute.xlu0 0
  %149 = vperm.xlu0 %148, %v135
  %v150 = vpop.permute.xlu0 %149
  %153 = vset.pattern.permute.xlu0 0
  %154 = vperm.xlu0 %153, %v136
  %v155 = vpop.permute.xlu0 %154
  %v157 = vmul.f32 %v129, %v140
  %v158 = vmul.f32 %v130, %v145
  %v159 = vmul.f32 %v131, %v150
  %v160 = vmul.f32 %v132, %v155
  %161 = vst [vmem:[%s4] sm:$0xff] %v157
  %162 = vst [vmem:[%s4 + $0x8] sm:$0xff] %v158
  %163 = vst [vmem:[%s4 + $0x10] sm:$0xff] %v159
  %164 = vst [vmem:[%s4 + $0x18] sm:$0xff] %v160
  // Predicated region
  $region18: #{ei_network_forward.10} parent=0 // pred_check
    _
  $region19: #{ei_network_forward.10} parent=0 // pred_check_branch
    %166 = sbr.rel (0) target = $region21
  $region20: #{ei_network_forward.10} parent=0 // pred_region
    _
  $region21: #{ei_network_forward.10} parent=0 // pred_fallthru
    _
  // Predicated region
  $region22: #{ei_network_forward.10} parent=0 // pred_check
    _
  $region23: #{ei_network_forward.10} parent=0 // pred_check_branch
    %168 = sbr.rel (0) target = $region25
  $region24: #{ei_network_forward.10} parent=0 // pred_region
    _
  $region25: #{ei_network_forward.10} parent=0 // pred_fallthru
    _

// kernel: ei_network_forward.12
$region0: #{ei_network_forward.12}
  #allocation0 [shape = 'u32[]', space=smem, size = 0x4, offset = 0x4, fixed_abs, tag = 'smem constant byte address 0x4 - core index']
  #allocation1 [shape = 'u32[144,128]{1,0:T(1,128)}', space=vmem, size = 0x12000, scoped, tag = 'internal scratch']
  #allocation2 [shape = 's32[1]{0}', space=sflag, size = 0x4, scoped, tag = 'scoped memory for ei_network_forward.12']
  #allocation3 [shape = 'u8[512]{0}', space=smem, size = 0x200, scoped, tag = 'prefetched SMEM operand 0']
  #allocation4 [shape = 'u8[512]{0}', space=smem, size = 0x200, scoped, tag = 'prefetched SMEM operand 1']
  %s0 = inlined_call_operand.vmem [shape: s32[4], index: 0, kind: input, shape index: {}]
  %s1 = inlined_call_operand.vmem [shape: s32[4], index: 1, kind: input, shape index: {}]
  %s2 = inlined_call_operand.vmem [shape: f32[2,2,16,128], index: 2, kind: input, shape index: {}]
  %s3 = inlined_call_operand.vmem [shape: f32[2,2,16,1], index: 3, kind: input, shape index: {}]
  %s4 = inlined_call_operand.vmem [shape: f32[4,2,1,128], index: 4, kind: input, shape index: {}]
  %s5 = inlined_call_operand.vmem [shape: f32[4,2,1,128], index: 5, kind: input, shape index: {}]
  %s6 = inlined_call_operand.vmem [shape: f32[2,128,128], index: 6, kind: input, shape index: {}]
  %s7 = inlined_call_operand.vmem [shape: f32[2,1,128], index: 7, kind: input, shape index: {}]
  %s8 = inlined_call_operand.vmem [shape: f32[2,128,128], index: 8, kind: input, shape index: {}]
  %s9 = inlined_call_operand.vmem [shape: f32[2,1,128], index: 9, kind: input, shape index: {}]
  %s10 = inlined_call_operand.vmem [shape: f32[2,128,128], index: 10, kind: input, shape index: {}]
  %s11 = inlined_call_operand.vmem [shape: f32[2,1,128], index: 11, kind: input, shape index: {}]
  %s12 = inlined_call_operand.vmem [shape: f32[2,128,128], index: 12, kind: input, shape index: {}]
  %s13 = inlined_call_operand.vmem [shape: f32[2,1,128], index: 13, kind: input, shape index: {}]
  %s14 = inlined_call_operand.vmem [shape: f32[4,2,16,128], index: 14, kind: output, shape index: {}]
  %s15 = sld [smem:[#allocation0]]
  $region81: #{ei_network_forward.12} parent=0
    _
  %s17 = ssub.s32 1, %s15
  %s18 = scalar_select 0, %s17, %s15
  %s19 = sshll.u32 %s0, 4
  %s20 = int_to_ptr.vmem [resolvable:$true] %s19
  %22 = dma.vmem_to_smem %s20, 16, [#allocation3], [#allocation2]
  %s23 = sshll.u32 %s1, 4
  %s24 = int_to_ptr.vmem [resolvable:$true] %s23
  %26 = dma.vmem_to_smem %s24, 16, [#allocation4], [#allocation2]
  %27 = dma.done [#allocation2], 32
  %28 = sfence
  loop: start=0, step=1, limit=10
  $region2: #{ei_network_forward.12} parent=0 // loop_pre_header
    _
  $region3: #{ei_network_forward.12} parent=0 // loop_header
    %s30 = sphi 0, %s34
    %p31 = scmp.ge.s32.totalorder %s30, 10
    %s37 = sphi 0, %s56
    %s38 = sphi 0, %s52
    %s39 = sphi 0, %s48
    %s40 = sphi 0, %s37
    %s41 = sphi 0, %s38
    %s42 = sphi 0, %s39
    %s43 = sphi 0, %s40
    %s44 = sphi 0, %s41
    %s45 = sphi 0, %s42
    %s65 = sphi 0, %s67
    %s68 = sphi 0, %s65
    %s69 = sphi 0, %s68
    %s85 = sphi 0, %s69
    %s97 = sphi 0, %s99
    %s100 = sphi 0, %s97
    %s101 = sphi 0, %s100
    %s117 = sphi 0, %s101
    %s125 = sphi 0, %s127
    %s128 = sphi 0, %s125
    %s129 = sphi 0, %s128
    %s145 = sphi 0, %s129
    %s153 = sphi 0, %s155
    %s156 = sphi 0, %s153
    %s157 = sphi 0, %s156
    %s173 = sphi 0, %s157
    %s181 = sphi 0, %s183
    %s184 = sphi 0, %s181
    %s185 = sphi 0, %s184
    %s201 = sphi 0, %s185
    %s209 = sphi 0, %s211
    %s212 = sphi 0, %s209
    %s213 = sphi 0, %s212
    %s229 = sphi 0, %s213
    %s237 = sphi 0, %s239
    %s240 = sphi 0, %s237
    %s241 = sphi 0, %s240
    %s257 = sphi 0, %s241
    %s265 = sphi 0, %s267
    %s268 = sphi 0, %s265
    %s269 = sphi 0, %s268
    %s285 = sphi 0, %s269
    %s293 = sphi 0, %s295
    %s296 = sphi 0, %s293
    %s297 = sphi 0, %s296
    %s313 = sphi 0, %s297
    %s321 = sphi 0, %s323
    %s324 = sphi 0, %s321
    %s325 = sphi 0, %s324
    %s341 = sphi 0, %s325
    %s349 = sphi 0, %s351
    %s352 = sphi 0, %s349
    %s353 = sphi 0, %s352
    %s369 = sphi 0, %s353
    %s377 = sphi 0, %s379
    %s380 = sphi 0, %s377
    %s381 = sphi 0, %s380
    %s397 = sphi 0, %s381
    %s407 = sphi 0, %s409
    %s410 = sphi 0, %s407
    %s411 = sphi 0, %s410
    %s427 = sphi 0, %s411
  $region4: #{ei_network_forward.12} parent=0 // loop_header_branch
    %33 = sbr.rel (%p31) target = $region8
  $region5: #{ei_network_forward.12} parent=0 // loop_body
    %s35 = ssub.s32 %s30, 1
    %s36 = ssub.s32 %s30, 2
    %s46 = sadd.s32 1, %s39
    %p47 = scmp.ge.s32.totalorder %s46, 1
    %s48 = scalar_select %p47, 0, %s46
    %s49 = sadd.s32 1, %s38
    %s50 = scalar_select %p47, %s49, %s38
    %p51 = scmp.ge.s32.totalorder %s50, 2
    %s52 = scalar_select %p51, 0, %s50
    %s53 = sadd.s32 1, %s37
    %s54 = scalar_select %p51, %s53, %s37
    %p55 = scmp.ge.s32.totalorder %s54, 4
    %s56 = scalar_select %p55, 0, %s54
    %s57 = sld [smem:[#allocation3 + %s37]]
    %s58 = sld [smem:[#allocation3 + %s56]]
    %s59 = ssub.s32 %s57, %s58
    %s60 = ssub.s32 %s38, %s52
    %s61 = sor.u32 %s59, %s60
    %s62 = ssub.s32 %s39, %s48
    %s63 = sor.u32 %s61, %s62
    %p64 = scmp.eq.s32.totalorder %s63, 0
    %s66 = sadd.s32 %s65, 1
    %s67 = scalar_select %p64, %s65, %s66
    %p70 = pneg %p64
    %p71 = scmp.eq.s32.totalorder %s30, 7
    %p72 = por %p70, %p71
    %p73 = scmp.ne.s32.totalorder %s65, %s68
    %p74 = scmp.eq.s32.totalorder %s30, 0
    %p75 = por %p73, %p74
    %p76 = scmp.ne.s32.totalorder %s65, %s68
    %p77 = scmp.eq.s32.totalorder %s35, 7
    %p78 = por %p76, %p77
    %p79 = scmp.ne.s32.totalorder %s68, %s69
    %p80 = scmp.eq.s32.totalorder %s35, 0
    %p81 = por %p79, %p80
    %p82 = scmp.ne.s32.totalorder %s68, %s69
    %p83 = scmp.eq.s32.totalorder %s36, 7
    %p84 = por %p82, %p83
    %p86 = scmp.ne.s32.totalorder %s69, %s85
    %p87 = scmp.eq.s32.totalorder %s36, 0
    %p88 = por %p86, %p87
    %s89 = sld [smem:[#allocation3 + %s37]]
    %s90 = sld [smem:[#allocation3 + %s56]]
    %s91 = ssub.s32 %s89, %s90
    %s92 = ssub.s32 %s38, %s52
    %s93 = sor.u32 %s91, %s92
    %s94 = ssub.s32 %s39, %s48
    %s95 = sor.u32 %s93, %s94
    %p96 = scmp.eq.s32.totalorder %s95, 0
    %s98 = sadd.s32 %s97, 1
    %s99 = scalar_select %p96, %s97, %s98
    %p102 = pneg %p96
    %p103 = scmp.eq.s32.totalorder %s30, 7
    %p104 = por %p102, %p103
    %p105 = scmp.ne.s32.totalorder %s97, %s100
    %p106 = scmp.eq.s32.totalorder %s30, 0
    %p107 = por %p105, %p106
    %p108 = scmp.ne.s32.totalorder %s97, %s100
    %p109 = scmp.eq.s32.totalorder %s35, 7
    %p110 = por %p108, %p109
    %p111 = scmp.ne.s32.totalorder %s100, %s101
    %p112 = scmp.eq.s32.totalorder %s35, 0
    %p113 = por %p111, %p112
    %p114 = scmp.ne.s32.totalorder %s100, %s101
    %p115 = scmp.eq.s32.totalorder %s36, 7
    %p116 = por %p114, %p115
    %p118 = scmp.ne.s32.totalorder %s101, %s117
    %p119 = scmp.eq.s32.totalorder %s36, 0
    %p120 = por %p118, %p119
    %s121 = ssub.s32 %s37, %s56
    %s122 = ssub.s32 %s38, %s52
    %s123 = sor.u32 %s121, %s122
    %p124 = scmp.eq.s32.totalorder %s123, 0
    %s126 = sadd.s32 %s125, 1
    %s127 = scalar_select %p124, %s125, %s126
    %p130 = pneg %p124
    %p131 = scmp.eq.s32.totalorder %s30, 7
    %p132 = por %p130, %p131
    %p133 = scmp.ne.s32.totalorder %s125, %s128
    %p134 = scmp.eq.s32.totalorder %s30, 0
    %p135 = por %p133, %p134
    %p136 = scmp.ne.s32.totalorder %s125, %s128
    %p137 = scmp.eq.s32.totalorder %s35, 7
    %p138 = por %p136, %p137
    %p139 = scmp.ne.s32.totalorder %s128, %s129
    %p140 = scmp.eq.s32.totalorder %s35, 0
    %p141 = por %p139, %p140
    %p142 = scmp.ne.s32.totalorder %s128, %s129
    %p143 = scmp.eq.s32.totalorder %s36, 7
    %p144 = por %p142, %p143
    %p146 = scmp.ne.s32.totalorder %s129, %s145
    %p147 = scmp.eq.s32.totalorder %s36, 0
    %p148 = por %p146, %p147
    %s149 = ssub.s32 %s37, %s56
    %s150 = ssub.s32 %s38, %s52
    %s151 = sor.u32 %s149, %s150
    %p152 = scmp.eq.s32.totalorder %s151, 0
    %s154 = sadd.s32 %s153, 1
    %s155 = scalar_select %p152, %s153, %s154
    %p158 = pneg %p152
    %p159 = scmp.eq.s32.totalorder %s30, 7
    %p160 = por %p158, %p159
    %p161 = scmp.ne.s32.totalorder %s153, %s156
    %p162 = scmp.eq.s32.totalorder %s30, 0
    %p163 = por %p161, %p162
    %p164 = scmp.ne.s32.totalorder %s153, %s156
    %p165 = scmp.eq.s32.totalorder %s35, 7
    %p166 = por %p164, %p165
    %p167 = scmp.ne.s32.totalorder %s156, %s157
    %p168 = scmp.eq.s32.totalorder %s35, 0
    %p169 = por %p167, %p168
    %p170 = scmp.ne.s32.totalorder %s156, %s157
    %p171 = scmp.eq.s32.totalorder %s36, 7
    %p172 = por %p170, %p171
    %p174 = scmp.ne.s32.totalorder %s157, %s173
    %p175 = scmp.eq.s32.totalorder %s36, 0
    %p176 = por %p174, %p175
    %s177 = sld [smem:[#allocation4 + %s37]]
    %s178 = sld [smem:[#allocation4 + %s56]]
    %s179 = ssub.s32 %s177, %s178
    %p180 = scmp.eq.s32.totalorder %s179, 0
    %s182 = sadd.s32 %s181, 1
    %s183 = scalar_select %p180, %s181, %s182
    %p186 = pneg %p180
    %p187 = scmp.eq.s32.totalorder %s30, 7
    %p188 = por %p186, %p187
    %p189 = scmp.ne.s32.totalorder %s181, %s184
    %p190 = scmp.eq.s32.totalorder %s30, 0
    %p191 = por %p189, %p190
    %p192 = scmp.ne.s32.totalorder %s181, %s184
    %p193 = scmp.eq.s32.totalorder %s35, 7
    %p194 = por %p192, %p193
    %p195 = scmp.ne.s32.totalorder %s184, %s185
    %p196 = scmp.eq.s32.totalorder %s35, 0
    %p197 = por %p195, %p196
    %p198 = scmp.ne.s32.totalorder %s184, %s185
    %p199 = scmp.eq.s32.totalorder %s36, 7
    %p200 = por %p198, %p199
    %p202 = scmp.ne.s32.totalorder %s185, %s201
    %p203 = scmp.eq.s32.totalorder %s36, 0
    %p204 = por %p202, %p203
    %s205 = sld [smem:[#allocation4 + %s37]]
    %s206 = sld [smem:[#allocation4 + %s56]]
    %s207 = ssub.s32 %s205, %s206
    %p208 = scmp.eq.s32.totalorder %s207, 0
    %s210 = sadd.s32 %s209, 1
    %s211 = scalar_select %p208, %s209, %s210
    %p214 = pneg %p208
    %p215 = scmp.eq.s32.totalorder %s30, 7
    %p216 = por %p214, %p215
    %p217 = scmp.ne.s32.totalorder %s209, %s212
    %p218 = scmp.eq.s32.totalorder %s30, 0
    %p219 = por %p217, %p218
    %p220 = scmp.ne.s32.totalorder %s209, %s212
    %p221 = scmp.eq.s32.totalorder %s35, 7
    %p222 = por %p220, %p221
    %p223 = scmp.ne.s32.totalorder %s212, %s213
    %p224 = scmp.eq.s32.totalorder %s35, 0
    %p225 = por %p223, %p224
    %p226 = scmp.ne.s32.totalorder %s212, %s213
    %p227 = scmp.eq.s32.totalorder %s36, 7
    %p228 = por %p226, %p227
    %p230 = scmp.ne.s32.totalorder %s213, %s229
    %p231 = scmp.eq.s32.totalorder %s36, 0
    %p232 = por %p230, %p231
    %s233 = sld [smem:[#allocation4 + %s37]]
    %s234 = sld [smem:[#allocation4 + %s56]]
    %s235 = ssub.s32 %s233, %s234
    %p236 = scmp.eq.s32.totalorder %s235, 0
    %s238 = sadd.s32 %s237, 1
    %s239 = scalar_select %p236, %s237, %s238
    %p242 = pneg %p236
    %p243 = scmp.eq.s32.totalorder %s30, 7
    %p244 = por %p242, %p243
    %p245 = scmp.ne.s32.totalorder %s237, %s240
    %p246 = scmp.eq.s32.totalorder %s30, 0
    %p247 = por %p245, %p246
    %p248 = scmp.ne.s32.totalorder %s237, %s240
    %p249 = scmp.eq.s32.totalorder %s35, 7
    %p250 = por %p248, %p249
    %p251 = scmp.ne.s32.totalorder %s240, %s241
    %p252 = scmp.eq.s32.totalorder %s35, 0
    %p253 = por %p251, %p252
    %p254 = scmp.ne.s32.totalorder %s240, %s241
    %p255 = scmp.eq.s32.totalorder %s36, 7
    %p256 = por %p254, %p255
    %p258 = scmp.ne.s32.totalorder %s241, %s257
    %p259 = scmp.eq.s32.totalorder %s36, 0
    %p260 = por %p258, %p259
    %s261 = sld [smem:[#allocation4 + %s37]]
    %s262 = sld [smem:[#allocation4 + %s56]]
    %s263 = ssub.s32 %s261, %s262
    %p264 = scmp.eq.s32.totalorder %s263, 0
    %s266 = sadd.s32 %s265, 1
    %s267 = scalar_select %p264, %s265, %s266
    %p270 = pneg %p264
    %p271 = scmp.eq.s32.totalorder %s30, 7
    %p272 = por %p270, %p271
    %p273 = scmp.ne.s32.totalorder %s265, %s268
    %p274 = scmp.eq.s32.totalorder %s30, 0
    %p275 = por %p273, %p274
    %p276 = scmp.ne.s32.totalorder %s265, %s268
    %p277 = scmp.eq.s32.totalorder %s35, 7
    %p278 = por %p276, %p277
    %p279 = scmp.ne.s32.totalorder %s268, %s269
    %p280 = scmp.eq.s32.totalorder %s35, 0
    %p281 = por %p279, %p280
    %p282 = scmp.ne.s32.totalorder %s268, %s269
    %p283 = scmp.eq.s32.totalorder %s36, 7
    %p284 = por %p282, %p283
    %p286 = scmp.ne.s32.totalorder %s269, %s285
    %p287 = scmp.eq.s32.totalorder %s36, 0
    %p288 = por %p286, %p287
    %s289 = sld [smem:[#allocation4 + %s37]]
    %s290 = sld [smem:[#allocation4 + %s56]]
    %s291 = ssub.s32 %s289, %s290
    %p292 = scmp.eq.s32.totalorder %s291, 0
    %s294 = sadd.s32 %s293, 1
    %s295 = scalar_select %p292, %s293, %s294
    %p298 = pneg %p292
    %p299 = scmp.eq.s32.totalorder %s30, 7
    %p300 = por %p298, %p299
    %p301 = scmp.ne.s32.totalorder %s293, %s296
    %p302 = scmp.eq.s32.totalorder %s30, 0
    %p303 = por %p301, %p302
    %p304 = scmp.ne.s32.totalorder %s293, %s296
    %p305 = scmp.eq.s32.totalorder %s35, 7
    %p306 = por %p304, %p305
    %p307 = scmp.ne.s32.totalorder %s296, %s297
    %p308 = scmp.eq.s32.totalorder %s35, 0
    %p309 = por %p307, %p308
    %p310 = scmp.ne.s32.totalorder %s296, %s297
    %p311 = scmp.eq.s32.totalorder %s36, 7
    %p312 = por %p310, %p311
    %p314 = scmp.ne.s32.totalorder %s297, %s313
    %p315 = scmp.eq.s32.totalorder %s36, 0
    %p316 = por %p314, %p315
    %s317 = sld [smem:[#allocation4 + %s37]]
    %s318 = sld [smem:[#allocation4 + %s56]]
    %s319 = ssub.s32 %s317, %s318
    %p320 = scmp.eq.s32.totalorder %s319, 0
    %s322 = sadd.s32 %s321, 1
    %s323 = scalar_select %p320, %s321, %s322
    %p326 = pneg %p320
    %p327 = scmp.eq.s32.totalorder %s30, 7
    %p328 = por %p326, %p327
    %p329 = scmp.ne.s32.totalorder %s321, %s324
    %p330 = scmp.eq.s32.totalorder %s30, 0
    %p331 = por %p329, %p330
    %p332 = scmp.ne.s32.totalorder %s321, %s324
    %p333 = scmp.eq.s32.totalorder %s35, 7
    %p334 = por %p332, %p333
    %p335 = scmp.ne.s32.totalorder %s324, %s325
    %p336 = scmp.eq.s32.totalorder %s35, 0
    %p337 = por %p335, %p336
    %p338 = scmp.ne.s32.totalorder %s324, %s325
    %p339 = scmp.eq.s32.totalorder %s36, 7
    %p340 = por %p338, %p339
    %p342 = scmp.ne.s32.totalorder %s325, %s341
    %p343 = scmp.eq.s32.totalorder %s36, 0
    %p344 = por %p342, %p343
    %s345 = sld [smem:[#allocation4 + %s37]]
    %s346 = sld [smem:[#allocation4 + %s56]]
    %s347 = ssub.s32 %s345, %s346
    %p348 = scmp.eq.s32.totalorder %s347, 0
    %s350 = sadd.s32 %s349, 1
    %s351 = scalar_select %p348, %s349, %s350
    %p354 = pneg %p348
    %p355 = scmp.eq.s32.totalorder %s30, 7
    %p356 = por %p354, %p355
    %p357 = scmp.ne.s32.totalorder %s349, %s352
    %p358 = scmp.eq.s32.totalorder %s30, 0
    %p359 = por %p357, %p358
    %p360 = scmp.ne.s32.totalorder %s349, %s352
    %p361 = scmp.eq.s32.totalorder %s35, 7
    %p362 = por %p360, %p361
    %p363 = scmp.ne.s32.totalorder %s352, %s353
    %p364 = scmp.eq.s32.totalorder %s35, 0
    %p365 = por %p363, %p364
    %p366 = scmp.ne.s32.totalorder %s352, %s353
    %p367 = scmp.eq.s32.totalorder %s36, 7
    %p368 = por %p366, %p367
    %p370 = scmp.ne.s32.totalorder %s353, %s369
    %p371 = scmp.eq.s32.totalorder %s36, 0
    %p372 = por %p370, %p371
    %s373 = sld [smem:[#allocation4 + %s37]]
    %s374 = sld [smem:[#allocation4 + %s56]]
    %s375 = ssub.s32 %s373, %s374
    %p376 = scmp.eq.s32.totalorder %s375, 0
    %s378 = sadd.s32 %s377, 1
    %s379 = scalar_select %p376, %s377, %s378
    %p382 = pneg %p376
    %p383 = scmp.eq.s32.totalorder %s30, 7
    %p384 = por %p382, %p383
    %p385 = scmp.ne.s32.totalorder %s377, %s380
    %p386 = scmp.eq.s32.totalorder %s30, 0
    %p387 = por %p385, %p386
    %p388 = scmp.ne.s32.totalorder %s377, %s380
    %p389 = scmp.eq.s32.totalorder %s35, 7
    %p390 = por %p388, %p389
    %p391 = scmp.ne.s32.totalorder %s380, %s381
    %p392 = scmp.eq.s32.totalorder %s35, 0
    %p393 = por %p391, %p392
    %p394 = scmp.ne.s32.totalorder %s380, %s381
    %p395 = scmp.eq.s32.totalorder %s36, 7
    %p396 = por %p394, %p395
    %p398 = scmp.ne.s32.totalorder %s381, %s397
    %p399 = scmp.eq.s32.totalorder %s36, 0
    %p400 = por %p398, %p399
    %s401 = ssub.s32 %s37, %s56
    %s402 = ssub.s32 %s38, %s52
    %s403 = sor.u32 %s401, %s402
    %s404 = ssub.s32 %s39, %s48
    %s405 = sor.u32 %s403, %s404
    %p406 = scmp.eq.s32.totalorder %s405, 0
    %s408 = sadd.s32 %s407, 1
    %s409 = scalar_select %p406, %s407, %s408
    %p412 = pneg %p406
    %p413 = scmp.eq.s32.totalorder %s30, 7
    %p414 = por %p412, %p413
    %p415 = scmp.ne.s32.totalorder %s407, %s410
    %p416 = scmp.eq.s32.totalorder %s30, 0
    %p417 = por %p415, %p416
    %p418 = scmp.ne.s32.totalorder %s407, %s410
    %p419 = scmp.eq.s32.totalorder %s35, 7
    %p420 = por %p418, %p419
    %p421 = scmp.ne.s32.totalorder %s410, %s411
    %p422 = scmp.eq.s32.totalorder %s35, 0
    %p423 = por %p421, %p422
    %p424 = scmp.ne.s32.totalorder %s410, %s411
    %p425 = scmp.eq.s32.totalorder %s36, 7
    %p426 = por %p424, %p425
    %p428 = scmp.ne.s32.totalorder %s411, %s427
    %p429 = scmp.eq.s32.totalorder %s36, 0
    %p430 = por %p428, %p429
    %p431 = scmp.le.s32.totalorder 1, %s30
    %p432 = scmp.lt.s32.totalorder %s30, 9
    %p433 = pnand %p431, %p432
    %p434 = pneg %p433
    // Predicated region
    $region9: #{ei_network_forward.12} parent=5 // pred_check
      _
    $region10: #{ei_network_forward.12} parent=5 // pred_check_branch
      %436 = sbr.rel (%p433) target = $region12
    $region11: #{ei_network_forward.12} parent=5 // pred_region
      %s437 = ssub.s32 %s30, 1
    $region12: #{ei_network_forward.12} parent=5 // pred_fallthru
      _
    %p438 = scmp.lt.s32.totalorder %s30, 8
    // Predicated region
    $region13: #{ei_network_forward.12} parent=5 // pred_check
      %p439 = pneg %p438
    $region14: #{ei_network_forward.12} parent=5 // pred_check_branch
      %441 = sbr.rel (%p439) target = $region16
    $region15: #{ei_network_forward.12} parent=5 // pred_region
      // Predicated region
      $region17: #{ei_network_forward.12} parent=15 // pred_check
        %p442 = pneg %p75
      $region18: #{ei_network_forward.12} parent=15 // pred_check_branch
        %444 = sbr.rel (%p442) target = $region20
      $region19: #{ei_network_forward.12} parent=15 // pred_region
        %s445 = sld [smem:[#allocation3 + %s37]]
        %s446 = smul.u32 2, %s39
        %p447 = scmp.lt.s32.totalorder %s445, 1
        %s448 = scalar_select %p447, %s445, 1
        %p449 = scmp.lt.s32.totalorder %s38, 1
        %s450 = scalar_select %p449, %s38, 1
        %p451 = scmp.lt.s32.totalorder %s446, 1
        %s452 = scalar_select %p451, %s446, 1
        %s453 = smul.addr %s450, 2
        %s454 = sadd.s32 %s452, %s453
        %s455 = smul.addr %s448, 4
        %s456 = sadd.s32 %s454, %s455
        %s457 = smul.addr %s456, 8
        %s458 = scalar_lea.vmem %s2, %s457
        %s459 = sld [smem:[#allocation3 + %s37]]
        %s460 = smul.u32 2, %s39
      $region20: #{ei_network_forward.12} parent=15 // pred_fallthru
        _
      // Predicated region
      $region21: #{ei_network_forward.12} parent=15 // pred_check
        %p461 = pneg %p107
      $region22: #{ei_network_forward.12} parent=15 // pred_check_branch
        %463 = sbr.rel (%p461) target = $region24
      $region23: #{ei_network_forward.12} parent=15 // pred_region
        %s464 = sld [smem:[#allocation3 + %s37]]
        %s465 = smul.u32 2, %s39
        %p466 = scmp.lt.s32.totalorder %s464, 1
        %s467 = scalar_select %p466, %s464, 1
        %p468 = scmp.lt.s32.totalorder %s38, 1
        %s469 = scalar_select %p468, %s38, 1
        %p470 = scmp.lt.s32.totalorder %s465, 1
        %s471 = scalar_select %p470, %s465, 1
        %s472 = smul.addr %s469, 2
        %s473 = sadd.s32 %s471, %s472
        %s474 = smul.addr %s467, 4
        %s475 = sadd.s32 %s473, %s474
        %s476 = smul.addr %s475, 8
        %s477 = scalar_lea.vmem %s3, %s476
        %s478 = sld [smem:[#allocation3 + %s37]]
        %s479 = smul.u32 2, %s39
      $region24: #{ei_network_forward.12} parent=15 // pred_fallthru
        _
      // Predicated region
      $region25: #{ei_network_forward.12} parent=15 // pred_check
        %p480 = pneg %p135
      $region26: #{ei_network_forward.12} parent=15 // pred_check_branch
        %482 = sbr.rel (%p480) target = $region28
      $region27: #{ei_network_forward.12} parent=15 // pred_region
        %p483 = scmp.lt.s32.totalorder %s37, 3
        %s484 = scalar_select %p483, %s37, 3
        %p485 = scmp.lt.s32.totalorder %s38, 1
        %s486 = scalar_select %p485, %s38, 1
        %s487 = smul.addr %s484, 2
        %s488 = sadd.s32 %s486, %s487
        %s489 = scalar_lea.vmem %s4, %s488
      $region28: #{ei_network_forward.12} parent=15 // pred_fallthru
        _
      // Predicated region
      $region29: #{ei_network_forward.12} parent=15 // pred_check
        %p490 = pneg %p163
      $region30: #{ei_network_forward.12} parent=15 // pred_check_branch
        %492 = sbr.rel (%p490) target = $region32
      $region31: #{ei_network_forward.12} parent=15 // pred_region
        %p493 = scmp.lt.s32.totalorder %s37, 3
        %s494 = scalar_select %p493, %s37, 3
        %p495 = scmp.lt.s32.totalorder %s38, 1
        %s496 = scalar_select %p495, %s38, 1
        %s497 = smul.addr %s494, 2
        %s498 = sadd.s32 %s496, %s497
        %s499 = scalar_lea.vmem %s5, %s498
      $region32: #{ei_network_forward.12} parent=15 // pred_fallthru
        _
      // Predicated region
      $region33: #{ei_network_forward.12} parent=15 // pred_check
        %p500 = pneg %p191
      $region34: #{ei_network_forward.12} parent=15 // pred_check_branch
        %502 = sbr.rel (%p500) target = $region36
      $region35: #{ei_network_forward.12} parent=15 // pred_region
        %s503 = sld [smem:[#allocation4 + %s37]]
        %p504 = scmp.lt.s32.totalorder %s503, 1
        %s505 = scalar_select %p504, %s503, 1
        %s506 = smul.addr %s505, 16
        %s507 = smul.addr %s506, 8
        %s508 = scalar_lea.vmem %s6, %s507
        %s509 = sld [smem:[#allocation4 + %s37]]
      $region36: #{ei_network_forward.12} parent=15 // pred_fallthru
        _
      // Predicated region
      $region37: #{ei_network_forward.12} parent=15 // pred_check
        %p510 = pneg %p219
      $region38: #{ei_network_forward.12} parent=15 // pred_check_branch
        %512 = sbr.rel (%p510) target = $region40
      $region39: #{ei_network_forward.12} parent=15 // pred_region
        %s513 = sld [smem:[#allocation4 + %s37]]
        %p514 = scmp.lt.s32.totalorder %s513, 1
        %s515 = scalar_select %p514, %s513, 1
        %s516 = scalar_lea.vmem %s7, %s515
        %s517 = sld [smem:[#allocation4 + %s37]]
      $region40: #{ei_network_forward.12} parent=15 // pred_fallthru
        _
      // Predicated region
      $region41: #{ei_network_forward.12} parent=15 // pred_check
        %p518 = pneg %p247
      $region42: #{ei_network_forward.12} parent=15 // pred_check_branch
        %520 = sbr.rel (%p518) target = $region44
      $region43: #{ei_network_forward.12} parent=15 // pred_region
        %s521 = sld [smem:[#allocation4 + %s37]]
        %p522 = scmp.lt.s32.totalorder %s521, 1
        %s523 = scalar_select %p522, %s521, 1
        %s524 = smul.addr %s523, 16
        %s525 = smul.addr %s524, 8
        %s526 = scalar_lea.vmem %s8, %s525
        %s527 = sld [smem:[#allocation4 + %s37]]
      $region44: #{ei_network_forward.12} parent=15 // pred_fallthru
        _
      // Predicated region
      $region45: #{ei_network_forward.12} parent=15 // pred_check
        %p528 = pneg %p275
      $region46: #{ei_network_forward.12} parent=15 // pred_check_branch
        %530 = sbr.rel (%p528) target = $region48
      $region47: #{ei_network_forward.12} parent=15 // pred_region
        %s531 = sld [smem:[#allocation4 + %s37]]
        %p532 = scmp.lt.s32.totalorder %s531, 1
        %s533 = scalar_select %p532, %s531, 1
        %s534 = scalar_lea.vmem %s9, %s533
        %s535 = sld [smem:[#allocation4 + %s37]]
      $region48: #{ei_network_forward.12} parent=15 // pred_fallthru
        _
      // Predicated region
      $region49: #{ei_network_forward.12} parent=15 // pred_check
        %p536 = pneg %p303
      $region50: #{ei_network_forward.12} parent=15 // pred_check_branch
        %538 = sbr.rel (%p536) target = $region52
      $region51: #{ei_network_forward.12} parent=15 // pred_region
        %s539 = sld [smem:[#allocation4 + %s37]]
        %p540 = scmp.lt.s32.totalorder %s539, 1
        %s541 = scalar_select %p540, %s539, 1
        %s542 = smul.addr %s541, 16
        %s543 = smul.addr %s542, 8
        %s544 = scalar_lea.vmem %s10, %s543
        %s545 = sld [smem:[#allocation4 + %s37]]
      $region52: #{ei_network_forward.12} parent=15 // pred_fallthru
        _
      // Predicated region
      $region53: #{ei_network_forward.12} parent=15 // pred_check
        %p546 = pneg %p331
      $region54: #{ei_network_forward.12} parent=15 // pred_check_branch
        %548 = sbr.rel (%p546) target = $region56
      $region55: #{ei_network_forward.12} parent=15 // pred_region
        %s549 = sld [smem:[#allocation4 + %s37]]
        %p550 = scmp.lt.s32.totalorder %s549, 1
        %s551 = scalar_select %p550, %s549, 1
        %s552 = scalar_lea.vmem %s11, %s551
        %s553 = sld [smem:[#allocation4 + %s37]]
      $region56: #{ei_network_forward.12} parent=15 // pred_fallthru
        _
      // Predicated region
      $region57: #{ei_network_forward.12} parent=15 // pred_check
        %p554 = pneg %p359
      $region58: #{ei_network_forward.12} parent=15 // pred_check_branch
        %556 = sbr.rel (%p554) target = $region60
      $region59: #{ei_network_forward.12} parent=15 // pred_region
        %s557 = sld [smem:[#allocation4 + %s37]]
        %p558 = scmp.lt.s32.totalorder %s557, 1
        %s559 = scalar_select %p558, %s557, 1
        %s560 = smul.addr %s559, 16
        %s561 = smul.addr %s560, 8
        %s562 = scalar_lea.vmem %s12, %s561
        %s563 = sld [smem:[#allocation4 + %s37]]
      $region60: #{ei_network_forward.12} parent=15 // pred_fallthru
        _
      // Predicated region
      $region61: #{ei_network_forward.12} parent=15 // pred_check
        %p564 = pneg %p387
      $region62: #{ei_network_forward.12} parent=15 // pred_check_branch
        %566 = sbr.rel (%p564) target = $region64
      $region63: #{ei_network_forward.12} parent=15 // pred_region
        %s567 = sld [smem:[#allocation4 + %s37]]
        %p568 = scmp.lt.s32.totalorder %s567, 1
        %s569 = scalar_select %p568, %s567, 1
        %s570 = scalar_lea.vmem %s13, %s569
        %s571 = sld [smem:[#allocation4 + %s37]]
      $region64: #{ei_network_forward.12} parent=15 // pred_fallthru
        _
    $region16: #{ei_network_forward.12} parent=5 // pred_fallthru
      _
    %p572 = scmp.le.s32.totalorder 1, %s30
    %p573 = scmp.lt.s32.totalorder %s30, 9
    %p574 = pnand %p572, %p573
    %p575 = pneg %p574
    // Predicated region
    $region65: #{ei_network_forward.12} parent=5 // pred_check
      _
    $region66: #{ei_network_forward.12} parent=5 // pred_check_branch
      %577 = sbr.rel (%p574) target = $region68
    $region67: #{ei_network_forward.12} parent=5 // pred_region
      %s578 = ssub.s32 %s30, 1
      %s579 = sld [smem:[#allocation3 + %s40]]
      %s580 = smul.u32 2, %s42
      %p581 = scmp.lt.s32.totalorder %s579, 1
      %s582 = scalar_select %p581, %s579, 1
      %p583 = scmp.lt.s32.totalorder %s41, 1
      %s584 = scalar_select %p583, %s41, 1
      %p585 = scmp.lt.s32.totalorder %s580, 1
      %s586 = scalar_select %p585, %s580, 1
      %s587 = smul.addr %s584, 2
      %s588 = sadd.s32 %s586, %s587
      %s589 = smul.addr %s582, 4
      %s590 = sadd.s32 %s588, %s589
      %s591 = smul.addr %s590, 8
      %s592 = scalar_lea.vmem %s2, %s591
      %p593 = pneg %p81
      %p594 = pneg %p78
      %s595 = sld [smem:[#allocation3 + %s40]]
      %s596 = smul.u32 2, %s42
      %p597 = scmp.lt.s32.totalorder %s595, 1
      %s598 = scalar_select %p597, %s595, 1
      %p599 = scmp.lt.s32.totalorder %s41, 1
      %s600 = scalar_select %p599, %s41, 1
      %p601 = scmp.lt.s32.totalorder %s596, 1
      %s602 = scalar_select %p601, %s596, 1
      %s603 = smul.addr %s600, 2
      %s604 = sadd.s32 %s602, %s603
      %s605 = smul.addr %s598, 4
      %s606 = sadd.s32 %s604, %s605
      %s607 = smul.addr %s606, 8
      %s608 = scalar_lea.vmem %s3, %s607
      %p609 = pneg %p113
      %p610 = pneg %p110
      %p611 = scmp.lt.s32.totalorder %s40, 3
      %s612 = scalar_select %p611, %s40, 3
      %p613 = scmp.lt.s32.totalorder %s41, 1
      %s614 = scalar_select %p613, %s41, 1
      %s615 = smul.addr %s612, 2
      %s616 = sadd.s32 %s614, %s615
      %s617 = scalar_lea.vmem %s4, %s616
      %p618 = pneg %p141
      %p619 = pneg %p138
      %p620 = scmp.lt.s32.totalorder %s40, 3
      %s621 = scalar_select %p620, %s40, 3
      %p622 = scmp.lt.s32.totalorder %s41, 1
      %s623 = scalar_select %p622, %s41, 1
      %s624 = smul.addr %s621, 2
      %s625 = sadd.s32 %s623, %s624
      %s626 = scalar_lea.vmem %s5, %s625
      %p627 = pneg %p169
      %p628 = pneg %p166
      %s629 = sld [smem:[#allocation4 + %s40]]
      %p630 = scmp.lt.s32.totalorder %s629, 1
      %s631 = scalar_select %p630, %s629, 1
      %s632 = smul.addr %s631, 16
      %s633 = smul.addr %s632, 8
      %s634 = scalar_lea.vmem %s6, %s633
      %p635 = pneg %p197
      %p636 = pneg %p194
      %s637 = sld [smem:[#allocation4 + %s40]]
      %p638 = scmp.lt.s32.totalorder %s637, 1
      %s639 = scalar_select %p638, %s637, 1
      %s640 = scalar_lea.vmem %s7, %s639
      %p641 = pneg %p225
      %p642 = pneg %p222
      %s643 = sld [smem:[#allocation4 + %s40]]
      %p644 = scmp.lt.s32.totalorder %s643, 1
      %s645 = scalar_select %p644, %s643, 1
      %s646 = smul.addr %s645, 16
      %s647 = smul.addr %s646, 8
      %s648 = scalar_lea.vmem %s8, %s647
      %p649 = pneg %p253
      %p650 = pneg %p250
      %s651 = sld [smem:[#allocation4 + %s40]]
      %p652 = scmp.lt.s32.totalorder %s651, 1
      %s653 = scalar_select %p652, %s651, 1
      %s654 = scalar_lea.vmem %s9, %s653
      %p655 = pneg %p281
      %p656 = pneg %p278
      %s657 = sld [smem:[#allocation4 + %s40]]
      %p658 = scmp.lt.s32.totalorder %s657, 1
      %s659 = scalar_select %p658, %s657, 1
      %s660 = smul.addr %s659, 16
      %s661 = smul.addr %s660, 8
      %s662 = scalar_lea.vmem %s10, %s661
      %p663 = pneg %p309
      %p664 = pneg %p306
      %s665 = sld [smem:[#allocation4 + %s40]]
      %p666 = scmp.lt.s32.totalorder %s665, 1
      %s667 = scalar_select %p666, %s665, 1
      %s668 = scalar_lea.vmem %s11, %s667
      %p669 = pneg %p337
      %p670 = pneg %p334
      %s671 = sld [smem:[#allocation4 + %s40]]
      %p672 = scmp.lt.s32.totalorder %s671, 1
      %s673 = scalar_select %p672, %s671, 1
      %s674 = smul.addr %s673, 16
      %s675 = smul.addr %s674, 8
      %s676 = scalar_lea.vmem %s12, %s675
      %p677 = pneg %p365
      %p678 = pneg %p362
      %s679 = sld [smem:[#allocation4 + %s40]]
      %p680 = scmp.lt.s32.totalorder %s679, 1
      %s681 = scalar_select %p680, %s679, 1
      %s682 = scalar_lea.vmem %s13, %s681
      %p683 = pneg %p393
      %p684 = pneg %p390
      %p685 = pneg %p423
      %p686 = pneg %p420
      %s687 = smul.u32 2, %s42
      %p688 = scmp.lt.s32.totalorder %s40, 3
      %s689 = scalar_select %p688, %s40, 3
      %p690 = scmp.lt.s32.totalorder %s41, 1
      %s691 = scalar_select %p690, %s41, 1
      %p692 = scmp.lt.s32.totalorder %s687, 1
      %s693 = scalar_select %p692, %s687, 1
      %s694 = smul.addr %s691, 2
      %s695 = sadd.s32 %s693, %s694
      %s696 = smul.addr %s689, 4
      %s697 = sadd.s32 %s695, %s696
      %s698 = smul.addr %s697, 8
      %s699 = scalar_lea.vmem %s14, %s698
      %s700 = sld [smem:[#allocation3 + %s40]]
      %s701 = smul.u32 2, %s42
      %p702 = scmp.lt.s32.totalorder %s700, 1
      %s703 = scalar_select %p702, %s700, 1
      %p704 = scmp.lt.s32.totalorder %s41, 1
      %s705 = scalar_select %p704, %s41, 1
      %p706 = scmp.lt.s32.totalorder %s701, 1
      %s707 = scalar_select %p706, %s701, 1
      %s708 = smul.addr %s705, 2
      %s709 = sadd.s32 %s707, %s708
      %s710 = smul.addr %s703, 4
      %s711 = sadd.s32 %s709, %s710
      %s712 = smul.addr %s711, 8
      %s713 = scalar_lea.vmem %s2, %s712
      %s714 = sld [smem:[#allocation3 + %s40]]
      %s715 = smul.u32 2, %s42
      %s716 = sld [smem:[#allocation3 + %s40]]
      %s717 = smul.u32 2, %s42
      %p718 = scmp.lt.s32.totalorder %s716, 1
      %s719 = scalar_select %p718, %s716, 1
      %p720 = scmp.lt.s32.totalorder %s41, 1
      %s721 = scalar_select %p720, %s41, 1
      %p722 = scmp.lt.s32.totalorder %s717, 1
      %s723 = scalar_select %p722, %s717, 1
      %s724 = smul.addr %s721, 2
      %s725 = sadd.s32 %s723, %s724
      %s726 = smul.addr %s719, 4
      %s727 = sadd.s32 %s725, %s726
      %s728 = smul.addr %s727, 8
      %s729 = scalar_lea.vmem %s3, %s728
      %s730 = sld [smem:[#allocation3 + %s40]]
      %s731 = smul.u32 2, %s42
      %p732 = scmp.lt.s32.totalorder %s40, 3
      %s733 = scalar_select %p732, %s40, 3
      %p734 = scmp.lt.s32.totalorder %s41, 1
      %s735 = scalar_select %p734, %s41, 1
      %s736 = smul.addr %s733, 2
      %s737 = sadd.s32 %s735, %s736
      %s738 = scalar_lea.vmem %s4, %s737
      %p739 = scmp.lt.s32.totalorder %s40, 3
      %s740 = scalar_select %p739, %s40, 3
      %p741 = scmp.lt.s32.totalorder %s41, 1
      %s742 = scalar_select %p741, %s41, 1
      %s743 = smul.addr %s740, 2
      %s744 = sadd.s32 %s742, %s743
      %s745 = scalar_lea.vmem %s5, %s744
      %s746 = sld [smem:[#allocation4 + %s40]]
      %p747 = scmp.lt.s32.totalorder %s746, 1
      %s748 = scalar_select %p747, %s746, 1
      %s749 = smul.addr %s748, 16
      %s750 = smul.addr %s749, 8
      %s751 = scalar_lea.vmem %s6, %s750
      %s752 = sld [smem:[#allocation4 + %s40]]
      %s753 = sld [smem:[#allocation4 + %s40]]
      %p754 = scmp.lt.s32.totalorder %s753, 1
      %s755 = scalar_select %p754, %s753, 1
      %s756 = scalar_lea.vmem %s7, %s755
      %s757 = sld [smem:[#allocation4 + %s40]]
      %s758 = sld [smem:[#allocation4 + %s40]]
      %p759 = scmp.lt.s32.totalorder %s758, 1
      %s760 = scalar_select %p759, %s758, 1
      %s761 = smul.addr %s760, 16
      %s762 = smul.addr %s761, 8
      %s763 = scalar_lea.vmem %s8, %s762
      %s764 = sld [smem:[#allocation4 + %s40]]
      %s765 = sld [smem:[#allocation4 + %s40]]
      %p766 = scmp.lt.s32.totalorder %s765, 1
      %s767 = scalar_select %p766, %s765, 1
      %s768 = scalar_lea.vmem %s9, %s767
      %s769 = sld [smem:[#allocation4 + %s40]]
      %s770 = sld [smem:[#allocation4 + %s40]]
      %p771 = scmp.lt.s32.totalorder %s770, 1
      %s772 = scalar_select %p771, %s770, 1
      %s773 = smul.addr %s772, 16
      %s774 = smul.addr %s773, 8
      %s775 = scalar_lea.vmem %s10, %s774
      %s776 = sld [smem:[#allocation4 + %s40]]
      %s777 = sld [smem:[#allocation4 + %s40]]
      %p778 = scmp.lt.s32.totalorder %s777, 1
      %s779 = scalar_select %p778, %s777, 1
      %s780 = scalar_lea.vmem %s11, %s779
      %s781 = sld [smem:[#allocation4 + %s40]]
      %s782 = sld [smem:[#allocation4 + %s40]]
      %p783 = scmp.lt.s32.totalorder %s782, 1
      %s784 = scalar_select %p783, %s782, 1
      %s785 = smul.addr %s784, 16
      %s786 = smul.addr %s785, 8
      %s787 = scalar_lea.vmem %s12, %s786
      %s788 = sld [smem:[#allocation4 + %s40]]
      %s789 = sld [smem:[#allocation4 + %s40]]
      %p790 = scmp.lt.s32.totalorder %s789, 1
      %s791 = scalar_select %p790, %s789, 1
      %s792 = scalar_lea.vmem %s13, %s791
      %s793 = sld [smem:[#allocation4 + %s40]]
      %s794 = smul.u32 2, %s42
      %p795 = scmp.lt.s32.totalorder %s40, 3
      %s796 = scalar_select %p795, %s40, 3
      %p797 = scmp.lt.s32.totalorder %s41, 1
      %s798 = scalar_select %p797, %s41, 1
      %p799 = scmp.lt.s32.totalorder %s794, 1
      %s800 = scalar_select %p799, %s794, 1
      %s801 = smul.addr %s798, 2
      %s802 = sadd.s32 %s800, %s801
      %s803 = smul.addr %s796, 4
      %s804 = sadd.s32 %s802, %s803
      %s805 = smul.addr %s804, 8
      %s806 = scalar_lea.vmem %s14, %s805
      %s807 = smul.u32 2, %s42
      %v808 = vld [vmem:[%s713] sm:$0xff]
      %v809 = vld [vmem:[%s713 + $0x8] sm:$0xff]
      %v810 = vld [vmem:[%s729] sm:$0xff]
      %v811 = vld [vmem:[%s729 + $0x8] sm:$0xff]
      %v812 = vld [vmem:[%s738] sm:$0x1]
      %v813 = vld [vmem:[%s745] sm:$0x1]
      %v814 = vadd.f32 %v812, %v813
      %v815 = vld [vmem:[%s751] sm:$0xff]
      %v816 = vld [vmem:[%s751 + $0x8] sm:$0xff]
      %v817 = vld [vmem:[%s751 + $0x10] sm:$0xff]
      %v818 = vld [vmem:[%s751 + $0x18] sm:$0xff]
      %v819 = vld [vmem:[%s751 + $0x20] sm:$0xff]
      %v820 = vld [vmem:[%s751 + $0x28] sm:$0xff]
      %v821 = vld [vmem:[%s751 + $0x30] sm:$0xff]
      %v822 = vld [vmem:[%s751 + $0x38] sm:$0xff]
      %v823 = vld [vmem:[%s751 + $0x40] sm:$0xff]
      %v824 = vld [vmem:[%s751 + $0x48] sm:$0xff]
      %v825 = vld [vmem:[%s751 + $0x50] sm:$0xff]
      %v826 = vld [vmem:[%s751 + $0x58] sm:$0xff]
      %v827 = vld [vmem:[%s751 + $0x60] sm:$0xff]
      %v828 = vld [vmem:[%s751 + $0x68] sm:$0xff]
      %v829 = vld [vmem:[%s751 + $0x70] sm:$0xff]
      %v830 = vld [vmem:[%s751 + $0x78] sm:$0xff]
      %v831 = vld [vmem:[%s756] sm:$0x1]
      %832 = vmatprep.subr.mxu0 0.0
      %833 = vmatpush1.msra.mxu0 %v815
      %834 = vmatprep.subr.mxu0 0.0
      %835 = vmatpush1.msra.mxu0 %v816
      %836 = vmatprep.subr.mxu0 0.0
      %837 = vmatpush1.msra.mxu0 %v817
      %838 = vmatprep.subr.mxu0 0.0
      %839 = vmatpush1.msra.mxu0 %v818
      %840 = vmatprep.subr.mxu0 0.0
      %841 = vmatpush1.msra.mxu0 %v819
      %842 = vmatprep.subr.mxu0 0.0
      %843 = vmatpush1.msra.mxu0 %v820
      %844 = vmatprep.subr.mxu0 0.0
      %845 = vmatpush1.msra.mxu0 %v821
      %846 = vmatprep.subr.mxu0 0.0
      %847 = vmatpush1.msra.mxu0 %v822
      %848 = vmatprep.subr.mxu0 0.0
      %849 = vmatpush1.msra.mxu0 %v823
      %850 = vmatprep.subr.mxu0 0.0
      %851 = vmatpush1.msra.mxu0 %v824
      %852 = vmatprep.subr.mxu0 0.0
      %853 = vmatpush1.msra.mxu0 %v825
      %854 = vmatprep.subr.mxu0 0.0
      %855 = vmatpush1.msra.mxu0 %v826
      %856 = vmatprep.subr.mxu0 0.0
      %857 = vmatpush1.msra.mxu0 %v827
      %858 = vmatprep.subr.mxu0 0.0
      %859 = vmatpush1.msra.mxu0 %v828
      %860 = vmatprep.subr.mxu0 0.0
      %861 = vmatpush1.msra.mxu0 %v829
      %862 = vmatprep.subr.mxu0 0.0
      %863 = vmatpush1.msra.mxu0 %v830
      %864 = vmatprep.subr.mxu0 0.0
      %865 = vmatpush1.msra.mxu0 0.0
      %866 = vmatprep.subr.mxu0 0.0
      %867 = vmatpush1.msra.mxu0 0.0
      %868 = vmatprep.subr.mxu0 0.0
      %869 = vmatpush1.msra.mxu0 0.0
      %870 = vmatprep.subr.mxu0 0.0
      %871 = vmatpush1.msra.mxu0 0.0
      %872 = vmatprep.subr.mxu0 0.0
      %873 = vmatpush1.msra.mxu0 0.0
      %874 = vmatprep.subr.mxu0 0.0
      %875 = vmatpush1.msra.mxu0 0.0
      %876 = vmatprep.subr.mxu0 0.0
      %877 = vmatpush1.msra.mxu0 0.0
      %878 = vmatprep.subr.mxu0 0.0
      %879 = vmatpush1.msra.mxu0 0.0
      %880 = vmatprep.subr.mxu0 0.0
      %881 = vmatpush1.msra.mxu0 0.0
      %882 = vmatprep.subr.mxu0 0.0
      %883 = vmatpush1.msra.mxu0 0.0
      %884 = vmatprep.subr.mxu0 0.0
      %885 = vmatpush1.msra.mxu0 0.0
      %886 = vmatprep.subr.mxu0 0.0
      %887 = vmatpush1.msra.mxu0 0.0
      %888 = vmatprep.subr.mxu0 0.0
      %889 = vmatpush1.msra.mxu0 0.0
      %890 = vmatprep.subr.mxu0 0.0
      %891 = vmatpush1.msra.mxu0 0.0
      %892 = vmatprep.subr.mxu0 0.0
      %893 = vmatpush1.msra.mxu0 0.0
      %894 = vmatprep.subr.mxu0 0.0
      %895 = vmatpush1.msra.mxu0 0.0
      %896 = vmatprep.mubr.f32.mxu0 0.0
      %897 = vmatmul.mubr.f32.gmra.mrb[0].mxu0 %v814
      %v898 = vpop.f32.mrb[0].mxu0
      %v899 = vadd.f32 %v831, %v898
      %v900 = vpop.f32.mrb[0].mxu0
      %901 = vdwg.mxu0
      %v903 = vlaneseq
      %v904 = vshrl.u32 %v903, 7
      %v905 = vsub.s32 0, %v904
      %v906 = vrot.slane %v814, %v905
      %v908 = vadd.f32 %v808, %v906
      %v909 = vadd.f32 %v809, %v906
      %v910 = vld [vmem:[%s763] sm:$0xff]
      %v911 = vld [vmem:[%s763 + $0x8] sm:$0xff]
      %v912 = vld [vmem:[%s763 + $0x10] sm:$0xff]
      %v913 = vld [vmem:[%s763 + $0x18] sm:$0xff]
      %v914 = vld [vmem:[%s763 + $0x20] sm:$0xff]
      %v915 = vld [vmem:[%s763 + $0x28] sm:$0xff]
      %v916 = vld [vmem:[%s763 + $0x30] sm:$0xff]
      %v917 = vld [vmem:[%s763 + $0x38] sm:$0xff]
      %v918 = vld [vmem:[%s763 + $0x40] sm:$0xff]
      %v919 = vld [vmem:[%s763 + $0x48] sm:$0xff]
      %v920 = vld [vmem:[%s763 + $0x50] sm:$0xff]
      %v921 = vld [vmem:[%s763 + $0x58] sm:$0xff]
      %v922 = vld [vmem:[%s763 + $0x60] sm:$0xff]
      %v923 = vld [vmem:[%s763 + $0x68] sm:$0xff]
      %v924 = vld [vmem:[%s763 + $0x70] sm:$0xff]
      %v925 = vld [vmem:[%s763 + $0x78] sm:$0xff]
      %v926 = vld [vmem:[%s768] sm:$0x1]
      %v927 = vadd.f32 %v926, %v899
      %v929 = vlaneseq
      %v930 = vshrl.u32 %v929, 7
      %v931 = vsub.s32 0, %v930
      %v932 = vrot.slane %v927, %v931
      %934 = vmatprep.subr.mxu0 0.0
      %935 = vmatpush1.msra.mxu0 %v910
      %936 = vmatprep.subr.mxu0 0.0
      %937 = vmatpush1.msra.mxu0 %v911
      %938 = vmatprep.subr.mxu0 0.0
      %939 = vmatpush1.msra.mxu0 %v912
      %940 = vmatprep.subr.mxu0 0.0
      %941 = vmatpush1.msra.mxu0 %v913
      %942 = vmatprep.subr.mxu0 0.0
      %943 = vmatpush1.msra.mxu0 %v914
      %944 = vmatprep.subr.mxu0 0.0
      %945 = vmatpush1.msra.mxu0 %v915
      %946 = vmatprep.subr.mxu0 0.0
      %947 = vmatpush1.msra.mxu0 %v916
      %948 = vmatprep.subr.mxu0 0.0
      %949 = vmatpush1.msra.mxu0 %v917
      %950 = vmatprep.subr.mxu0 0.0
      %951 = vmatpush1.msra.mxu0 %v918
      %952 = vmatprep.subr.mxu0 0.0
      %953 = vmatpush1.msra.mxu0 %v919
      %954 = vmatprep.subr.mxu0 0.0
      %955 = vmatpush1.msra.mxu0 %v920
      %956 = vmatprep.subr.mxu0 0.0
      %957 = vmatpush1.msra.mxu0 %v921
      %958 = vmatprep.subr.mxu0 0.0
      %959 = vmatpush1.msra.mxu0 %v922
      %960 = vmatprep.subr.mxu0 0.0
      %961 = vmatpush1.msra.mxu0 %v923
      %962 = vmatprep.subr.mxu0 0.0
      %963 = vmatpush1.msra.mxu0 %v924
      %964 = vmatprep.subr.mxu0 0.0
      %965 = vmatpush1.msra.mxu0 %v925
      %966 = vmatprep.subr.mxu0 0.0
      %967 = vmatpush1.msra.mxu0 0.0
      %968 = vmatprep.subr.mxu0 0.0
      %969 = vmatpush1.msra.mxu0 0.0
      %970 = vmatprep.subr.mxu0 0.0
      %971 = vmatpush1.msra.mxu0 0.0
      %972 = vmatprep.subr.mxu0 0.0
      %973 = vmatpush1.msra.mxu0 0.0
      %974 = vmatprep.subr.mxu0 0.0
      %975 = vmatpush1.msra.mxu0 0.0
      %976 = vmatprep.subr.mxu0 0.0
      %977 = vmatpush1.msra.mxu0 0.0
      %978 = vmatprep.subr.mxu0 0.0
      %979 = vmatpush1.msra.mxu0 0.0
      %980 = vmatprep.subr.mxu0 0.0
      %981 = vmatpush1.msra.mxu0 0.0
      %982 = vmatprep.subr.mxu0 0.0
      %983 = vmatpush1.msra.mxu0 0.0
      %984 = vmatprep.subr.mxu0 0.0
      %985 = vmatpush1.msra.mxu0 0.0
      %986 = vmatprep.subr.mxu0 0.0
      %987 = vmatpush1.msra.mxu0 0.0
      %988 = vmatprep.subr.mxu0 0.0
      %989 = vmatpush1.msra.mxu0 0.0
      %990 = vmatprep.subr.mxu0 0.0
      %991 = vmatpush1.msra.mxu0 0.0
      %992 = vmatprep.subr.mxu0 0.0
      %993 = vmatpush1.msra.mxu0 0.0
      %994 = vmatprep.subr.mxu0 0.0
      %995 = vmatpush1.msra.mxu0 0.0
      %996 = vmatprep.subr.mxu0 0.0
      %997 = vmatpush1.msra.mxu0 0.0
      %998 = vmatprep.mubr.f32.mxu0 0.0
      %999 = vmatmul.mubr.f32.gmra.mrb[0].mxu0 %v908
      %v1000 = vpop.f32.mrb[0].mxu0
      %v1001 = vadd.f32 %v932, %v1000
      %v1002 = vpop.f32.mrb[0].mxu0
      %1003 = vmatprep.mubr.f32.mxu0 0.0
      %1004 = vmatmul.mubr.f32.gmra.mrb[0].mxu0 %v909
      %v1005 = vpop.f32.mrb[0].mxu0
      %v1006 = vadd.f32 %v932, %v1005
      %v1007 = vpop.f32.mrb[0].mxu0
      %1008 = vdwg.mxu0
      %v1009 = vmax.f32 %v1001, 0.0
      %v1010 = vmax.f32 %v1006, 0.0
      %v1011 = vld [vmem:[%s775] sm:$0xff]
      %v1012 = vld [vmem:[%s775 + $0x8] sm:$0xff]
      %v1013 = vld [vmem:[%s775 + $0x10] sm:$0xff]
      %v1014 = vld [vmem:[%s775 + $0x18] sm:$0xff]
      %v1015 = vld [vmem:[%s775 + $0x20] sm:$0xff]
      %v1016 = vld [vmem:[%s775 + $0x28] sm:$0xff]
      %v1017 = vld [vmem:[%s775 + $0x30] sm:$0xff]
      %v1018 = vld [vmem:[%s775 + $0x38] sm:$0xff]
      %v1019 = vld [vmem:[%s775 + $0x40] sm:$0xff]
      %v1020 = vld [vmem:[%s775 + $0x48] sm:$0xff]
      %v1021 = vld [vmem:[%s775 + $0x50] sm:$0xff]
      %v1022 = vld [vmem:[%s775 + $0x58] sm:$0xff]
      %v1023 = vld [vmem:[%s775 + $0x60] sm:$0xff]
      %v1024 = vld [vmem:[%s775 + $0x68] sm:$0xff]
      %v1025 = vld [vmem:[%s775 + $0x70] sm:$0xff]
      %v1026 = vld [vmem:[%s775 + $0x78] sm:$0xff]
      %v1027 = vld [vmem:[%s780] sm:$0x1]
      %v1029 = vlaneseq
      %v1030 = vshrl.u32 %v1029, 7
      %v1031 = vsub.s32 0, %v1030
      %v1032 = vrot.slane %v1027, %v1031
      %1034 = vmatprep.subr.mxu0 0.0
      %1035 = vmatpush1.msra.mxu0 %v1011
      %1036 = vmatprep.subr.mxu0 0.0
      %1037 = vmatpush1.msra.mxu0 %v1012
      %1038 = vmatprep.subr.mxu0 0.0
      %1039 = vmatpush1.msra.mxu0 %v1013
      %1040 = vmatprep.subr.mxu0 0.0
      %1041 = vmatpush1.msra.mxu0 %v1014
      %1042 = vmatprep.subr.mxu0 0.0
      %1043 = vmatpush1.msra.mxu0 %v1015
      %1044 = vmatprep.subr.mxu0 0.0
      %1045 = vmatpush1.msra.mxu0 %v1016
      %1046 = vmatprep.subr.mxu0 0.0
      %1047 = vmatpush1.msra.mxu0 %v1017
      %1048 = vmatprep.subr.mxu0 0.0
      %1049 = vmatpush1.msra.mxu0 %v1018
      %1050 = vmatprep.subr.mxu0 0.0
      %1051 = vmatpush1.msra.mxu0 %v1019
      %1052 = vmatprep.subr.mxu0 0.0
      %1053 = vmatpush1.msra.mxu0 %v1020
      %1054 = vmatprep.subr.mxu0 0.0
      %1055 = vmatpush1.msra.mxu0 %v1021
      %1056 = vmatprep.subr.mxu0 0.0
      %1057 = vmatpush1.msra.mxu0 %v1022
      %1058 = vmatprep.subr.mxu0 0.0
      %1059 = vmatpush1.msra.mxu0 %v1023
      %1060 = vmatprep.subr.mxu0 0.0
      %1061 = vmatpush1.msra.mxu0 %v1024
      %1062 = vmatprep.subr.mxu0 0.0
      %1063 = vmatpush1.msra.mxu0 %v1025
      %1064 = vmatprep.subr.mxu0 0.0
      %1065 = vmatpush1.msra.mxu0 %v1026
      %1066 = vmatprep.subr.mxu0 0.0
      %1067 = vmatpush1.msra.mxu0 0.0
      %1068 = vmatprep.subr.mxu0 0.0
      %1069 = vmatpush1.msra.mxu0 0.0
      %1070 = vmatprep.subr.mxu0 0.0
      %1071 = vmatpush1.msra.mxu0 0.0
      %1072 = vmatprep.subr.mxu0 0.0
      %1073 = vmatpush1.msra.mxu0 0.0
      %1074 = vmatprep.subr.mxu0 0.0
      %1075 = vmatpush1.msra.mxu0 0.0
      %1076 = vmatprep.subr.mxu0 0.0
      %1077 = vmatpush1.msra.mxu0 0.0
      %1078 = vmatprep.subr.mxu0 0.0
      %1079 = vmatpush1.msra.mxu0 0.0
      %1080 = vmatprep.subr.mxu0 0.0
      %1081 = vmatpush1.msra.mxu0 0.0
      %1082 = vmatprep.subr.mxu0 0.0
      %1083 = vmatpush1.msra.mxu0 0.0
      %1084 = vmatprep.subr.mxu0 0.0
      %1085 = vmatpush1.msra.mxu0 0.0
      %1086 = vmatprep.subr.mxu0 0.0
      %1087 = vmatpush1.msra.mxu0 0.0
      %1088 = vmatprep.subr.mxu0 0.0
      %1089 = vmatpush1.msra.mxu0 0.0
      %1090 = vmatprep.subr.mxu0 0.0
      %1091 = vmatpush1.msra.mxu0 0.0
      %1092 = vmatprep.subr.mxu0 0.0
      %1093 = vmatpush1.msra.mxu0 0.0
      %1094 = vmatprep.subr.mxu0 0.0
      %1095 = vmatpush1.msra.mxu0 0.0
      %1096 = vmatprep.subr.mxu0 0.0
      %1097 = vmatpush1.msra.mxu0 0.0
      %1098 = vmatprep.mubr.f32.mxu0 0.0
      %1099 = vmatmul.mubr.f32.gmra.mrb[0].mxu0 %v1009
      %v1100 = vpop.f32.mrb[0].mxu0
      %v1101 = vadd.f32 %v1032, %v1100
      %v1102 = vpop.f32.mrb[0].mxu0
      %1103 = vmatprep.mubr.f32.mxu0 0.0
      %1104 = vmatmul.mubr.f32.gmra.mrb[0].mxu0 %v1010
      %v1105 = vpop.f32.mrb[0].mxu0
      %v1106 = vadd.f32 %v1032, %v1105
      %v1107 = vpop.f32.mrb[0].mxu0
      %1108 = vdwg.mxu0
      %v1109 = vadd.f32 %v1101, %v908
      %v1110 = vadd.f32 %v1106, %v909
      %v1111 = vld [vmem:[%s787] sm:$0xff]
      %v1112 = vld [vmem:[%s787 + $0x8] sm:$0xff]
      %v1113 = vld [vmem:[%s787 + $0x10] sm:$0xff]
      %v1114 = vld [vmem:[%s787 + $0x18] sm:$0xff]
      %v1115 = vld [vmem:[%s787 + $0x20] sm:$0xff]
      %v1116 = vld [vmem:[%s787 + $0x28] sm:$0xff]
      %v1117 = vld [vmem:[%s787 + $0x30] sm:$0xff]
      %v1118 = vld [vmem:[%s787 + $0x38] sm:$0xff]
      %v1119 = vld [vmem:[%s787 + $0x40] sm:$0xff]
      %v1120 = vld [vmem:[%s787 + $0x48] sm:$0xff]
      %v1121 = vld [vmem:[%s787 + $0x50] sm:$0xff]
      %v1122 = vld [vmem:[%s787 + $0x58] sm:$0xff]
      %v1123 = vld [vmem:[%s787 + $0x60] sm:$0xff]
      %v1124 = vld [vmem:[%s787 + $0x68] sm:$0xff]
      %v1125 = vld [vmem:[%s787 + $0x70] sm:$0xff]
      %v1126 = vld [vmem:[%s787 + $0x78] sm:$0xff]
      %v1127 = vld [vmem:[%s792] sm:$0x1]
      %v1129 = vlaneseq
      %v1130 = vshrl.u32 %v1129, 7
      %v1131 = vsub.s32 0, %v1130
      %v1132 = vrot.slane %v1127, %v1131
      %1134 = vmatprep.subr.mxu0 0.0
      %1135 = vmatpush1.msra.mxu0 %v1111
      %1136 = vmatprep.subr.mxu0 0.0
      %1137 = vmatpush1.msra.mxu0 %v1112
      %1138 = vmatprep.subr.mxu0 0.0
      %1139 = vmatpush1.msra.mxu0 %v1113
      %1140 = vmatprep.subr.mxu0 0.0
      %1141 = vmatpush1.msra.mxu0 %v1114
      %1142 = vmatprep.subr.mxu0 0.0
      %1143 = vmatpush1.msra.mxu0 %v1115
      %1144 = vmatprep.subr.mxu0 0.0
      %1145 = vmatpush1.msra.mxu0 %v1116
      %1146 = vmatprep.subr.mxu0 0.0
      %1147 = vmatpush1.msra.mxu0 %v1117
      %1148 = vmatprep.subr.mxu0 0.0
      %1149 = vmatpush1.msra.mxu0 %v1118
      %1150 = vmatprep.subr.mxu0 0.0
      %1151 = vmatpush1.msra.mxu0 %v1119
      %1152 = vmatprep.subr.mxu0 0.0
      %1153 = vmatpush1.msra.mxu0 %v1120
      %1154 = vmatprep.subr.mxu0 0.0
      %1155 = vmatpush1.msra.mxu0 %v1121
      %1156 = vmatprep.subr.mxu0 0.0
      %1157 = vmatpush1.msra.mxu0 %v1122
      %1158 = vmatprep.subr.mxu0 0.0
      %1159 = vmatpush1.msra.mxu0 %v1123
      %1160 = vmatprep.subr.mxu0 0.0
      %1161 = vmatpush1.msra.mxu0 %v1124
      %1162 = vmatprep.subr.mxu0 0.0
      %1163 = vmatpush1.msra.mxu0 %v1125
      %1164 = vmatprep.subr.mxu0 0.0
      %1165 = vmatpush1.msra.mxu0 %v1126
      %1166 = vmatprep.subr.mxu0 0.0
      %1167 = vmatpush1.msra.mxu0 0.0
      %1168 = vmatprep.subr.mxu0 0.0
      %1169 = vmatpush1.msra.mxu0 0.0
      %1170 = vmatprep.subr.mxu0 0.0
      %1171 = vmatpush1.msra.mxu0 0.0
      %1172 = vmatprep.subr.mxu0 0.0
      %1173 = vmatpush1.msra.mxu0 0.0
      %1174 = vmatprep.subr.mxu0 0.0
      %1175 = vmatpush1.msra.mxu0 0.0
      %1176 = vmatprep.subr.mxu0 0.0
      %1177 = vmatpush1.msra.mxu0 0.0
      %1178 = vmatprep.subr.mxu0 0.0
      %1179 = vmatpush1.msra.mxu0 0.0
      %1180 = vmatprep.subr.mxu0 0.0
      %1181 = vmatpush1.msra.mxu0 0.0
      %1182 = vmatprep.subr.mxu0 0.0
      %1183 = vmatpush1.msra.mxu0 0.0
      %1184 = vmatprep.subr.mxu0 0.0
      %1185 = vmatpush1.msra.mxu0 0.0
      %1186 = vmatprep.subr.mxu0 0.0
      %1187 = vmatpush1.msra.mxu0 0.0
      %1188 = vmatprep.subr.mxu0 0.0
      %1189 = vmatpush1.msra.mxu0 0.0
      %1190 = vmatprep.subr.mxu0 0.0
      %1191 = vmatpush1.msra.mxu0 0.0
      %1192 = vmatprep.subr.mxu0 0.0
      %1193 = vmatpush1.msra.mxu0 0.0
      %1194 = vmatprep.subr.mxu0 0.0
      %1195 = vmatpush1.msra.mxu0 0.0
      %1196 = vmatprep.subr.mxu0 0.0
      %1197 = vmatpush1.msra.mxu0 0.0
      %1198 = vmatprep.mubr.f32.mxu0 0.0
      %1199 = vmatmul.mubr.f32.gmra.mrb[0].mxu0 %v1109
      %v1200 = vpop.f32.mrb[0].mxu0
      %v1201 = vadd.f32 %v1132, %v1200
      %v1202 = vpop.f32.mrb[0].mxu0
      %1203 = vmatprep.mubr.f32.mxu0 0.0
      %1204 = vmatmul.mubr.f32.gmra.mrb[0].mxu0 %v1110
      %v1205 = vpop.f32.mrb[0].mxu0
      %v1206 = vadd.f32 %v1132, %v1205
      %v1207 = vpop.f32.mrb[0].mxu0
      %1208 = vdwg.mxu0
      %1210 = vset.pattern.permute.xlu0 0
      %1211 = vperm.xlu0 %1210, %v810
      %v1212 = vpop.permute.xlu0 %1211
      %1215 = vset.pattern.permute.xlu0 0
      %1216 = vperm.xlu0 %1215, %v811
      %v1217 = vpop.permute.xlu0 %1216
      %v1219 = vmul.f32 %v1201, %v1212
      %v1220 = vmul.f32 %v1206, %v1217
      %1221 = vst [vmem:[%s806] sm:$0xff] %v1219
      %1222 = vst [vmem:[%s806 + $0x8] sm:$0xff] %v1220
      %s1223 = smul.u32 2, %s42
      %p1224 = scmp.lt.s32.totalorder %s40, 3
      %s1225 = scalar_select %p1224, %s40, 3
      %p1226 = scmp.lt.s32.totalorder %s41, 1
      %s1227 = scalar_select %p1226, %s41, 1
      %p1228 = scmp.lt.s32.totalorder %s1223, 1
      %s1229 = scalar_select %p1228, %s1223, 1
      %s1230 = smul.addr %s1227, 2
      %s1231 = sadd.s32 %s1229, %s1230
      %s1232 = smul.addr %s1225, 4
      %s1233 = sadd.s32 %s1231, %s1232
      %s1234 = smul.addr %s1233, 8
      %s1235 = scalar_lea.vmem %s14, %s1234
      // Predicated region
      $region69: #{ei_network_forward.12} parent=67 // pred_check
        %p1236 = pneg %p420
      $region70: #{ei_network_forward.12} parent=67 // pred_check_branch
        %1238 = sbr.rel (%p1236) target = $region72
      $region71: #{ei_network_forward.12} parent=67 // pred_region
        %s1239 = smul.u32 2, %s42
      $region72: #{ei_network_forward.12} parent=67 // pred_fallthru
        _
    $region68: #{ei_network_forward.12} parent=5 // pred_fallthru
      _
    %p1240 = scmp.le.s32.totalorder 2, %s30
    // Predicated region
    $region73: #{ei_network_forward.12} parent=5 // pred_check
      %p1241 = pneg %p1240
    $region74: #{ei_network_forward.12} parent=5 // pred_check_branch
      %1243 = sbr.rel (%p1241) target = $region76
    $region75: #{ei_network_forward.12} parent=5 // pred_region
      %s1244 = ssub.s32 %s30, 2
      // Predicated region
      $region77: #{ei_network_forward.12} parent=75 // pred_check
        %p1245 = pneg %p426
      $region78: #{ei_network_forward.12} parent=75 // pred_check_branch
        %1247 = sbr.rel (%p1245) target = $region80
      $region79: #{ei_network_forward.12} parent=75 // pred_region
        %s1248 = smul.u32 2, %s45
        %p1249 = scmp.lt.s32.totalorder %s43, 3
        %s1250 = scalar_select %p1249, %s43, 3
        %p1251 = scmp.lt.s32.totalorder %s44, 1
        %s1252 = scalar_select %p1251, %s44, 1
        %p1253 = scmp.lt.s32.totalorder %s1248, 1
        %s1254 = scalar_select %p1253, %s1248, 1
        %s1255 = smul.addr %s1252, 2
        %s1256 = sadd.s32 %s1254, %s1255
        %s1257 = smul.addr %s1250, 4
        %s1258 = sadd.s32 %s1256, %s1257
        %s1259 = smul.addr %s1258, 8
        %s1260 = scalar_lea.vmem %s14, %s1259
      $region80: #{ei_network_forward.12} parent=75 // pred_fallthru
        _
    $region76: #{ei_network_forward.12} parent=5 // pred_fallthru
      _
  $region6: #{ei_network_forward.12} parent=0 // loop_footer
    %s34 = sadd.s32 1, %s30
  $region7: #{ei_network_forward.12} parent=0 // loop_footer_branch
    %29 = sbr.rel target = $region3
  $region8: #{ei_network_forward.12} parent=0 // loop_exit
    _

// kernel: ei_network_forward.14
$region0: #{ei_network_forward.14}
  #allocation0 [shape = 'u32[]', space=smem, size = 0x4, offset = 0x4, fixed_abs, tag = 'smem constant byte address 0x4 - core index']
  #allocation1 [shape = 'u32[144,128]{1,0:T(1,128)}', space=vmem, size = 0x12000, scoped, tag = 'internal scratch']
  %s0 = inlined_call_operand.vmem [shape: f32[2,16,16], index: 0, kind: input, shape index: {}]
  %s1 = inlined_call_operand.vmem [shape: f32[16,128], index: 1, kind: input, shape index: {}]
  %s2 = inlined_call_operand.vmem [shape: f32[1,128], index: 2, kind: input, shape index: {}]
  %s3 = inlined_call_operand.vmem [shape: f32[128,384], index: 3, kind: input, shape index: {}]
  %s4 = inlined_call_operand.vmem [shape: f32[1,384], index: 4, kind: input, shape index: {}]
  %s5 = inlined_call_operand.vmem [shape: f32[2,128], index: 5, kind: output, shape index: {0}]
  %s6 = inlined_call_operand.vmem [shape: f32[2,384], index: 6, kind: output, shape index: {1}]
  %s7 = inlined_call_operand.hbm [shape: f32[2,16], index: 7, kind: output, shape index: {2}]
  %8 = xla_tuple %s5, %s6, %s7
  %s9 = sld [smem:[#allocation0]]
  $region46: #{ei_network_forward.14} parent=0
    _
  %s11 = ssub.s32 1, %s9
  %s12 = scalar_select 0, %s11, %s9
  $region1: #{ei_network_forward.14} parent=0
    #allocation2 [shape = 'u8[1024]{0}', space=vmem, size = 0x400, scoped, tag = 'output window, operand 2, single buffered']
    #allocation3 [shape = 's32[1]{0}', space=sflag, size = 0x4, scoped, tag = 'scoped memory for ei_network_forward.14']
    %13 = vsyncpa [#allocation3], 0
    // Predicated region
    $region2: #{ei_network_forward.14} parent=1 // pred_check
      _
    $region3: #{ei_network_forward.14} parent=1 // pred_check_branch
      %15 = sbr.rel (0) target = $region5
    $region4: #{ei_network_forward.14} parent=1 // pred_region
      _
    $region5: #{ei_network_forward.14} parent=1 // pred_fallthru
      _
    // Predicated region
    $region6: #{ei_network_forward.14} parent=1 // pred_check
      _
    $region7: #{ei_network_forward.14} parent=1 // pred_check_branch
      %17 = sbr.rel (0) target = $region9
    $region8: #{ei_network_forward.14} parent=1 // pred_region
      _
    $region9: #{ei_network_forward.14} parent=1 // pred_fallthru
      _
    // Predicated region
    $region10: #{ei_network_forward.14} parent=1 // pred_check
      _
    $region11: #{ei_network_forward.14} parent=1 // pred_check_branch
      %19 = sbr.rel (0) target = $region13
    $region12: #{ei_network_forward.14} parent=1 // pred_region
      _
    $region13: #{ei_network_forward.14} parent=1 // pred_fallthru
      _
    // Predicated region
    $region14: #{ei_network_forward.14} parent=1 // pred_check
      _
    $region15: #{ei_network_forward.14} parent=1 // pred_check_branch
      %21 = sbr.rel (0) target = $region17
    $region16: #{ei_network_forward.14} parent=1 // pred_region
      _
    $region17: #{ei_network_forward.14} parent=1 // pred_fallthru
      _
    // Predicated region
    $region18: #{ei_network_forward.14} parent=1 // pred_check
      _
    $region19: #{ei_network_forward.14} parent=1 // pred_check_branch
      %23 = sbr.rel (0) target = $region21
    $region20: #{ei_network_forward.14} parent=1 // pred_region
      _
    $region21: #{ei_network_forward.14} parent=1 // pred_fallthru
      _
    %v24 = vld [vmem:[%s0] sm:$0xff]
    %v25 = vld [vmem:[%s0 + $0x8] sm:$0xff]
    %v26 = vld [vmem:[%s0 + $0x10] sm:$0xff]
    %v27 = vld [vmem:[%s0 + $0x18] sm:$0xff]
    %v28 = vand.u32 2147483647, %v24
    %v29 = vand.u32 2147483647, %v25
    %v30 = vand.u32 2147483647, %v26
    %v31 = vand.u32 2147483647, %v27
    %vm32 = vcmask 130048
    %v33 = vsel %vm32, %v28, 0.0
    %34 = vadd.xlane.f32.xlu0 %v33
    %v35 = vpop.xlane.xlu0 %34
    %v36 = vsel %vm32, %v29, 0.0
    %37 = vadd.xlane.f32.xlu0 %v36
    %v38 = vpop.xlane.xlu0 %37
    %v39 = vsel %vm32, %v30, 0.0
    %40 = vadd.xlane.f32.xlu0 %v39
    %v41 = vpop.xlane.xlu0 %40
    %v42 = vsel %vm32, %v31, 0.0
    %43 = vadd.xlane.f32.xlu0 %v42
    %v44 = vpop.xlane.xlu0 %43
    %vm45 = vcmp.gt.f32.partialorder %v35, 0.0
    %vm46 = vcmp.gt.f32.partialorder %v38, 0.0
    %vm47 = vcmp.gt.f32.partialorder %v41, 0.0
    %vm48 = vcmp.gt.f32.partialorder %v44, 0.0
    %v49 = vsel %vm45, 1, 0
    %v50 = vsel %vm46, 1, 0
    %v51 = vsel %vm47, 1, 0
    %v52 = vsel %vm48, 1, 0
    %v53 = vcvt.s32.f32 %v49
    %v54 = vcvt.s32.f32 %v50
    %v55 = vcvt.s32.f32 %v51
    %v56 = vcvt.s32.f32 %v52
    %v61 = vlaneseq
    %v62 = vand.u32 %v61, 127
    %v63 = vlaneseq
    %v64 = vshrl.u32 %v63, 7
    %v65 = vsub.s32 %v62, %v64
    %v66 = vrot.slane %v53, %v65
    %v67 = vadd.s32 %v62, 4294967288
    %v68 = vlaneseq
    %v69 = vshrl.u32 %v68, 7
    %v70 = vsub.s32 %v67, %v69
    %v71 = vrot.slane %v54, %v70
    %vm72 = vcmask 130112
    %v73 = vsel %vm72, %v71, %v66
    %v74 = vlaneseq
    %v75 = vshrl.u32 %v74, 7
    %v76 = vsub.s32 %v62, %v75
    %v77 = vrot.slane %v55, %v76
    %v78 = vlaneseq
    %v79 = vshrl.u32 %v78, 7
    %v80 = vsub.s32 %v67, %v79
    %v81 = vrot.slane %v56, %v80
    %v82 = vsel %vm72, %v81, %v77
    %vm83 = vcmask 1041409
    %v84 = vsel %vm83, %v82, %v73
    %vm86 = vcmask 123904
    %87 = vst.msk [vmem:[#allocation2] sm:$0x3] %vm86, %v84
    %v88 = vsel %vm32, %v24, 0.0
    %v89 = vsel %vm32, %v25, 0.0
    %v90 = vadd.f32 %v88, %v89
    %v91 = vrot.slane %v90, 4
    %v92 = vadd.f32 %v90, %v91
    %v93 = vrot.slane %v92, 2
    %v94 = vadd.f32 %v92, %v93
    %v95 = vrot.slane %v94, 1
    %v96 = vadd.f32 %v94, %v95
    %v97 = vsel %vm32, %v26, 0.0
    %v98 = vsel %vm32, %v27, 0.0
    %v99 = vadd.f32 %v97, %v98
    %v100 = vrot.slane %v99, 4
    %v101 = vadd.f32 %v99, %v100
    %v102 = vrot.slane %v101, 2
    %v103 = vadd.f32 %v101, %v102
    %v104 = vrot.slane %v103, 1
    %v105 = vadd.f32 %v103, %v104
    %v106 = vmul.f32 %v96, 0.0625
    %v107 = vmul.f32 %v105, 0.0625
    %v108 = vld [vmem:[%s1] sm:$0xff]
    %v109 = vld [vmem:[%s1 + $0x8] sm:$0xff]
    %v110 = vld [vmem:[%s2] sm:$0x1]
    %v112 = vlaneseq
    %v113 = vshrl.u32 %v112, 7
    %v114 = vsub.s32 0, %v113
    %v115 = vrot.slane %v110, %v114
    %v119 = vsel %vm83, %v107, %v106
    %v120 = vsel %vm32, %v119, 0
    %122 = vmatprep.subr.mxu0 0.0
    %123 = vmatpush1.msra.mxu0 %v108
    %124 = vmatprep.subr.mxu0 0.0
    %125 = vmatpush1.msra.mxu0 %v109
    %126 = vmatprep.subr.mxu0 0.0
    %127 = vmatpush1.msra.mxu0 0.0
    %128 = vmatprep.subr.mxu0 0.0
    %129 = vmatpush1.msra.mxu0 0.0
    %130 = vmatprep.subr.mxu0 0.0
    %131 = vmatpush1.msra.mxu0 0.0
    %132 = vmatprep.subr.mxu0 0.0
    %133 = vmatpush1.msra.mxu0 0.0
    %134 = vmatprep.subr.mxu0 0.0
    %135 = vmatpush1.msra.mxu0 0.0
    %136 = vmatprep.subr.mxu0 0.0
    %137 = vmatpush1.msra.mxu0 0.0
    %138 = vmatprep.subr.mxu0 0.0
    %139 = vmatpush1.msra.mxu0 0.0
    %140 = vmatprep.subr.mxu0 0.0
    %141 = vmatpush1.msra.mxu0 0.0
    %142 = vmatprep.subr.mxu0 0.0
    %143 = vmatpush1.msra.mxu0 0.0
    %144 = vmatprep.subr.mxu0 0.0
    %145 = vmatpush1.msra.mxu0 0.0
    %146 = vmatprep.subr.mxu0 0.0
    %147 = vmatpush1.msra.mxu0 0.0
    %148 = vmatprep.subr.mxu0 0.0
    %149 = vmatpush1.msra.mxu0 0.0
    %150 = vmatprep.subr.mxu0 0.0
    %151 = vmatpush1.msra.mxu0 0.0
    %152 = vmatprep.subr.mxu0 0.0
    %153 = vmatpush1.msra.mxu0 0.0
    %154 = vmatprep.subr.mxu0 0.0
    %155 = vmatpush1.msra.mxu0 0.0
    %156 = vmatprep.subr.mxu0 0.0
    %157 = vmatpush1.msra.mxu0 0.0
    %158 = vmatprep.subr.mxu0 0.0
    %159 = vmatpush1.msra.mxu0 0.0
    %160 = vmatprep.subr.mxu0 0.0
    %161 = vmatpush1.msra.mxu0 0.0
    %162 = vmatprep.subr.mxu0 0.0
    %163 = vmatpush1.msra.mxu0 0.0
    %164 = vmatprep.subr.mxu0 0.0
    %165 = vmatpush1.msra.mxu0 0.0
    %166 = vmatprep.subr.mxu0 0.0
    %167 = vmatpush1.msra.mxu0 0.0
    %168 = vmatprep.subr.mxu0 0.0
    %169 = vmatpush1.msra.mxu0 0.0
    %170 = vmatprep.subr.mxu0 0.0
    %171 = vmatpush1.msra.mxu0 0.0
    %172 = vmatprep.subr.mxu0 0.0
    %173 = vmatpush1.msra.mxu0 0.0
    %174 = vmatprep.subr.mxu0 0.0
    %175 = vmatpush1.msra.mxu0 0.0
    %176 = vmatprep.subr.mxu0 0.0
    %177 = vmatpush1.msra.mxu0 0.0
    %178 = vmatprep.subr.mxu0 0.0
    %179 = vmatpush1.msra.mxu0 0.0
    %180 = vmatprep.subr.mxu0 0.0
    %181 = vmatpush1.msra.mxu0 0.0
    %182 = vmatprep.subr.mxu0 0.0
    %183 = vmatpush1.msra.mxu0 0.0
    %184 = vmatprep.subr.mxu0 0.0
    %185 = vmatpush1.msra.mxu0 0.0
    %186 = vmatprep.mubr.f32.mxu0 0.0
    %187 = vmatmul.mubr.f32.gmra.mrb[0].mxu0 %v120
    %v188 = vpop.f32.mrb[0].mxu0
    %v189 = vadd.f32 %v115, %v188
    %v190 = vpop.f32.mrb[0].mxu0
    %191 = vdwg.mxu0
    %v192 = vtanh.pop %v189
    %193 = vst [vmem:[%s5] sm:$0x3] %v192
    %v194 = vld [vmem:[%s3] sm:$0xff]
    %v195 = vld [vmem:[%s3 + $0x8] sm:$0xff]
    %v196 = vld [vmem:[%s3 + $0x10] sm:$0xff]
    %v197 = vld [vmem:[%s3 + $0x18] sm:$0xff]
    %v198 = vld [vmem:[%s3 + $0x20] sm:$0xff]
    %v199 = vld [vmem:[%s3 + $0x28] sm:$0xff]
    %v200 = vld [vmem:[%s3 + $0x30] sm:$0xff]
    %v201 = vld [vmem:[%s3 + $0x38] sm:$0xff]
    %v202 = vld [vmem:[%s3 + $0x40] sm:$0xff]
    %v203 = vld [vmem:[%s3 + $0x48] sm:$0xff]
    %v204 = vld [vmem:[%s3 + $0x50] sm:$0xff]
    %v205 = vld [vmem:[%s3 + $0x58] sm:$0xff]
    %v206 = vld [vmem:[%s3 + $0x60] sm:$0xff]
    %v207 = vld [vmem:[%s3 + $0x68] sm:$0xff]
    %v208 = vld [vmem:[%s3 + $0x70] sm:$0xff]
    %v209 = vld [vmem:[%s3 + $0x78] sm:$0xff]
    %v210 = vld [vmem:[%s3 + $0x80] sm:$0xff]
    %v211 = vld [vmem:[%s3 + $0x88] sm:$0xff]
    %v212 = vld [vmem:[%s3 + $0x90] sm:$0xff]
    %v213 = vld [vmem:[%s3 + $0x98] sm:$0xff]
    %v214 = vld [vmem:[%s3 + $0xa0] sm:$0xff]
    %v215 = vld [vmem:[%s3 + $0xa8] sm:$0xff]
    %v216 = vld [vmem:[%s3 + $0xb0] sm:$0xff]
    %v217 = vld [vmem:[%s3 + $0xb8] sm:$0xff]
    %v218 = vld [vmem:[%s3 + $0xc0] sm:$0xff]
    %v219 = vld [vmem:[%s3 + $0xc8] sm:$0xff]
    %v220 = vld [vmem:[%s3 + $0xd0] sm:$0xff]
    %v221 = vld [vmem:[%s3 + $0xd8] sm:$0xff]
    %v222 = vld [vmem:[%s3 + $0xe0] sm:$0xff]
    %v223 = vld [vmem:[%s3 + $0xe8] sm:$0xff]
    %v224 = vld [vmem:[%s3 + $0xf0] sm:$0xff]
    %v225 = vld [vmem:[%s3 + $0xf8] sm:$0xff]
    %v226 = vld [vmem:[%s3 + $0x100] sm:$0xff]
    %v227 = vld [vmem:[%s3 + $0x108] sm:$0xff]
    %v228 = vld [vmem:[%s3 + $0x110] sm:$0xff]
    %v229 = vld [vmem:[%s3 + $0x118] sm:$0xff]
    %v230 = vld [vmem:[%s3 + $0x120] sm:$0xff]
    %v231 = vld [vmem:[%s3 + $0x128] sm:$0xff]
    %v232 = vld [vmem:[%s3 + $0x130] sm:$0xff]
    %v233 = vld [vmem:[%s3 + $0x138] sm:$0xff]
    %v234 = vld [vmem:[%s3 + $0x140] sm:$0xff]
    %v235 = vld [vmem:[%s3 + $0x148] sm:$0xff]
    %v236 = vld [vmem:[%s3 + $0x150] sm:$0xff]
    %v237 = vld [vmem:[%s3 + $0x158] sm:$0xff]
    %v238 = vld [vmem:[%s3 + $0x160] sm:$0xff]
    %v239 = vld [vmem:[%s3 + $0x168] sm:$0xff]
    %v240 = vld [vmem:[%s3 + $0x170] sm:$0xff]
    %v241 = vld [vmem:[%s3 + $0x178] sm:$0xff]
    %v242 = vld [vmem:[%s4] sm:$0x7]
    %v244 = vlaneseq
    %v245 = vshrl.u32 %v244, 7
    %v246 = vsub.s32 0, %v245
    %v247 = vrot.slane %v242, %v246
    %v248 = vlaneseq
    %v249 = vshrl.u32 %v248, 7
    %v250 = vsub.s32 1, %v249
    %v251 = vrot.slane %v242, %v250
    %v252 = vlaneseq
    %v253 = vshrl.u32 %v252, 7
    %v254 = vsub.s32 2, %v253
    %v255 = vrot.slane %v242, %v254
    %259 = vmatprep.subr.mxu0 %v195
    %260 = vmatpush1.msra.mxu0 %v194
    %261 = vmatprep.subr.mxu0 %v198
    %262 = vmatpush1.msra.mxu0 %v197
    %263 = vmatprep.subr.mxu0 %v201
    %264 = vmatpush1.msra.mxu0 %v200
    %265 = vmatprep.subr.mxu0 %v204
    %266 = vmatpush1.msra.mxu0 %v203
    %267 = vmatprep.subr.mxu0 %v207
    %268 = vmatpush1.msra.mxu0 %v206
    %269 = vmatprep.subr.mxu0 %v210
    %270 = vmatpush1.msra.mxu0 %v209
    %271 = vmatprep.subr.mxu0 %v213
    %272 = vmatpush1.msra.mxu0 %v212
    %273 = vmatprep.subr.mxu0 %v216
    %274 = vmatpush1.msra.mxu0 %v215
    %275 = vmatprep.subr.mxu0 %v219
    %276 = vmatpush1.msra.mxu0 %v218
    %277 = vmatprep.subr.mxu0 %v222
    %278 = vmatpush1.msra.mxu0 %v221
    %279 = vmatprep.subr.mxu0 %v225
    %280 = vmatpush1.msra.mxu0 %v224
    %281 = vmatprep.subr.mxu0 %v228
    %282 = vmatpush1.msra.mxu0 %v227
    %283 = vmatprep.subr.mxu0 %v231
    %284 = vmatpush1.msra.mxu0 %v230
    %285 = vmatprep.subr.mxu0 %v234
    %286 = vmatpush1.msra.mxu0 %v233
    %287 = vmatprep.subr.mxu0 %v237
    %288 = vmatpush1.msra.mxu0 %v236
    %289 = vmatprep.subr.mxu0 %v240
    %290 = vmatpush1.msra.mxu0 %v239
    %291 = vmatprep.subr.mxu0 0.0
    %292 = vmatpush1.msra.mxu0 0.0
    %293 = vmatprep.subr.mxu0 0.0
    %294 = vmatpush1.msra.mxu0 0.0
    %295 = vmatprep.subr.mxu0 0.0
    %296 = vmatpush1.msra.mxu0 0.0
    %297 = vmatprep.subr.mxu0 0.0
    %298 = vmatpush1.msra.mxu0 0.0
    %299 = vmatprep.subr.mxu0 0.0
    %300 = vmatpush1.msra.mxu0 0.0
    %301 = vmatprep.subr.mxu0 0.0
    %302 = vmatpush1.msra.mxu0 0.0
    %303 = vmatprep.subr.mxu0 0.0
    %304 = vmatpush1.msra.mxu0 0.0
    %305 = vmatprep.subr.mxu0 0.0
    %306 = vmatpush1.msra.mxu0 0.0
    %307 = vmatprep.subr.mxu0 0.0
    %308 = vmatpush1.msra.mxu0 0.0
    %309 = vmatprep.subr.mxu0 0.0
    %310 = vmatpush1.msra.mxu0 0.0
    %311 = vmatprep.subr.mxu0 0.0
    %312 = vmatpush1.msra.mxu0 0.0
    %313 = vmatprep.subr.mxu0 0.0
    %314 = vmatpush1.msra.mxu0 0.0
    %315 = vmatprep.subr.mxu0 0.0
    %316 = vmatpush1.msra.mxu0 0.0
    %317 = vmatprep.subr.mxu0 0.0
    %318 = vmatpush1.msra.mxu0 0.0
    %319 = vmatprep.subr.mxu0 0.0
    %320 = vmatpush1.msra.mxu0 0.0
    %321 = vmatprep.subr.mxu0 0.0
    %322 = vmatpush1.msra.mxu0 0.0
    %323 = vmatprep.mubr.f32.mxu0 0.0
    %324 = vmatmul.mubr.f32.gmra.mrb[0].mxu0 %v192
    %v325 = vpop.f32.mrb[0].mxu0
    %v326 = vadd.f32 %v247, %v325
    %v327 = vpop.f32.mrb[0].mxu0
    %v328 = vadd.f32 %v251, %v327
    %329 = vdwg.mxu0
    %330 = vmatprep.subr.mxu0 0.0
    %331 = vmatpush1.msra.mxu0 %v196
    %332 = vmatprep.subr.mxu0 0.0
    %333 = vmatpush1.msra.mxu0 %v199
    %334 = vmatprep.subr.mxu0 0.0
    %335 = vmatpush1.msra.mxu0 %v202
    %336 = vmatprep.subr.mxu0 0.0
    %337 = vmatpush1.msra.mxu0 %v205
    %338 = vmatprep.subr.mxu0 0.0
    %339 = vmatpush1.msra.mxu0 %v208
    %340 = vmatprep.subr.mxu0 0.0
    %341 = vmatpush1.msra.mxu0 %v211
    %342 = vmatprep.subr.mxu0 0.0
    %343 = vmatpush1.msra.mxu0 %v214
    %344 = vmatprep.subr.mxu0 0.0
    %345 = vmatpush1.msra.mxu0 %v217
    %346 = vmatprep.subr.mxu0 0.0
    %347 = vmatpush1.msra.mxu0 %v220
    %348 = vmatprep.subr.mxu0 0.0
    %349 = vmatpush1.msra.mxu0 %v223
    %350 = vmatprep.subr.mxu0 0.0
    %351 = vmatpush1.msra.mxu0 %v226
    %352 = vmatprep.subr.mxu0 0.0
    %353 = vmatpush1.msra.mxu0 %v229
    %354 = vmatprep.subr.mxu0 0.0
    %355 = vmatpush1.msra.mxu0 %v232
    %356 = vmatprep.subr.mxu0 0.0
    %357 = vmatpush1.msra.mxu0 %v235
    %358 = vmatprep.subr.mxu0 0.0
    %359 = vmatpush1.msra.mxu0 %v238
    %360 = vmatprep.subr.mxu0 0.0
    %361 = vmatpush1.msra.mxu0 %v241
    %362 = vmatprep.subr.mxu0 0.0
    %363 = vmatpush1.msra.mxu0 0.0
    %364 = vmatprep.subr.mxu0 0.0
    %365 = vmatpush1.msra.mxu0 0.0
    %366 = vmatprep.subr.mxu0 0.0
    %367 = vmatpush1.msra.mxu0 0.0
    %368 = vmatprep.subr.mxu0 0.0
    %369 = vmatpush1.msra.mxu0 0.0
    %370 = vmatprep.subr.mxu0 0.0
    %371 = vmatpush1.msra.mxu0 0.0
    %372 = vmatprep.subr.mxu0 0.0
    %373 = vmatpush1.msra.mxu0 0.0
    %374 = vmatprep.subr.mxu0 0.0
    %375 = vmatpush1.msra.mxu0 0.0
    %376 = vmatprep.subr.mxu0 0.0
    %377 = vmatpush1.msra.mxu0 0.0
    %378 = vmatprep.subr.mxu0 0.0
    %379 = vmatpush1.msra.mxu0 0.0
    %380 = vmatprep.subr.mxu0 0.0
    %381 = vmatpush1.msra.mxu0 0.0
    %382 = vmatprep.subr.mxu0 0.0
    %383 = vmatpush1.msra.mxu0 0.0
    %384 = vmatprep.subr.mxu0 0.0
    %385 = vmatpush1.msra.mxu0 0.0
    %386 = vmatprep.subr.mxu0 0.0
    %387 = vmatpush1.msra.mxu0 0.0
    %388 = vmatprep.subr.mxu0 0.0
    %389 = vmatpush1.msra.mxu0 0.0
    %390 = vmatprep.subr.mxu0 0.0
    %391 = vmatpush1.msra.mxu0 0.0
    %392 = vmatprep.subr.mxu0 0.0
    %393 = vmatpush1.msra.mxu0 0.0
    %394 = vmatprep.mubr.f32.mxu0 0.0
    %395 = vmatmul.mubr.f32.gmra.mrb[0].mxu0 %v192
    %v396 = vpop.f32.mrb[0].mxu0
    %v397 = vadd.f32 %v255, %v396
    %v398 = vpop.f32.mrb[0].mxu0
    %399 = vdwg.mxu0
    %v403 = vcombine.low %v326, %v328
    %v405 = vunpack.c.l.s4 1983009808
    %v406 = vunpack.c.0.s8 %v405
    %v407 = vlaneseq
    %v408 = vshrl.u32 %v407, 7
    %v409 = vsub.s32 %v406, %v408
    %v410 = vrot.slane %v403, %v409
    %v412 = vunpack.c.l.s4 1983009808
    %v413 = vunpack.c.0.s8 %v412
    %v414 = vlaneseq
    %v415 = vshrl.u32 %v414, 7
    %v416 = vsub.s32 %v413, %v415
    %v417 = vrot.slane %v397, %v416
    %v418 = vcombine.low %v410, %v417
    %420 = vst [vmem:[%s6] sm:$0x3f] %v418
    // Predicated region
    $region22: #{ei_network_forward.14} parent=1 // pred_check
      _
    $region23: #{ei_network_forward.14} parent=1 // pred_check_branch
      %422 = sbr.rel (0) target = $region25
    $region24: #{ei_network_forward.14} parent=1 // pred_region
      _
    $region25: #{ei_network_forward.14} parent=1 // pred_fallthru
      _
    // Predicated region
    $region26: #{ei_network_forward.14} parent=1 // pred_check
      _
    $region27: #{ei_network_forward.14} parent=1 // pred_check_branch
      %424 = sbr.rel (0) target = $region29
    $region28: #{ei_network_forward.14} parent=1 // pred_region
      _
    $region29: #{ei_network_forward.14} parent=1 // pred_fallthru
      _
    // Predicated region
    $region30: #{ei_network_forward.14} parent=1 // pred_check
      _
    $region31: #{ei_network_forward.14} parent=1 // pred_check_branch
      %426 = sbr.rel (0) target = $region33
    $region32: #{ei_network_forward.14} parent=1 // pred_region
      %s428 = ssub.s32 32, 32
      %429 = vsyncadd [#allocation3], %s428
      %s431 = sshll.u32 [#allocation2], 4
      %s432 = int_to_ptr.vmem [resolvable:$true] %s431
      %434 = dma.vmem_to_hbm [thread:$0]  %s432, 32, %s7, [#allocation3]
    $region33: #{ei_network_forward.14} parent=1 // pred_fallthru
      _
    // Predicated region
    $region34: #{ei_network_forward.14} parent=1 // pred_check
      _
    $region35: #{ei_network_forward.14} parent=1 // pred_check_branch
      %436 = sbr.rel (0) target = $region37
    $region36: #{ei_network_forward.14} parent=1 // pred_region
      _
    $region37: #{ei_network_forward.14} parent=1 // pred_fallthru
      _
    // Predicated region
    $region38: #{ei_network_forward.14} parent=1 // pred_check
      _
    $region39: #{ei_network_forward.14} parent=1 // pred_check_branch
      %438 = sbr.rel (0) target = $region41
    $region40: #{ei_network_forward.14} parent=1 // pred_region
      _
    $region41: #{ei_network_forward.14} parent=1 // pred_fallthru
      _
    // Predicated region
    $region42: #{ei_network_forward.14} parent=1 // pred_check
      _
    $region43: #{ei_network_forward.14} parent=1 // pred_check_branch
      %440 = sbr.rel (0) target = $region45
    $region44: #{ei_network_forward.14} parent=1 // pred_region
      %441 = dma.done [#allocation3], 32
    $region45: #{ei_network_forward.14} parent=1 // pred_fallthru
      _
    %442 = vsyncpa [#allocation3], 1

</llo_original>
